<compile_context>
chip_gen: v7x
topology: tpu7x:2x2x1
jax: 0.10.0
libtpu: 0.0.40
codegen_flags: <defaults>
</compile_context>

<pallas_src>
import functools

import jax
import jax.numpy as jnp
from jax.experimental import pallas as pl
from jax.experimental.pallas import tpu as pltpu

K = 5      # conv kernel size
PAD = 2    # "same" padding for 5x5 / stride 1


# --------------------------- weight preparation ------------------------------
def _toeplitz_weights(w_oihw, W):
    """OIHW (Cout, Cin, 5, 5) -> per-kh block-Toeplitz RHS (K, W*Cin, W*Cout).

    B[kh, wu*Cin + ci, w*Cout + co] = w[co, ci, kh, wu + PAD - w]
    (zero where wu + PAD - w is outside [0, K)).  The width halo is absorbed
    into the zero structure, so the kernel never needs W-padding.
    """
    Cout, Cin, _, _ = w_oihw.shape
    wt = jnp.transpose(w_oihw, (2, 3, 1, 0))          # (kh, kw, Cin, Cout)
    wu = jnp.arange(W)[:, None]                       # source width index
    wo = jnp.arange(W)[None, :]                       # output width index
    kw = wu + PAD - wo                                # (W, W)
    valid = (kw >= 0) & (kw < K)
    kw_c = jnp.clip(kw, 0, K - 1)
    t = wt[:, kw_c]                                   # (K, W, W, Cin, Cout)
    t = jnp.where(valid[None, :, :, None, None], t, 0.0)
    t = jnp.transpose(t, (0, 1, 3, 2, 4))             # (K, wu, Cin, w, Cout)
    return t.reshape(K, W * Cin, W * Cout)


def prepare_smoothnet_params(params, W, compute_dtype=jnp.float32):
    """One-time (per image width) weight expansion; weights are static."""
    return tuple(_toeplitz_weights(params[k], W).astype(compute_dtype)
                 for k in ("conv1", "conv2", "conv3"))


# ------------------------------ fused kernel ---------------------------------
def _smoothnet_kernel(x_ref, w1_ref, w2_ref, w3_ref, o_ref, pad_x, pad_h, *,
                      H, W, Cin, Ch, negative_slope):
    """One image per grid step; conv1 -> (lrelu) -> conv2 -> (lrelu) -> conv3.

    x_ref : (1, H, W*Cin)          unpadded input slab (VMEM)
    wX_ref: (K, W*Cin_l, W*Cout_l) block-Toeplitz weights (VMEM)
    o_ref : (1, H, W*Cout)         output slab (VMEM)
    pad_x : (H+4, W*Cin)  scratch (row-padded layer-1 input, compute dtype)
    pad_h : (H+4, W*Ch)   scratch (row-padded hidden activations, compute dtype)
    """
    # Zero only the 2-row top/bottom halos, every step (cheap; stays correct
    # when the batch grid axis is sharded across TensorCores, since each core
    # owns its own scratch).
    pad_x[0:PAD, :] = jnp.zeros((PAD, W * Cin), pad_x.dtype)
    pad_x[PAD + H:PAD + H + PAD, :] = jnp.zeros((PAD, W * Cin), pad_x.dtype)
    pad_h[0:PAD, :] = jnp.zeros((PAD, W * Ch), pad_h.dtype)
    pad_h[PAD + H:PAD + H + PAD, :] = jnp.zeros((PAD, W * Ch), pad_h.dtype)

    # Place the unpadded image in the interior rows (lane-aligned store).
    pad_x[PAD:PAD + H, :] = x_ref[0].astype(pad_x.dtype)

    def conv(buf, w_ref, relu):
        acc = None
        for kh in range(K):                           # static row shifts
            lhs = buf[kh:kh + H, :]                   # (H, W*Cin_l)
            d = jnp.dot(lhs, w_ref[kh],               # (H, W*Cout_l), f32 acc
                        preferred_element_type=jnp.float32)
            acc = d if acc is None else acc + d
        if relu:
            acc = jnp.where(acc >= 0.0, acc, negative_slope * acc)
        return acc

    use_relu = negative_slope is not None
    pad_h[PAD:PAD + H, :] = conv(pad_x, w1_ref, use_relu).astype(pad_h.dtype)
    pad_h[PAD:PAD + H, :] = conv(pad_h, w2_ref, use_relu).astype(pad_h.dtype)
    o_ref[0] = conv(pad_h, w3_ref, False).astype(o_ref.dtype)


# ------------------------------ host wrappers ---------------------------------
@functools.partial(jax.jit, static_argnames=("use_relu",))
def smoothnet_apply(x_nchw, w1_t, w2_t, w3_t, use_relu=False):
    """Hot path: NCHW in/out, single fused pallas_call."""
    N, Cin, H, W = x_nchw.shape
    Ch = w1_t.shape[2] // W
    Cout = w3_t.shape[2] // W
    assert w1_t.shape == (K, W * Cin, W * Ch)
    assert w2_t.shape == (K, W * Ch, W * Ch)
    assert w3_t.shape == (K, W * Ch, W * Cout)

    # NCHW -> lane-dense (N, H, W*Cin) slab (boundary glue for the PyTorch API)
    x_flat = jnp.transpose(x_nchw, (0, 2, 3, 1)).reshape(N, H, W * Cin)
    slope = 0.2 if use_relu else None

    kern = functools.partial(_smoothnet_kernel, H=H, W=W, Cin=Cin, Ch=Ch,
                             negative_slope=slope)
    out_flat = pl.pallas_call(
        kern,
        out_shape=jax.ShapeDtypeStruct((N, H, W * Cout), x_nchw.dtype),
        grid_spec=pltpu.PrefetchScalarGridSpec(
            num_scalar_prefetch=0,
            grid=(N,),
            in_specs=[
                pl.BlockSpec((1, H, W * Cin), lambda n: (n, 0, 0)),
                pl.BlockSpec(w1_t.shape, lambda n: (0, 0, 0)),
                pl.BlockSpec(w2_t.shape, lambda n: (0, 0, 0)),
                pl.BlockSpec(w3_t.shape, lambda n: (0, 0, 0)),
            ],
            out_specs=pl.BlockSpec((1, H, W * Cout), lambda n: (n, 0, 0)),
            scratch_shapes=[
                pltpu.VMEM((H + 2 * PAD, W * Cin), w1_t.dtype),
                pltpu.VMEM((H + 2 * PAD, W * Ch), w1_t.dtype),
            ],
        ),
        compiler_params=pltpu.CompilerParams(
            dimension_semantics=("parallel",),
            vmem_limit_bytes=32 * 1024 * 1024,
        ),
    )(x_flat, w1_t, w2_t, w3_t)

    return jnp.transpose(out_flat.reshape(N, H, W, Cout), (0, 3, 1, 2))


def smoothnet_forward(x_nchw, params, use_relu=False, compute_dtype=jnp.float32):
    """Convenience wrapper matching SmoothNet.forward (NCHW in/out)."""
    W = x_nchw.shape[3]
    w1_t, w2_t, w3_t = prepare_smoothnet_params(params, W, compute_dtype)
    return smoothnet_apply(x_nchw, w1_t, w2_t, w3_t, use_relu=use_relu)


# ----------------------------- reference (pure JAX) ---------------------------
def _ref_conv(x_nchw, w_oihw):
    return jax.lax.conv_general_dilated(
        x_nchw, w_oihw, window_strides=(1, 1), padding=((PAD, PAD), (PAD, PAD)),
        dimension_numbers=("NCHW", "OIHW", "NCHW"))


def smoothnet_ref(x_nchw, params, use_relu=False):
    def lrelu(v):
        return jnp.where(v >= 0.0, v, 0.2 * v) if use_relu else v
    x = lrelu(_ref_conv(x_nchw, params["conv1"]))
    x = lrelu(_ref_conv(x, params["conv2"]))
    return _ref_conv(x, params["conv3"])


# ---------------------------------- main --------------------------------------
if __name__ == "__main__":
    # SmoothNet(input_nc=16, hidden_nc=16, output_nc=16)
    input_nc = hidden_nc = output_nc = 16
    N, H, W = 2, 16, 16

    key = jax.random.PRNGKey(0)
    k_x, k1, k2, k3 = jax.random.split(key, 4)

    x = jax.random.normal(k_x, (N, input_nc, H, W), jnp.float32)
    params = {
        "conv1": 0.1 * jax.random.normal(k1, (hidden_nc, input_nc, K, K), jnp.float32),
        "conv2": 0.1 * jax.random.normal(k2, (hidden_nc, hidden_nc, K, K), jnp.float32),
        "conv3": 0.1 * jax.random.normal(k3, (output_nc, hidden_nc, K, K), jnp.float32),
    }

    # One-time weight expansion (weights are static in inference).
    w1_t, w2_t, w3_t = prepare_smoothnet_params(params, W, jnp.float32)

    ok = True
    for use_relu in (False, True):   # default module has use_relu=False; check both
        out = jax.block_until_ready(
            smoothnet_apply(x, w1_t, w2_t, w3_t, use_relu=use_relu))
        ref = jax.block_until_ready(smoothnet_ref(x, params, use_relu=use_relu))
        ok &= out.shape == (N, output_nc, H, W)
        ok &= bool(jnp.allclose(out, ref, rtol=1e-3, atol=1e-3))

    # bf16-operand MXU fast path (v5e/v6e/v7x): compile/run smoke test only
    # (looser numerics by design, so just check shape + finiteness).
    out_bf16 = jax.block_until_ready(
        smoothnet_forward(x, params, use_relu=True, compute_dtype=jnp.bfloat16))
    ok &= out_bf16.shape == (N, output_nc, H, W)
    ok &= bool(jnp.all(jnp.isfinite(out_bf16)))

    if ok:
        print("KERNEL_OK")
</pallas_src>

<mosaic_0001>
module attributes {stable_mosaic.version = 11 : i64} {
  func.func @_smoothnet_kernel(%arg0: i32, %arg1: memref<1x16x256xf32, #tpu.memory_space<vmem>>, %arg2: memref<5x256x256xf32, #tpu.memory_space<vmem>>, %arg3: memref<5x256x256xf32, #tpu.memory_space<vmem>>, %arg4: memref<5x256x256xf32, #tpu.memory_space<vmem>>, %arg5: memref<1x16x256xf32, #tpu.memory_space<vmem>>, %arg6: memref<20x256xf32, #tpu.memory_space<vmem>>, %arg7: memref<20x256xf32, #tpu.memory_space<vmem>>) attributes {dimension_semantics = [#tpu.dimension_semantics<parallel>], iteration_bounds = array<i64: 2>, scalar_prefetch = 0 : i64, scratch_operands = 2 : i64, tpu.core_type = #tpu.core_type<tc>, window_params = [{transform_indices = @transform_0, window_bounds = array<i64: 1, 16, 256>}, {pipeline_mode = #tpu.pipeline_mode<synchronous>, transform_indices = @transform_1, window_bounds = array<i64: 5, 256, 256>}, {pipeline_mode = #tpu.pipeline_mode<synchronous>, transform_indices = @transform_2, window_bounds = array<i64: 5, 256, 256>}, {pipeline_mode = #tpu.pipeline_mode<synchronous>, transform_indices = @transform_3, window_bounds = array<i64: 5, 256, 256>}, {transform_indices = @transform_4, window_bounds = array<i64: 1, 16, 256>}]} {
    %cst = arith.constant 0.000000e+00 : f32
    %0 = vector.broadcast %cst : f32 to vector<2x256xf32>
    %c0 = arith.constant 0 : index
    %c0_0 = arith.constant 0 : index
    %1 = vector.load %arg6[%c0, %c0_0] : memref<20x256xf32, #tpu.memory_space<vmem>>, vector<2x256xf32>
    tpu.vector_store %arg6[%c0, %c0_0], %0 {strides = array<i32>} : memref<20x256xf32, #tpu.memory_space<vmem>>, vector<2x256xf32>,
    %cst_1 = arith.constant 0.000000e+00 : f32
    %2 = vector.broadcast %cst_1 : f32 to vector<2x256xf32>
    %c18 = arith.constant 18 : index
    %c0_2 = arith.constant 0 : index
    %3 = vector.load %arg6[%c18, %c0_2] : memref<20x256xf32, #tpu.memory_space<vmem>>, vector<2x256xf32>
    tpu.vector_store %arg6[%c18, %c0_2], %2 {strides = array<i32>} : memref<20x256xf32, #tpu.memory_space<vmem>>, vector<2x256xf32>,
    %cst_3 = arith.constant 0.000000e+00 : f32
    %4 = vector.broadcast %cst_3 : f32 to vector<2x256xf32>
    %c0_4 = arith.constant 0 : index
    %c0_5 = arith.constant 0 : index
    %5 = vector.load %arg7[%c0_4, %c0_5] : memref<20x256xf32, #tpu.memory_space<vmem>>, vector<2x256xf32>
    tpu.vector_store %arg7[%c0_4, %c0_5], %4 {strides = array<i32>} : memref<20x256xf32, #tpu.memory_space<vmem>>, vector<2x256xf32>,
    %cst_6 = arith.constant 0.000000e+00 : f32
    %6 = vector.broadcast %cst_6 : f32 to vector<2x256xf32>
    %c18_7 = arith.constant 18 : index
    %c0_8 = arith.constant 0 : index
    %7 = vector.load %arg7[%c18_7, %c0_8] : memref<20x256xf32, #tpu.memory_space<vmem>>, vector<2x256xf32>
    tpu.vector_store %arg7[%c18_7, %c0_8], %6 {strides = array<i32>} : memref<20x256xf32, #tpu.memory_space<vmem>>, vector<2x256xf32>,
    %c0_9 = arith.constant 0 : index
    %c0_10 = arith.constant 0 : index
    %c0_11 = arith.constant 0 : index
    %8 = vector.load %arg1[%c0_9, %c0_10, %c0_11] : memref<1x16x256xf32, #tpu.memory_space<vmem>>, vector<1x16x256xf32>
    %9 = vector.shape_cast %8 : vector<1x16x256xf32> to vector<16x256xf32>
    %c2 = arith.constant 2 : index
    %c0_12 = arith.constant 0 : index
    %10 = vector.load %arg6[%c2, %c0_12] : memref<20x256xf32, #tpu.memory_space<vmem>>, vector<16x256xf32>
    tpu.vector_store %arg6[%c2, %c0_12], %9 {strides = array<i32>} : memref<20x256xf32, #tpu.memory_space<vmem>>, vector<16x256xf32>,
    %c0_13 = arith.constant 0 : index
    %c0_14 = arith.constant 0 : index
    %11 = vector.load %arg6[%c0_13, %c0_14] : memref<20x256xf32, #tpu.memory_space<vmem>>, vector<16x256xf32>
    %c0_15 = arith.constant 0 : index
    %c0_16 = arith.constant 0 : index
    %c0_17 = arith.constant 0 : index
    %12 = vector.load %arg2[%c0_15, %c0_16, %c0_17] : memref<5x256x256xf32, #tpu.memory_space<vmem>>, vector<1x256x256xf32>
    %13 = vector.shape_cast %12 : vector<1x256x256xf32> to vector<256x256xf32>
    %cst_18 = arith.constant dense<0.000000e+00> : vector<16x256xf32>
    %14 = tpu.matmul %11, %13, %cst_18 {dimension_numbers = #tpu.dot_dimension_numbers<[1], [0], [0], [1], [0, 0, 1, 1], [], []>} : vector<16x256xf32>, vector<256x256xf32>, vector<16x256xf32> -> vector<16x256xf32>
    %c1 = arith.constant 1 : index
    %c0_19 = arith.constant 0 : index
    %15 = vector.load %arg6[%c1, %c0_19] : memref<20x256xf32, #tpu.memory_space<vmem>>, vector<16x256xf32>
    %c1_20 = arith.constant 1 : index
    %c0_21 = arith.constant 0 : index
    %c0_22 = arith.constant 0 : index
    %16 = vector.load %arg2[%c1_20, %c0_21, %c0_22] : memref<5x256x256xf32, #tpu.memory_space<vmem>>, vector<1x256x256xf32>
    %17 = vector.shape_cast %16 : vector<1x256x256xf32> to vector<256x256xf32>
    %cst_23 = arith.constant dense<0.000000e+00> : vector<16x256xf32>
    %18 = tpu.matmul %15, %17, %cst_23 {dimension_numbers = #tpu.dot_dimension_numbers<[1], [0], [0], [1], [0, 0, 1, 1], [], []>} : vector<16x256xf32>, vector<256x256xf32>, vector<16x256xf32> -> vector<16x256xf32>
    %19 = arith.addf %14, %18 : vector<16x256xf32>
    %c2_24 = arith.constant 2 : index
    %c0_25 = arith.constant 0 : index
    %20 = vector.load %arg6[%c2_24, %c0_25] : memref<20x256xf32, #tpu.memory_space<vmem>>, vector<16x256xf32>
    %c2_26 = arith.constant 2 : index
    %c0_27 = arith.constant 0 : index
    %c0_28 = arith.constant 0 : index
    %21 = vector.load %arg2[%c2_26, %c0_27, %c0_28] : memref<5x256x256xf32, #tpu.memory_space<vmem>>, vector<1x256x256xf32>
    %22 = vector.shape_cast %21 : vector<1x256x256xf32> to vector<256x256xf32>
    %cst_29 = arith.constant dense<0.000000e+00> : vector<16x256xf32>
    %23 = tpu.matmul %20, %22, %cst_29 {dimension_numbers = #tpu.dot_dimension_numbers<[1], [0], [0], [1], [0, 0, 1, 1], [], []>} : vector<16x256xf32>, vector<256x256xf32>, vector<16x256xf32> -> vector<16x256xf32>
    %24 = arith.addf %19, %23 : vector<16x256xf32>
    %c3 = arith.constant 3 : index
    %c0_30 = arith.constant 0 : index
    %25 = vector.load %arg6[%c3, %c0_30] : memref<20x256xf32, #tpu.memory_space<vmem>>, vector<16x256xf32>
    %c3_31 = arith.constant 3 : index
    %c0_32 = arith.constant 0 : index
    %c0_33 = arith.constant 0 : index
    %26 = vector.load %arg2[%c3_31, %c0_32, %c0_33] : memref<5x256x256xf32, #tpu.memory_space<vmem>>, vector<1x256x256xf32>
    %27 = vector.shape_cast %26 : vector<1x256x256xf32> to vector<256x256xf32>
    %cst_34 = arith.constant dense<0.000000e+00> : vector<16x256xf32>
    %28 = tpu.matmul %25, %27, %cst_34 {dimension_numbers = #tpu.dot_dimension_numbers<[1], [0], [0], [1], [0, 0, 1, 1], [], []>} : vector<16x256xf32>, vector<256x256xf32>, vector<16x256xf32> -> vector<16x256xf32>
    %29 = arith.addf %24, %28 : vector<16x256xf32>
    %c4 = arith.constant 4 : index
    %c0_35 = arith.constant 0 : index
    %30 = vector.load %arg6[%c4, %c0_35] : memref<20x256xf32, #tpu.memory_space<vmem>>, vector<16x256xf32>
    %c4_36 = arith.constant 4 : index
    %c0_37 = arith.constant 0 : index
    %c0_38 = arith.constant 0 : index
    %31 = vector.load %arg2[%c4_36, %c0_37, %c0_38] : memref<5x256x256xf32, #tpu.memory_space<vmem>>, vector<1x256x256xf32>
    %32 = vector.shape_cast %31 : vector<1x256x256xf32> to vector<256x256xf32>
    %cst_39 = arith.constant dense<0.000000e+00> : vector<16x256xf32>
    %33 = tpu.matmul %30, %32, %cst_39 {dimension_numbers = #tpu.dot_dimension_numbers<[1], [0], [0], [1], [0, 0, 1, 1], [], []>} : vector<16x256xf32>, vector<256x256xf32>, vector<16x256xf32> -> vector<16x256xf32>
    %34 = arith.addf %29, %33 : vector<16x256xf32>
    %c2_40 = arith.constant 2 : index
    %c0_41 = arith.constant 0 : index
    %35 = vector.load %arg7[%c2_40, %c0_41] : memref<20x256xf32, #tpu.memory_space<vmem>>, vector<16x256xf32>
    tpu.vector_store %arg7[%c2_40, %c0_41], %34 {strides = array<i32>} : memref<20x256xf32, #tpu.memory_space<vmem>>, vector<16x256xf32>,
    %c0_42 = arith.constant 0 : index
    %c0_43 = arith.constant 0 : index
    %36 = vector.load %arg7[%c0_42, %c0_43] : memref<20x256xf32, #tpu.memory_space<vmem>>, vector<16x256xf32>
    %c0_44 = arith.constant 0 : index
    %c0_45 = arith.constant 0 : index
    %c0_46 = arith.constant 0 : index
    %37 = vector.load %arg3[%c0_44, %c0_45, %c0_46] : memref<5x256x256xf32, #tpu.memory_space<vmem>>, vector<1x256x256xf32>
    %38 = vector.shape_cast %37 : vector<1x256x256xf32> to vector<256x256xf32>
    %cst_47 = arith.constant dense<0.000000e+00> : vector<16x256xf32>
    %39 = tpu.matmul %36, %38, %cst_47 {dimension_numbers = #tpu.dot_dimension_numbers<[1], [0], [0], [1], [0, 0, 1, 1], [], []>} : vector<16x256xf32>, vector<256x256xf32>, vector<16x256xf32> -> vector<16x256xf32>
    %c1_48 = arith.constant 1 : index
    %c0_49 = arith.constant 0 : index
    %40 = vector.load %arg7[%c1_48, %c0_49] : memref<20x256xf32, #tpu.memory_space<vmem>>, vector<16x256xf32>
    %c1_50 = arith.constant 1 : index
    %c0_51 = arith.constant 0 : index
    %c0_52 = arith.constant 0 : index
    %41 = vector.load %arg3[%c1_50, %c0_51, %c0_52] : memref<5x256x256xf32, #tpu.memory_space<vmem>>, vector<1x256x256xf32>
    %42 = vector.shape_cast %41 : vector<1x256x256xf32> to vector<256x256xf32>
    %cst_53 = arith.constant dense<0.000000e+00> : vector<16x256xf32>
    %43 = tpu.matmul %40, %42, %cst_53 {dimension_numbers = #tpu.dot_dimension_numbers<[1], [0], [0], [1], [0, 0, 1, 1], [], []>} : vector<16x256xf32>, vector<256x256xf32>, vector<16x256xf32> -> vector<16x256xf32>
    %44 = arith.addf %39, %43 : vector<16x256xf32>
    %c2_54 = arith.constant 2 : index
    %c0_55 = arith.constant 0 : index
    %45 = vector.load %arg7[%c2_54, %c0_55] : memref<20x256xf32, #tpu.memory_space<vmem>>, vector<16x256xf32>
    %c2_56 = arith.constant 2 : index
    %c0_57 = arith.constant 0 : index
    %c0_58 = arith.constant 0 : index
    %46 = vector.load %arg3[%c2_56, %c0_57, %c0_58] : memref<5x256x256xf32, #tpu.memory_space<vmem>>, vector<1x256x256xf32>
    %47 = vector.shape_cast %46 : vector<1x256x256xf32> to vector<256x256xf32>
    %cst_59 = arith.constant dense<0.000000e+00> : vector<16x256xf32>
    %48 = tpu.matmul %45, %47, %cst_59 {dimension_numbers = #tpu.dot_dimension_numbers<[1], [0], [0], [1], [0, 0, 1, 1], [], []>} : vector<16x256xf32>, vector<256x256xf32>, vector<16x256xf32> -> vector<16x256xf32>
    %49 = arith.addf %44, %48 : vector<16x256xf32>
    %c3_60 = arith.constant 3 : index
    %c0_61 = arith.constant 0 : index
    %50 = vector.load %arg7[%c3_60, %c0_61] : memref<20x256xf32, #tpu.memory_space<vmem>>, vector<16x256xf32>
    %c3_62 = arith.constant 3 : index
    %c0_63 = arith.constant 0 : index
    %c0_64 = arith.constant 0 : index
    %51 = vector.load %arg3[%c3_62, %c0_63, %c0_64] : memref<5x256x256xf32, #tpu.memory_space<vmem>>, vector<1x256x256xf32>
    %52 = vector.shape_cast %51 : vector<1x256x256xf32> to vector<256x256xf32>
    %cst_65 = arith.constant dense<0.000000e+00> : vector<16x256xf32>
    %53 = tpu.matmul %50, %52, %cst_65 {dimension_numbers = #tpu.dot_dimension_numbers<[1], [0], [0], [1], [0, 0, 1, 1], [], []>} : vector<16x256xf32>, vector<256x256xf32>, vector<16x256xf32> -> vector<16x256xf32>
    %54 = arith.addf %49, %53 : vector<16x256xf32>
    %c4_66 = arith.constant 4 : index
    %c0_67 = arith.constant 0 : index
    %55 = vector.load %arg7[%c4_66, %c0_67] : memref<20x256xf32, #tpu.memory_space<vmem>>, vector<16x256xf32>
    %c4_68 = arith.constant 4 : index
    %c0_69 = arith.constant 0 : index
    %c0_70 = arith.constant 0 : index
    %56 = vector.load %arg3[%c4_68, %c0_69, %c0_70] : memref<5x256x256xf32, #tpu.memory_space<vmem>>, vector<1x256x256xf32>
    %57 = vector.shape_cast %56 : vector<1x256x256xf32> to vector<256x256xf32>
    %cst_71 = arith.constant dense<0.000000e+00> : vector<16x256xf32>
    %58 = tpu.matmul %55, %57, %cst_71 {dimension_numbers = #tpu.dot_dimension_numbers<[1], [0], [0], [1], [0, 0, 1, 1], [], []>} : vector<16x256xf32>, vector<256x256xf32>, vector<16x256xf32> -> vector<16x256xf32>
    %59 = arith.addf %54, %58 : vector<16x256xf32>
    %c2_72 = arith.constant 2 : index
    %c0_73 = arith.constant 0 : index
    %60 = vector.load %arg7[%c2_72, %c0_73] : memref<20x256xf32, #tpu.memory_space<vmem>>, vector<16x256xf32>
    tpu.vector_store %arg7[%c2_72, %c0_73], %59 {strides = array<i32>} : memref<20x256xf32, #tpu.memory_space<vmem>>, vector<16x256xf32>,
    %c0_74 = arith.constant 0 : index
    %c0_75 = arith.constant 0 : index
    %61 = vector.load %arg7[%c0_74, %c0_75] : memref<20x256xf32, #tpu.memory_space<vmem>>, vector<16x256xf32>
    %c0_76 = arith.constant 0 : index
    %c0_77 = arith.constant 0 : index
    %c0_78 = arith.constant 0 : index
    %62 = vector.load %arg4[%c0_76, %c0_77, %c0_78] : memref<5x256x256xf32, #tpu.memory_space<vmem>>, vector<1x256x256xf32>
    %63 = vector.shape_cast %62 : vector<1x256x256xf32> to vector<256x256xf32>
    %cst_79 = arith.constant dense<0.000000e+00> : vector<16x256xf32>
    %64 = tpu.matmul %61, %63, %cst_79 {dimension_numbers = #tpu.dot_dimension_numbers<[1], [0], [0], [1], [0, 0, 1, 1], [], []>} : vector<16x256xf32>, vector<256x256xf32>, vector<16x256xf32> -> vector<16x256xf32>
    %c1_80 = arith.constant 1 : index
    %c0_81 = arith.constant 0 : index
    %65 = vector.load %arg7[%c1_80, %c0_81] : memref<20x256xf32, #tpu.memory_space<vmem>>, vector<16x256xf32>
    %c1_82 = arith.constant 1 : index
    %c0_83 = arith.constant 0 : index
    %c0_84 = arith.constant 0 : index
    %66 = vector.load %arg4[%c1_82, %c0_83, %c0_84] : memref<5x256x256xf32, #tpu.memory_space<vmem>>, vector<1x256x256xf32>
    %67 = vector.shape_cast %66 : vector<1x256x256xf32> to vector<256x256xf32>
    %cst_85 = arith.constant dense<0.000000e+00> : vector<16x256xf32>
    %68 = tpu.matmul %65, %67, %cst_85 {dimension_numbers = #tpu.dot_dimension_numbers<[1], [0], [0], [1], [0, 0, 1, 1], [], []>} : vector<16x256xf32>, vector<256x256xf32>, vector<16x256xf32> -> vector<16x256xf32>
    %69 = arith.addf %64, %68 : vector<16x256xf32>
    %c2_86 = arith.constant 2 : index
    %c0_87 = arith.constant 0 : index
    %70 = vector.load %arg7[%c2_86, %c0_87] : memref<20x256xf32, #tpu.memory_space<vmem>>, vector<16x256xf32>
    %c2_88 = arith.constant 2 : index
    %c0_89 = arith.constant 0 : index
    %c0_90 = arith.constant 0 : index
    %71 = vector.load %arg4[%c2_88, %c0_89, %c0_90] : memref<5x256x256xf32, #tpu.memory_space<vmem>>, vector<1x256x256xf32>
    %72 = vector.shape_cast %71 : vector<1x256x256xf32> to vector<256x256xf32>
    %cst_91 = arith.constant dense<0.000000e+00> : vector<16x256xf32>
    %73 = tpu.matmul %70, %72, %cst_91 {dimension_numbers = #tpu.dot_dimension_numbers<[1], [0], [0], [1], [0, 0, 1, 1], [], []>} : vector<16x256xf32>, vector<256x256xf32>, vector<16x256xf32> -> vector<16x256xf32>
    %74 = arith.addf %69, %73 : vector<16x256xf32>
    %c3_92 = arith.constant 3 : index
    %c0_93 = arith.constant 0 : index
    %75 = vector.load %arg7[%c3_92, %c0_93] : memref<20x256xf32, #tpu.memory_space<vmem>>, vector<16x256xf32>
    %c3_94 = arith.constant 3 : index
    %c0_95 = arith.constant 0 : index
    %c0_96 = arith.constant 0 : index
    %76 = vector.load %arg4[%c3_94, %c0_95, %c0_96] : memref<5x256x256xf32, #tpu.memory_space<vmem>>, vector<1x256x256xf32>
    %77 = vector.shape_cast %76 : vector<1x256x256xf32> to vector<256x256xf32>
    %cst_97 = arith.constant dense<0.000000e+00> : vector<16x256xf32>
    %78 = tpu.matmul %75, %77, %cst_97 {dimension_numbers = #tpu.dot_dimension_numbers<[1], [0], [0], [1], [0, 0, 1, 1], [], []>} : vector<16x256xf32>, vector<256x256xf32>, vector<16x256xf32> -> vector<16x256xf32>
    %79 = arith.addf %74, %78 : vector<16x256xf32>
    %c4_98 = arith.constant 4 : index
    %c0_99 = arith.constant 0 : index
    %80 = vector.load %arg7[%c4_98, %c0_99] : memref<20x256xf32, #tpu.memory_space<vmem>>, vector<16x256xf32>
    %c4_100 = arith.constant 4 : index
    %c0_101 = arith.constant 0 : index
    %c0_102 = arith.constant 0 : index
    %81 = vector.load %arg4[%c4_100, %c0_101, %c0_102] : memref<5x256x256xf32, #tpu.memory_space<vmem>>, vector<1x256x256xf32>
    %82 = vector.shape_cast %81 : vector<1x256x256xf32> to vector<256x256xf32>
    %cst_103 = arith.constant dense<0.000000e+00> : vector<16x256xf32>
    %83 = tpu.matmul %80, %82, %cst_103 {dimension_numbers = #tpu.dot_dimension_numbers<[1], [0], [0], [1], [0, 0, 1, 1], [], []>} : vector<16x256xf32>, vector<256x256xf32>, vector<16x256xf32> -> vector<16x256xf32>
    %84 = arith.addf %79, %83 : vector<16x256xf32>
    %c0_104 = arith.constant 0 : index
    %c0_105 = arith.constant 0 : index
    %c0_106 = arith.constant 0 : index
    %85 = vector.load %arg5[%c0_104, %c0_105, %c0_106] : memref<1x16x256xf32, #tpu.memory_space<vmem>>, vector<1x16x256xf32>
    %86 = vector.shape_cast %85 : vector<1x16x256xf32> to vector<16x256xf32>
    %87 = vector.shape_cast %84 : vector<16x256xf32> to vector<1x16x256xf32>
    tpu.vector_store %arg5[%c0_104, %c0_105, %c0_106], %87 {strides = array<i32>} : memref<1x16x256xf32, #tpu.memory_space<vmem>>, vector<1x16x256xf32>,
    return
  }
  func.func @transform_0(%arg0: i32) -> (i32, i32, i32) {
    %c0_i32 = arith.constant 0 : i32
    %c0_i32_0 = arith.constant 0 : i32
    %c0_i32_1 = arith.constant 0 : i32
    return %arg0, %c0_i32, %c0_i32_0 : i32, i32, i32
  }
  func.func @transform_1(%arg0: i32) -> (i32, i32, i32) {
    %c0_i32 = arith.constant 0 : i32
    %c0_i32_0 = arith.constant 0 : i32
    %c0_i32_1 = arith.constant 0 : i32
    %c0_i32_2 = arith.constant 0 : i32
    return %c0_i32, %c0_i32_0, %c0_i32_1 : i32, i32, i32
  }
  func.func @transform_2(%arg0: i32) -> (i32, i32, i32) {
    %c0_i32 = arith.constant 0 : i32
    %c0_i32_0 = arith.constant 0 : i32
    %c0_i32_1 = arith.constant 0 : i32
    %c0_i32_2 = arith.constant 0 : i32
    return %c0_i32, %c0_i32_0, %c0_i32_1 : i32, i32, i32
  }
  func.func @transform_3(%arg0: i32) -> (i32, i32, i32) {
    %c0_i32 = arith.constant 0 : i32
    %c0_i32_0 = arith.constant 0 : i32
    %c0_i32_1 = arith.constant 0 : i32
    %c0_i32_2 = arith.constant 0 : i32
    return %c0_i32, %c0_i32_0, %c0_i32_1 : i32, i32, i32
  }
  func.func @transform_4(%arg0: i32) -> (i32, i32, i32) {
    %c0_i32 = arith.constant 0 : i32
    %c0_i32_0 = arith.constant 0 : i32
    %c0_i32_1 = arith.constant 0 : i32
    return %arg0, %c0_i32, %c0_i32_0 : i32, i32, i32
  }
}

</mosaic_0001>

<llo_original>
// kernel: smoothnet_apply.1
$region0: #{smoothnet_apply.1}
  #allocation0 [shape = 'u32[]', space=smem, size = 0x4, offset = 0x4, fixed_abs, tag = 'smem constant byte address 0x4 - core index']
  #allocation1 [shape = 'u32[144,128]{1,0:T(1,128)}', space=vmem, size = 0x12000, scoped, tag = 'internal scratch']
  #allocation2 [shape = 'f32[20,256]{1,0:T(8,128)}', space=vmem, size = 0x6000, scoped, tag = 'scratch operand']
  #allocation3 [shape = 'f32[20,256]{1,0:T(8,128)}', space=vmem, size = 0x6000, scoped, tag = 'scratch operand']
  %s0 = inlined_call_operand.vmem [shape: f32[2,16,256], index: 0, kind: input, shape index: {}]
  %s1 = inlined_call_operand.hbm [shape: f32[5,256,256], index: 1, kind: input, shape index: {}]
  %s2 = inlined_call_operand.hbm [shape: f32[5,256,256], index: 2, kind: input, shape index: {}]
  %s3 = inlined_call_operand.hbm [shape: f32[5,256,256], index: 3, kind: input, shape index: {}]
  %s4 = inlined_call_operand.vmem [shape: f32[2,16,256], index: 4, kind: output, shape index: {}]
  %s5 = sld [smem:[#allocation0]]
  $region61: #{smoothnet_apply.1} parent=0
    _
  %s7 = ssub.s32 1, %s5
  %s8 = scalar_select 0, %s7, %s5
  $region1: #{smoothnet_apply.1} parent=0
    #allocation4 [shape = 'u8[1310720]{0}', space=vmem, size = 0x140000, scoped, tag = 'input window, operand 1, single buffered']
    #allocation5 [shape = 's32[2]{0}', space=sflag, size = 0x8, scoped, tag = 'scoped memory for smoothnet_apply.1']
    #allocation6 [shape = 'u8[1310720]{0}', space=vmem, size = 0x140000, scoped, tag = 'input window, operand 2, single buffered']
    #allocation7 [shape = 's32[1]{0}', space=sflag, size = 0x4, scoped, tag = 'scoped memory for smoothnet_apply.1']
    #allocation8 [shape = 'u8[1310720]{0}', space=vmem, size = 0x140000, scoped, tag = 'input window, operand 3, single buffered']
    %9 = vsyncpa [#allocation5], 0
    %10 = vsyncpa [#allocation7], 0
    loop: start=0, step=1, limit=4
    $region2: #{smoothnet_apply.1} parent=1 // loop_pre_header
      _
    $region3: #{smoothnet_apply.1} parent=1 // loop_header
      %s12 = sphi 0, %s16
      %p13 = scmp.ge.s32.totalorder %s12, 4
      %s22 = sphi 0, %s24
      %s25 = sphi 0, %s22
      %s26 = sphi 0, %s25
      %s42 = sphi 0, %s26
      %s46 = sphi 0, %s46
      %s48 = sphi 0, %s46
      %s49 = sphi 0, %s48
      %s63 = sphi 0, %s49
      %s67 = sphi 0, %s67
      %s69 = sphi 0, %s67
      %s70 = sphi 0, %s69
      %s84 = sphi 0, %s70
      %s88 = sphi 0, %s88
      %s90 = sphi 0, %s88
      %s91 = sphi 0, %s90
      %s105 = sphi 0, %s91
      %s111 = sphi 0, %s113
      %s114 = sphi 0, %s111
      %s115 = sphi 0, %s114
      %s131 = sphi 0, %s115
    $region4: #{smoothnet_apply.1} parent=1 // loop_header_branch
      %15 = sbr.rel (%p13) target = $region8
    $region5: #{smoothnet_apply.1} parent=1 // loop_body
      %s17 = ssub.s32 %s12, 1
      %s18 = ssub.s32 %s12, 2
      %s19 = sadd.s32 %s12, 1
      %s20 = ssub.s32 %s12, %s19
      %p21 = scmp.eq.s32.totalorder %s20, 0
      %s23 = sadd.s32 %s22, 1
      %s24 = scalar_select %p21, %s22, %s23
      %p27 = pneg %p21
      %p28 = scmp.eq.s32.totalorder %s12, 1
      %p29 = por %p27, %p28
      %p30 = scmp.ne.s32.totalorder %s22, %s25
      %p31 = scmp.eq.s32.totalorder %s12, 0
      %p32 = por %p30, %p31
      %p33 = scmp.ne.s32.totalorder %s22, %s25
      %p34 = scmp.eq.s32.totalorder %s17, 1
      %p35 = por %p33, %p34
      %p36 = scmp.ne.s32.totalorder %s25, %s26
      %p37 = scmp.eq.s32.totalorder %s17, 0
      %p38 = por %p36, %p37
      %p39 = scmp.ne.s32.totalorder %s25, %s26
      %p40 = scmp.eq.s32.totalorder %s18, 1
      %p41 = por %p39, %p40
      %p43 = scmp.ne.s32.totalorder %s26, %s42
      %p44 = scmp.eq.s32.totalorder %s18, 0
      %p45 = por %p43, %p44
      %s47 = sadd.s32 %s46, 1
      %p50 = scmp.eq.s32.totalorder %s12, 1
      %p51 = scmp.ne.s32.totalorder %s46, %s48
      %p52 = scmp.eq.s32.totalorder %s12, 0
      %p53 = por %p51, %p52
      %p54 = scmp.ne.s32.totalorder %s46, %s48
      %p55 = scmp.eq.s32.totalorder %s17, 1
      %p56 = por %p54, %p55
      %p57 = scmp.ne.s32.totalorder %s48, %s49
      %p58 = scmp.eq.s32.totalorder %s17, 0
      %p59 = por %p57, %p58
      %p60 = scmp.ne.s32.totalorder %s48, %s49
      %p61 = scmp.eq.s32.totalorder %s18, 1
      %p62 = por %p60, %p61
      %p64 = scmp.ne.s32.totalorder %s49, %s63
      %p65 = scmp.eq.s32.totalorder %s18, 0
      %p66 = por %p64, %p65
      %s68 = sadd.s32 %s67, 1
      %p71 = scmp.eq.s32.totalorder %s12, 1
      %p72 = scmp.ne.s32.totalorder %s67, %s69
      %p73 = scmp.eq.s32.totalorder %s12, 0
      %p74 = por %p72, %p73
      %p75 = scmp.ne.s32.totalorder %s67, %s69
      %p76 = scmp.eq.s32.totalorder %s17, 1
      %p77 = por %p75, %p76
      %p78 = scmp.ne.s32.totalorder %s69, %s70
      %p79 = scmp.eq.s32.totalorder %s17, 0
      %p80 = por %p78, %p79
      %p81 = scmp.ne.s32.totalorder %s69, %s70
      %p82 = scmp.eq.s32.totalorder %s18, 1
      %p83 = por %p81, %p82
      %p85 = scmp.ne.s32.totalorder %s70, %s84
      %p86 = scmp.eq.s32.totalorder %s18, 0
      %p87 = por %p85, %p86
      %s89 = sadd.s32 %s88, 1
      %p92 = scmp.eq.s32.totalorder %s12, 1
      %p93 = scmp.ne.s32.totalorder %s88, %s90
      %p94 = scmp.eq.s32.totalorder %s12, 0
      %p95 = por %p93, %p94
      %p96 = scmp.ne.s32.totalorder %s88, %s90
      %p97 = scmp.eq.s32.totalorder %s17, 1
      %p98 = por %p96, %p97
      %p99 = scmp.ne.s32.totalorder %s90, %s91
      %p100 = scmp.eq.s32.totalorder %s17, 0
      %p101 = por %p99, %p100
      %p102 = scmp.ne.s32.totalorder %s90, %s91
      %p103 = scmp.eq.s32.totalorder %s18, 1
      %p104 = por %p102, %p103
      %p106 = scmp.ne.s32.totalorder %s91, %s105
      %p107 = scmp.eq.s32.totalorder %s18, 0
      %p108 = por %p106, %p107
      %s109 = ssub.s32 %s12, %s19
      %p110 = scmp.eq.s32.totalorder %s109, 0
      %s112 = sadd.s32 %s111, 1
      %s113 = scalar_select %p110, %s111, %s112
      %p116 = pneg %p110
      %p117 = scmp.eq.s32.totalorder %s12, 1
      %p118 = por %p116, %p117
      %p119 = scmp.ne.s32.totalorder %s111, %s114
      %p120 = scmp.eq.s32.totalorder %s12, 0
      %p121 = por %p119, %p120
      %p122 = scmp.ne.s32.totalorder %s111, %s114
      %p123 = scmp.eq.s32.totalorder %s17, 1
      %p124 = por %p122, %p123
      %p125 = scmp.ne.s32.totalorder %s114, %s115
      %p126 = scmp.eq.s32.totalorder %s17, 0
      %p127 = por %p125, %p126
      %p128 = scmp.ne.s32.totalorder %s114, %s115
      %p129 = scmp.eq.s32.totalorder %s18, 1
      %p130 = por %p128, %p129
      %p132 = scmp.ne.s32.totalorder %s115, %s131
      %p133 = scmp.eq.s32.totalorder %s18, 0
      %p134 = por %p132, %p133
      %p135 = scmp.le.s32.totalorder 1, %s12
      %p136 = scmp.lt.s32.totalorder %s12, 3
      %p137 = pnand %p135, %p136
      %p138 = pneg %p137
      // Predicated region
      $region9: #{smoothnet_apply.1} parent=5 // pred_check
        _
      $region10: #{smoothnet_apply.1} parent=5 // pred_check_branch
        %140 = sbr.rel (%p137) target = $region12
      $region11: #{smoothnet_apply.1} parent=5 // pred_region
        %s141 = ssub.s32 %s12, 1
        // Predicated region
        $region13: #{smoothnet_apply.1} parent=11 // pred_check
          %p142 = pneg %p59
        $region14: #{smoothnet_apply.1} parent=11 // pred_check_branch
          %144 = sbr.rel (%p142) target = $region16
        $region15: #{smoothnet_apply.1} parent=11 // pred_region
          %s146 = ssub.s32 40960, 40960
          %147 = vsyncadd [#allocation5], %s146
          %s148 = sshll.u32 [#allocation4], 4
          %s149 = int_to_ptr.vmem [resolvable:$true] %s148
          %154 = dma.hbm_to_vmem [thread:$0]  %s1, 40960, %s149, [#allocation5], 256, 256, 16
        $region16: #{smoothnet_apply.1} parent=11 // pred_fallthru
          _
        // Predicated region
        $region17: #{smoothnet_apply.1} parent=11 // pred_check
          %p155 = pneg %p80
        $region18: #{smoothnet_apply.1} parent=11 // pred_check_branch
          %157 = sbr.rel (%p155) target = $region20
        $region19: #{smoothnet_apply.1} parent=11 // pred_region
          %s159 = ssub.s32 40960, 40960
          %160 = vsyncadd [#allocation7], %s159
          %s161 = sshll.u32 [#allocation6], 4
          %s162 = int_to_ptr.vmem [resolvable:$true] %s161
          %167 = dma.hbm_to_vmem [thread:$0]  %s2, 40960, %s162, [#allocation7], 256, 256, 16
        $region20: #{smoothnet_apply.1} parent=11 // pred_fallthru
          _
        // Predicated region
        $region21: #{smoothnet_apply.1} parent=11 // pred_check
          %p168 = pneg %p101
        $region22: #{smoothnet_apply.1} parent=11 // pred_check_branch
          %170 = sbr.rel (%p168) target = $region24
        $region23: #{smoothnet_apply.1} parent=11 // pred_region
          %s172 = ssub.s32 40960, 40960
          %173 = vsyncadd [#allocation7], %s172
          %s174 = sshll.u32 [#allocation8], 4
          %s175 = int_to_ptr.vmem [resolvable:$true] %s174
          %180 = dma.hbm_to_vmem [thread:$0]  %s3, 40960, %s175, [#allocation7], 256, 256, 16
        $region24: #{smoothnet_apply.1} parent=11 // pred_fallthru
          _
      $region12: #{smoothnet_apply.1} parent=5 // pred_fallthru
        _
      %p181 = scmp.lt.s32.totalorder %s12, 2
      // Predicated region
      $region25: #{smoothnet_apply.1} parent=5 // pred_check
        %p182 = pneg %p181
      $region26: #{smoothnet_apply.1} parent=5 // pred_check_branch
        %184 = sbr.rel (%p182) target = $region28
      $region27: #{smoothnet_apply.1} parent=5 // pred_region
        // Predicated region
        $region29: #{smoothnet_apply.1} parent=27 // pred_check
          %p185 = pneg %p32
        $region30: #{smoothnet_apply.1} parent=27 // pred_check_branch
          %187 = sbr.rel (%p185) target = $region32
        $region31: #{smoothnet_apply.1} parent=27 // pred_region
          %p188 = scmp.lt.s32.totalorder %s12, 1
          %s189 = scalar_select %p188, %s12, 1
          %s190 = smul.addr %s189, 4
          %s191 = smul.addr %s190, 8
          %s192 = scalar_lea.vmem %s0, %s191
        $region32: #{smoothnet_apply.1} parent=27 // pred_fallthru
          _
      $region28: #{smoothnet_apply.1} parent=5 // pred_fallthru
        _
      %p193 = scmp.le.s32.totalorder 1, %s12
      %p194 = scmp.lt.s32.totalorder %s12, 3
      %p195 = pnand %p193, %p194
      %p196 = pneg %p195
      // Predicated region
      $region33: #{smoothnet_apply.1} parent=5 // pred_check
        _
      $region34: #{smoothnet_apply.1} parent=5 // pred_check_branch
        %198 = sbr.rel (%p195) target = $region36
      $region35: #{smoothnet_apply.1} parent=5 // pred_region
        %s199 = ssub.s32 %s12, 1
        // Predicated region
        $region37: #{smoothnet_apply.1} parent=35 // pred_check
          %p200 = pneg %p59
        $region38: #{smoothnet_apply.1} parent=35 // pred_check_branch
          %202 = sbr.rel (%p200) target = $region40
        $region39: #{smoothnet_apply.1} parent=35 // pred_region
          %203 = dma.done [#allocation5], 40960
        $region40: #{smoothnet_apply.1} parent=35 // pred_fallthru
          _
        // Predicated region
        $region41: #{smoothnet_apply.1} parent=35 // pred_check
          %p204 = pneg %p80
        $region42: #{smoothnet_apply.1} parent=35 // pred_check_branch
          %206 = sbr.rel (%p204) target = $region44
        $region43: #{smoothnet_apply.1} parent=35 // pred_region
          %207 = dma.done [#allocation7], 40960
        $region44: #{smoothnet_apply.1} parent=35 // pred_fallthru
          _
        // Predicated region
        $region45: #{smoothnet_apply.1} parent=35 // pred_check
          %p208 = pneg %p101
        $region46: #{smoothnet_apply.1} parent=35 // pred_check_branch
          %210 = sbr.rel (%p208) target = $region48
        $region47: #{smoothnet_apply.1} parent=35 // pred_region
          %211 = dma.done [#allocation7], 40960
        $region48: #{smoothnet_apply.1} parent=35 // pred_fallthru
          _
        %p212 = scmp.lt.s32.totalorder %s17, 1
        %s213 = scalar_select %p212, %s17, 1
        %s214 = smul.addr %s213, 4
        %s215 = smul.addr %s214, 8
        %s216 = scalar_lea.vmem %s0, %s215
        %p217 = pneg %p38
        %p218 = pneg %p35
        %p219 = pneg %p59
        %p220 = pneg %p56
        %p221 = pneg %p80
        %p222 = pneg %p77
        %p223 = pneg %p101
        %p224 = pneg %p98
        %p225 = pneg %p127
        %p226 = pneg %p124
        %p227 = scmp.lt.s32.totalorder %s17, 1
        %s228 = scalar_select %p227, %s17, 1
        %s229 = smul.addr %s228, 4
        %s230 = smul.addr %s229, 8
        %s231 = scalar_lea.vmem %s4, %s230
        %p232 = scmp.lt.s32.totalorder %s17, 1
        %s233 = scalar_select %p232, %s17, 1
        %s234 = smul.addr %s233, 4
        %s235 = smul.addr %s234, 8
        %s236 = scalar_lea.vmem %s0, %s235
        %p237 = scmp.lt.s32.totalorder %s17, 1
        %s238 = scalar_select %p237, %s17, 1
        %s239 = smul.addr %s238, 4
        %s240 = smul.addr %s239, 8
        %s241 = scalar_lea.vmem %s4, %s240
        %242 = vst [vmem:[#allocation2] sm:$0x3] 0.0
        %243 = vst [vmem:[#allocation2 + $0x8] sm:$0x3] 0.0
        %244 = vst [vmem:[#allocation2 + $0x20] sm:$0xc] 0.0
        %245 = vst [vmem:[#allocation2 + $0x28] sm:$0xc] 0.0
        %246 = vst [vmem:[#allocation3] sm:$0x3] 0.0
        %247 = vst [vmem:[#allocation3 + $0x8] sm:$0x3] 0.0
        %248 = vst [vmem:[#allocation3 + $0x20] sm:$0xc] 0.0
        %249 = vst [vmem:[#allocation3 + $0x28] sm:$0xc] 0.0
        %v250 = vld [vmem:[%s236] sm:$0xff]
        %v251 = vld [vmem:[%s236 + $0x8] sm:$0xff]
        %v252 = vld [vmem:[%s236 + $0x10] sm:$0xff]
        %v253 = vld [vmem:[%s236 + $0x18] sm:$0xff]
        %vm258 = vcmask 1041408
        %v259 = vrot.slane %v250, 6
        %v260 = vrot.slane %v251, 6
        %v261 = vrot.slane %v252, 6
        %v262 = vsel %vm258, %v259, %v261
        %v263 = vrot.slane %v253, 6
        %v264 = vsel %vm258, %v260, %v263
        %271 = vst [vmem:[#allocation2] sm:$0xfc] %v259
        %272 = vst [vmem:[#allocation2 + $0x8] sm:$0xfc] %v260
        %273 = vst [vmem:[#allocation2 + $0x10] sm:$0xff] %v262
        %274 = vst [vmem:[#allocation2 + $0x18] sm:$0xff] %v264
        %275 = vst [vmem:[#allocation2 + $0x20] sm:$0x3] %v261
        %276 = vst [vmem:[#allocation2 + $0x28] sm:$0x3] %v263
        %v277 = vld [vmem:[#allocation2] sm:$0xff]
        %v278 = vld [vmem:[#allocation2 + $0x8] sm:$0xff]
        %v279 = vld [vmem:[#allocation2 + $0x10] sm:$0xff]
        %v280 = vld [vmem:[#allocation2 + $0x18] sm:$0xff]
        %v281 = vld [vmem:[#allocation4] sm:$0xff]
        %v282 = vld [vmem:[#allocation4 + $0x8] sm:$0xff]
        %v283 = vld [vmem:[#allocation4 + $0x10] sm:$0xff]
        %v284 = vld [vmem:[#allocation4 + $0x18] sm:$0xff]
        %v285 = vld [vmem:[#allocation4 + $0x20] sm:$0xff]
        %v286 = vld [vmem:[#allocation4 + $0x28] sm:$0xff]
        %v287 = vld [vmem:[#allocation4 + $0x30] sm:$0xff]
        %v288 = vld [vmem:[#allocation4 + $0x38] sm:$0xff]
        %v289 = vld [vmem:[#allocation4 + $0x40] sm:$0xff]
        %v290 = vld [vmem:[#allocation4 + $0x48] sm:$0xff]
        %v291 = vld [vmem:[#allocation4 + $0x50] sm:$0xff]
        %v292 = vld [vmem:[#allocation4 + $0x58] sm:$0xff]
        %v293 = vld [vmem:[#allocation4 + $0x60] sm:$0xff]
        %v294 = vld [vmem:[#allocation4 + $0x68] sm:$0xff]
        %v295 = vld [vmem:[#allocation4 + $0x70] sm:$0xff]
        %v296 = vld [vmem:[#allocation4 + $0x78] sm:$0xff]
        %v297 = vld [vmem:[#allocation4 + $0x80] sm:$0xff]
        %v298 = vld [vmem:[#allocation4 + $0x88] sm:$0xff]
        %v299 = vld [vmem:[#allocation4 + $0x90] sm:$0xff]
        %v300 = vld [vmem:[#allocation4 + $0x98] sm:$0xff]
        %v301 = vld [vmem:[#allocation4 + $0xa0] sm:$0xff]
        %v302 = vld [vmem:[#allocation4 + $0xa8] sm:$0xff]
        %v303 = vld [vmem:[#allocation4 + $0xb0] sm:$0xff]
        %v304 = vld [vmem:[#allocation4 + $0xb8] sm:$0xff]
        %v305 = vld [vmem:[#allocation4 + $0xc0] sm:$0xff]
        %v306 = vld [vmem:[#allocation4 + $0xc8] sm:$0xff]
        %v307 = vld [vmem:[#allocation4 + $0xd0] sm:$0xff]
        %v308 = vld [vmem:[#allocation4 + $0xd8] sm:$0xff]
        %v309 = vld [vmem:[#allocation4 + $0xe0] sm:$0xff]
        %v310 = vld [vmem:[#allocation4 + $0xe8] sm:$0xff]
        %v311 = vld [vmem:[#allocation4 + $0xf0] sm:$0xff]
        %v312 = vld [vmem:[#allocation4 + $0xf8] sm:$0xff]
        %v313 = vld [vmem:[#allocation4 + $0x100] sm:$0xff]
        %v314 = vld [vmem:[#allocation4 + $0x108] sm:$0xff]
        %v315 = vld [vmem:[#allocation4 + $0x110] sm:$0xff]
        %v316 = vld [vmem:[#allocation4 + $0x118] sm:$0xff]
        %v317 = vld [vmem:[#allocation4 + $0x120] sm:$0xff]
        %v318 = vld [vmem:[#allocation4 + $0x128] sm:$0xff]
        %v319 = vld [vmem:[#allocation4 + $0x130] sm:$0xff]
        %v320 = vld [vmem:[#allocation4 + $0x138] sm:$0xff]
        %v321 = vld [vmem:[#allocation4 + $0x140] sm:$0xff]
        %v322 = vld [vmem:[#allocation4 + $0x148] sm:$0xff]
        %v323 = vld [vmem:[#allocation4 + $0x150] sm:$0xff]
        %v324 = vld [vmem:[#allocation4 + $0x158] sm:$0xff]
        %v325 = vld [vmem:[#allocation4 + $0x160] sm:$0xff]
        %v326 = vld [vmem:[#allocation4 + $0x168] sm:$0xff]
        %v327 = vld [vmem:[#allocation4 + $0x170] sm:$0xff]
        %v328 = vld [vmem:[#allocation4 + $0x178] sm:$0xff]
        %v329 = vld [vmem:[#allocation4 + $0x180] sm:$0xff]
        %v330 = vld [vmem:[#allocation4 + $0x188] sm:$0xff]
        %v331 = vld [vmem:[#allocation4 + $0x190] sm:$0xff]
        %v332 = vld [vmem:[#allocation4 + $0x198] sm:$0xff]
        %v333 = vld [vmem:[#allocation4 + $0x1a0] sm:$0xff]
        %v334 = vld [vmem:[#allocation4 + $0x1a8] sm:$0xff]
        %v335 = vld [vmem:[#allocation4 + $0x1b0] sm:$0xff]
        %v336 = vld [vmem:[#allocation4 + $0x1b8] sm:$0xff]
        %v337 = vld [vmem:[#allocation4 + $0x1c0] sm:$0xff]
        %v338 = vld [vmem:[#allocation4 + $0x1c8] sm:$0xff]
        %v339 = vld [vmem:[#allocation4 + $0x1d0] sm:$0xff]
        %v340 = vld [vmem:[#allocation4 + $0x1d8] sm:$0xff]
        %v341 = vld [vmem:[#allocation4 + $0x1e0] sm:$0xff]
        %v342 = vld [vmem:[#allocation4 + $0x1e8] sm:$0xff]
        %v343 = vld [vmem:[#allocation4 + $0x1f0] sm:$0xff]
        %v344 = vld [vmem:[#allocation4 + $0x1f8] sm:$0xff]
        %v345 = vld [vmem:[#allocation2] sm:$0xfe]
        %v346 = vld [vmem:[#allocation2 + $0x8] sm:$0xfe]
        %v347 = vld [vmem:[#allocation2 + $0x20] sm:$0x1]
        %v348 = vld [vmem:[#allocation2 + $0x28] sm:$0x1]
        %s349 = scalar_lea.vmem [#allocation4], 512
        %v350 = vld [vmem:[%s349] sm:$0xff]
        %v351 = vld [vmem:[%s349 + $0x8] sm:$0xff]
        %v352 = vld [vmem:[%s349 + $0x10] sm:$0xff]
        %v353 = vld [vmem:[%s349 + $0x18] sm:$0xff]
        %v354 = vld [vmem:[%s349 + $0x20] sm:$0xff]
        %v355 = vld [vmem:[%s349 + $0x28] sm:$0xff]
        %v356 = vld [vmem:[%s349 + $0x30] sm:$0xff]
        %v357 = vld [vmem:[%s349 + $0x38] sm:$0xff]
        %v358 = vld [vmem:[%s349 + $0x40] sm:$0xff]
        %v359 = vld [vmem:[%s349 + $0x48] sm:$0xff]
        %v360 = vld [vmem:[%s349 + $0x50] sm:$0xff]
        %v361 = vld [vmem:[%s349 + $0x58] sm:$0xff]
        %v362 = vld [vmem:[%s349 + $0x60] sm:$0xff]
        %v363 = vld [vmem:[%s349 + $0x68] sm:$0xff]
        %v364 = vld [vmem:[%s349 + $0x70] sm:$0xff]
        %v365 = vld [vmem:[%s349 + $0x78] sm:$0xff]
        %v366 = vld [vmem:[%s349 + $0x80] sm:$0xff]
        %v367 = vld [vmem:[%s349 + $0x88] sm:$0xff]
        %v368 = vld [vmem:[%s349 + $0x90] sm:$0xff]
        %v369 = vld [vmem:[%s349 + $0x98] sm:$0xff]
        %v370 = vld [vmem:[%s349 + $0xa0] sm:$0xff]
        %v371 = vld [vmem:[%s349 + $0xa8] sm:$0xff]
        %v372 = vld [vmem:[%s349 + $0xb0] sm:$0xff]
        %v373 = vld [vmem:[%s349 + $0xb8] sm:$0xff]
        %v374 = vld [vmem:[%s349 + $0xc0] sm:$0xff]
        %v375 = vld [vmem:[%s349 + $0xc8] sm:$0xff]
        %v376 = vld [vmem:[%s349 + $0xd0] sm:$0xff]
        %v377 = vld [vmem:[%s349 + $0xd8] sm:$0xff]
        %v378 = vld [vmem:[%s349 + $0xe0] sm:$0xff]
        %v379 = vld [vmem:[%s349 + $0xe8] sm:$0xff]
        %v380 = vld [vmem:[%s349 + $0xf0] sm:$0xff]
        %v381 = vld [vmem:[%s349 + $0xf8] sm:$0xff]
        %v382 = vld [vmem:[%s349 + $0x100] sm:$0xff]
        %v383 = vld [vmem:[%s349 + $0x108] sm:$0xff]
        %v384 = vld [vmem:[%s349 + $0x110] sm:$0xff]
        %v385 = vld [vmem:[%s349 + $0x118] sm:$0xff]
        %v386 = vld [vmem:[%s349 + $0x120] sm:$0xff]
        %v387 = vld [vmem:[%s349 + $0x128] sm:$0xff]
        %v388 = vld [vmem:[%s349 + $0x130] sm:$0xff]
        %v389 = vld [vmem:[%s349 + $0x138] sm:$0xff]
        %v390 = vld [vmem:[%s349 + $0x140] sm:$0xff]
        %v391 = vld [vmem:[%s349 + $0x148] sm:$0xff]
        %v392 = vld [vmem:[%s349 + $0x150] sm:$0xff]
        %v393 = vld [vmem:[%s349 + $0x158] sm:$0xff]
        %v394 = vld [vmem:[%s349 + $0x160] sm:$0xff]
        %v395 = vld [vmem:[%s349 + $0x168] sm:$0xff]
        %v396 = vld [vmem:[%s349 + $0x170] sm:$0xff]
        %v397 = vld [vmem:[%s349 + $0x178] sm:$0xff]
        %v398 = vld [vmem:[%s349 + $0x180] sm:$0xff]
        %v399 = vld [vmem:[%s349 + $0x188] sm:$0xff]
        %v400 = vld [vmem:[%s349 + $0x190] sm:$0xff]
        %v401 = vld [vmem:[%s349 + $0x198] sm:$0xff]
        %v402 = vld [vmem:[%s349 + $0x1a0] sm:$0xff]
        %v403 = vld [vmem:[%s349 + $0x1a8] sm:$0xff]
        %v404 = vld [vmem:[%s349 + $0x1b0] sm:$0xff]
        %v405 = vld [vmem:[%s349 + $0x1b8] sm:$0xff]
        %v406 = vld [vmem:[%s349 + $0x1c0] sm:$0xff]
        %v407 = vld [vmem:[%s349 + $0x1c8] sm:$0xff]
        %v408 = vld [vmem:[%s349 + $0x1d0] sm:$0xff]
        %v409 = vld [vmem:[%s349 + $0x1d8] sm:$0xff]
        %v410 = vld [vmem:[%s349 + $0x1e0] sm:$0xff]
        %v411 = vld [vmem:[%s349 + $0x1e8] sm:$0xff]
        %v412 = vld [vmem:[%s349 + $0x1f0] sm:$0xff]
        %v413 = vld [vmem:[%s349 + $0x1f8] sm:$0xff]
        %vm420 = vcmask 1046528
        %v421 = vrot.slane %v345, 1
        %v422 = vrot.slane %v279, 1
        %v423 = vsel %vm420, %v421, %v422
        %v424 = vrot.slane %v346, 1
        %v425 = vrot.slane %v280, 1
        %v426 = vsel %vm420, %v424, %v425
        %v427 = vrot.slane %v347, 1
        %v428 = vsel %vm420, %v422, %v427
        %v429 = vrot.slane %v348, 1
        %v430 = vsel %vm420, %v425, %v429
        %435 = vmatprep.subr.mxu0 %v351
        %436 = vmatpush1.msra.mxu0 %v350
        %437 = vmatprep.subr.mxu0 %v353
        %438 = vmatpush1.msra.mxu0 %v352
        %439 = vmatprep.subr.mxu0 %v355
        %440 = vmatpush1.msra.mxu0 %v354
        %441 = vmatprep.subr.mxu0 %v357
        %442 = vmatpush1.msra.mxu0 %v356
        %443 = vmatprep.subr.mxu0 %v359
        %444 = vmatpush1.msra.mxu0 %v358
        %445 = vmatprep.subr.mxu0 %v361
        %446 = vmatpush1.msra.mxu0 %v360
        %447 = vmatprep.subr.mxu0 %v363
        %448 = vmatpush1.msra.mxu0 %v362
        %449 = vmatprep.subr.mxu0 %v365
        %450 = vmatpush1.msra.mxu0 %v364
        %451 = vmatprep.subr.mxu0 %v367
        %452 = vmatpush1.msra.mxu0 %v366
        %453 = vmatprep.subr.mxu0 %v369
        %454 = vmatpush1.msra.mxu0 %v368
        %455 = vmatprep.subr.mxu0 %v371
        %456 = vmatpush1.msra.mxu0 %v370
        %457 = vmatprep.subr.mxu0 %v373
        %458 = vmatpush1.msra.mxu0 %v372
        %459 = vmatprep.subr.mxu0 %v375
        %460 = vmatpush1.msra.mxu0 %v374
        %461 = vmatprep.subr.mxu0 %v377
        %462 = vmatpush1.msra.mxu0 %v376
        %463 = vmatprep.subr.mxu0 %v379
        %464 = vmatpush1.msra.mxu0 %v378
        %465 = vmatprep.subr.mxu0 %v381
        %466 = vmatpush1.msra.mxu0 %v380
        %467 = vmatprep.subr.mxu0 %v383
        %468 = vmatpush1.msra.mxu0 %v382
        %469 = vmatprep.subr.mxu0 %v385
        %470 = vmatpush1.msra.mxu0 %v384
        %471 = vmatprep.subr.mxu0 %v387
        %472 = vmatpush1.msra.mxu0 %v386
        %473 = vmatprep.subr.mxu0 %v389
        %474 = vmatpush1.msra.mxu0 %v388
        %475 = vmatprep.subr.mxu0 %v391
        %476 = vmatpush1.msra.mxu0 %v390
        %477 = vmatprep.subr.mxu0 %v393
        %478 = vmatpush1.msra.mxu0 %v392
        %479 = vmatprep.subr.mxu0 %v395
        %480 = vmatpush1.msra.mxu0 %v394
        %481 = vmatprep.subr.mxu0 %v397
        %482 = vmatpush1.msra.mxu0 %v396
        %483 = vmatprep.subr.mxu0 %v399
        %484 = vmatpush1.msra.mxu0 %v398
        %485 = vmatprep.subr.mxu0 %v401
        %486 = vmatpush1.msra.mxu0 %v400
        %487 = vmatprep.subr.mxu0 %v403
        %488 = vmatpush1.msra.mxu0 %v402
        %489 = vmatprep.subr.mxu0 %v405
        %490 = vmatpush1.msra.mxu0 %v404
        %491 = vmatprep.subr.mxu0 %v407
        %492 = vmatpush1.msra.mxu0 %v406
        %493 = vmatprep.subr.mxu0 %v409
        %494 = vmatpush1.msra.mxu0 %v408
        %495 = vmatprep.subr.mxu0 %v411
        %496 = vmatpush1.msra.mxu0 %v410
        %497 = vmatprep.subr.mxu0 %v413
        %498 = vmatpush1.msra.mxu0 %v412
        %499 = vmatprep.mubr.f32.mxu0 %v426
        %500 = vmatmul.mubr.f32.gmra.mrb[0].mxu0 %v423
        %v501 = vpop.f32.mrb[0].mxu0
        %v502 = vadd.f32 0.0, %v501
        %v503 = vpop.f32.mrb[0].mxu0
        %v504 = vadd.f32 0.0, %v503
        %505 = vmatprep.mubr.f32.mxu0 %v430
        %506 = vmatmul.mubr.f32.gmra.mrb[0].mxu0 %v428
        %v507 = vpop.f32.mrb[0].mxu0
        %v508 = vadd.f32 0.0, %v507
        %v509 = vpop.f32.mrb[0].mxu0
        %v510 = vadd.f32 0.0, %v509
        %511 = vdwg.mxu0
        %512 = vmatprep.subr.mxu0 %v282
        %513 = vmatpush1.msra.mxu0 %v281
        %514 = vmatprep.subr.mxu0 %v284
        %515 = vmatpush1.msra.mxu0 %v283
        %516 = vmatprep.subr.mxu0 %v286
        %517 = vmatpush1.msra.mxu0 %v285
        %518 = vmatprep.subr.mxu0 %v288
        %519 = vmatpush1.msra.mxu0 %v287
        %520 = vmatprep.subr.mxu0 %v290
        %521 = vmatpush1.msra.mxu0 %v289
        %522 = vmatprep.subr.mxu0 %v292
        %523 = vmatpush1.msra.mxu0 %v291
        %524 = vmatprep.subr.mxu0 %v294
        %525 = vmatpush1.msra.mxu0 %v293
        %526 = vmatprep.subr.mxu0 %v296
        %527 = vmatpush1.msra.mxu0 %v295
        %528 = vmatprep.subr.mxu0 %v298
        %529 = vmatpush1.msra.mxu0 %v297
        %530 = vmatprep.subr.mxu0 %v300
        %531 = vmatpush1.msra.mxu0 %v299
        %532 = vmatprep.subr.mxu0 %v302
        %533 = vmatpush1.msra.mxu0 %v301
        %534 = vmatprep.subr.mxu0 %v304
        %535 = vmatpush1.msra.mxu0 %v303
        %536 = vmatprep.subr.mxu0 %v306
        %537 = vmatpush1.msra.mxu0 %v305
        %538 = vmatprep.subr.mxu0 %v308
        %539 = vmatpush1.msra.mxu0 %v307
        %540 = vmatprep.subr.mxu0 %v310
        %541 = vmatpush1.msra.mxu0 %v309
        %542 = vmatprep.subr.mxu0 %v312
        %543 = vmatpush1.msra.mxu0 %v311
        %544 = vmatprep.subr.mxu0 %v314
        %545 = vmatpush1.msra.mxu0 %v313
        %546 = vmatprep.subr.mxu0 %v316
        %547 = vmatpush1.msra.mxu0 %v315
        %548 = vmatprep.subr.mxu0 %v318
        %549 = vmatpush1.msra.mxu0 %v317
        %550 = vmatprep.subr.mxu0 %v320
        %551 = vmatpush1.msra.mxu0 %v319
        %552 = vmatprep.subr.mxu0 %v322
        %553 = vmatpush1.msra.mxu0 %v321
        %554 = vmatprep.subr.mxu0 %v324
        %555 = vmatpush1.msra.mxu0 %v323
        %556 = vmatprep.subr.mxu0 %v326
        %557 = vmatpush1.msra.mxu0 %v325
        %558 = vmatprep.subr.mxu0 %v328
        %559 = vmatpush1.msra.mxu0 %v327
        %560 = vmatprep.subr.mxu0 %v330
        %561 = vmatpush1.msra.mxu0 %v329
        %562 = vmatprep.subr.mxu0 %v332
        %563 = vmatpush1.msra.mxu0 %v331
        %564 = vmatprep.subr.mxu0 %v334
        %565 = vmatpush1.msra.mxu0 %v333
        %566 = vmatprep.subr.mxu0 %v336
        %567 = vmatpush1.msra.mxu0 %v335
        %568 = vmatprep.subr.mxu0 %v338
        %569 = vmatpush1.msra.mxu0 %v337
        %570 = vmatprep.subr.mxu0 %v340
        %571 = vmatpush1.msra.mxu0 %v339
        %572 = vmatprep.subr.mxu0 %v342
        %573 = vmatpush1.msra.mxu0 %v341
        %574 = vmatprep.subr.mxu0 %v344
        %575 = vmatpush1.msra.mxu0 %v343
        %576 = vmatprep.mubr.f32.mxu0 %v278
        %577 = vmatmul.mubr.f32.gmra.mrb[0].mxu0 %v277
        %v578 = vpop.f32.mrb[0].mxu0
        %v579 = vadd.f32 %v502, %v578
        %v580 = vpop.f32.mrb[0].mxu0
        %v581 = vadd.f32 %v504, %v580
        %582 = vmatprep.mubr.f32.mxu0 %v280
        %583 = vmatmul.mubr.f32.gmra.mrb[0].mxu0 %v279
        %v584 = vpop.f32.mrb[0].mxu0
        %v585 = vadd.f32 %v508, %v584
        %v586 = vpop.f32.mrb[0].mxu0
        %v587 = vadd.f32 %v510, %v586
        %588 = vdwg.mxu0
        %v589 = vld [vmem:[#allocation2] sm:$0xfc]
        %v590 = vld [vmem:[#allocation2 + $0x8] sm:$0xfc]
        %v591 = vld [vmem:[#allocation2 + $0x20] sm:$0x3]
        %v592 = vld [vmem:[#allocation2 + $0x28] sm:$0x3]
        %s593 = scalar_lea.vmem [#allocation4], 1024
        %v594 = vld [vmem:[%s593] sm:$0xff]
        %v595 = vld [vmem:[%s593 + $0x8] sm:$0xff]
        %v596 = vld [vmem:[%s593 + $0x10] sm:$0xff]
        %v597 = vld [vmem:[%s593 + $0x18] sm:$0xff]
        %v598 = vld [vmem:[%s593 + $0x20] sm:$0xff]
        %v599 = vld [vmem:[%s593 + $0x28] sm:$0xff]
        %v600 = vld [vmem:[%s593 + $0x30] sm:$0xff]
        %v601 = vld [vmem:[%s593 + $0x38] sm:$0xff]
        %v602 = vld [vmem:[%s593 + $0x40] sm:$0xff]
        %v603 = vld [vmem:[%s593 + $0x48] sm:$0xff]
        %v604 = vld [vmem:[%s593 + $0x50] sm:$0xff]
        %v605 = vld [vmem:[%s593 + $0x58] sm:$0xff]
        %v606 = vld [vmem:[%s593 + $0x60] sm:$0xff]
        %v607 = vld [vmem:[%s593 + $0x68] sm:$0xff]
        %v608 = vld [vmem:[%s593 + $0x70] sm:$0xff]
        %v609 = vld [vmem:[%s593 + $0x78] sm:$0xff]
        %v610 = vld [vmem:[%s593 + $0x80] sm:$0xff]
        %v611 = vld [vmem:[%s593 + $0x88] sm:$0xff]
        %v612 = vld [vmem:[%s593 + $0x90] sm:$0xff]
        %v613 = vld [vmem:[%s593 + $0x98] sm:$0xff]
        %v614 = vld [vmem:[%s593 + $0xa0] sm:$0xff]
        %v615 = vld [vmem:[%s593 + $0xa8] sm:$0xff]
        %v616 = vld [vmem:[%s593 + $0xb0] sm:$0xff]
        %v617 = vld [vmem:[%s593 + $0xb8] sm:$0xff]
        %v618 = vld [vmem:[%s593 + $0xc0] sm:$0xff]
        %v619 = vld [vmem:[%s593 + $0xc8] sm:$0xff]
        %v620 = vld [vmem:[%s593 + $0xd0] sm:$0xff]
        %v621 = vld [vmem:[%s593 + $0xd8] sm:$0xff]
        %v622 = vld [vmem:[%s593 + $0xe0] sm:$0xff]
        %v623 = vld [vmem:[%s593 + $0xe8] sm:$0xff]
        %v624 = vld [vmem:[%s593 + $0xf0] sm:$0xff]
        %v625 = vld [vmem:[%s593 + $0xf8] sm:$0xff]
        %v626 = vld [vmem:[%s593 + $0x100] sm:$0xff]
        %v627 = vld [vmem:[%s593 + $0x108] sm:$0xff]
        %v628 = vld [vmem:[%s593 + $0x110] sm:$0xff]
        %v629 = vld [vmem:[%s593 + $0x118] sm:$0xff]
        %v630 = vld [vmem:[%s593 + $0x120] sm:$0xff]
        %v631 = vld [vmem:[%s593 + $0x128] sm:$0xff]
        %v632 = vld [vmem:[%s593 + $0x130] sm:$0xff]
        %v633 = vld [vmem:[%s593 + $0x138] sm:$0xff]
        %v634 = vld [vmem:[%s593 + $0x140] sm:$0xff]
        %v635 = vld [vmem:[%s593 + $0x148] sm:$0xff]
        %v636 = vld [vmem:[%s593 + $0x150] sm:$0xff]
        %v637 = vld [vmem:[%s593 + $0x158] sm:$0xff]
        %v638 = vld [vmem:[%s593 + $0x160] sm:$0xff]
        %v639 = vld [vmem:[%s593 + $0x168] sm:$0xff]
        %v640 = vld [vmem:[%s593 + $0x170] sm:$0xff]
        %v641 = vld [vmem:[%s593 + $0x178] sm:$0xff]
        %v642 = vld [vmem:[%s593 + $0x180] sm:$0xff]
        %v643 = vld [vmem:[%s593 + $0x188] sm:$0xff]
        %v644 = vld [vmem:[%s593 + $0x190] sm:$0xff]
        %v645 = vld [vmem:[%s593 + $0x198] sm:$0xff]
        %v646 = vld [vmem:[%s593 + $0x1a0] sm:$0xff]
        %v647 = vld [vmem:[%s593 + $0x1a8] sm:$0xff]
        %v648 = vld [vmem:[%s593 + $0x1b0] sm:$0xff]
        %v649 = vld [vmem:[%s593 + $0x1b8] sm:$0xff]
        %v650 = vld [vmem:[%s593 + $0x1c0] sm:$0xff]
        %v651 = vld [vmem:[%s593 + $0x1c8] sm:$0xff]
        %v652 = vld [vmem:[%s593 + $0x1d0] sm:$0xff]
        %v653 = vld [vmem:[%s593 + $0x1d8] sm:$0xff]
        %v654 = vld [vmem:[%s593 + $0x1e0] sm:$0xff]
        %v655 = vld [vmem:[%s593 + $0x1e8] sm:$0xff]
        %v656 = vld [vmem:[%s593 + $0x1f0] sm:$0xff]
        %v657 = vld [vmem:[%s593 + $0x1f8] sm:$0xff]
        %vm662 = vcmask 1045504
        %v663 = vrot.slane %v589, 2
        %v664 = vrot.slane %v279, 2
        %v665 = vsel %vm662, %v663, %v664
        %v666 = vrot.slane %v590, 2
        %v667 = vrot.slane %v280, 2
        %v668 = vsel %vm662, %v666, %v667
        %v669 = vrot.slane %v591, 2
        %v670 = vsel %vm662, %v664, %v669
        %v671 = vrot.slane %v592, 2
        %v672 = vsel %vm662, %v667, %v671
        %677 = vmatprep.subr.mxu0 %v595
        %678 = vmatpush1.msra.mxu0 %v594
        %679 = vmatprep.subr.mxu0 %v597
        %680 = vmatpush1.msra.mxu0 %v596
        %681 = vmatprep.subr.mxu0 %v599
        %682 = vmatpush1.msra.mxu0 %v598
        %683 = vmatprep.subr.mxu0 %v601
        %684 = vmatpush1.msra.mxu0 %v600
        %685 = vmatprep.subr.mxu0 %v603
        %686 = vmatpush1.msra.mxu0 %v602
        %687 = vmatprep.subr.mxu0 %v605
        %688 = vmatpush1.msra.mxu0 %v604
        %689 = vmatprep.subr.mxu0 %v607
        %690 = vmatpush1.msra.mxu0 %v606
        %691 = vmatprep.subr.mxu0 %v609
        %692 = vmatpush1.msra.mxu0 %v608
        %693 = vmatprep.subr.mxu0 %v611
        %694 = vmatpush1.msra.mxu0 %v610
        %695 = vmatprep.subr.mxu0 %v613
        %696 = vmatpush1.msra.mxu0 %v612
        %697 = vmatprep.subr.mxu0 %v615
        %698 = vmatpush1.msra.mxu0 %v614
        %699 = vmatprep.subr.mxu0 %v617
        %700 = vmatpush1.msra.mxu0 %v616
        %701 = vmatprep.subr.mxu0 %v619
        %702 = vmatpush1.msra.mxu0 %v618
        %703 = vmatprep.subr.mxu0 %v621
        %704 = vmatpush1.msra.mxu0 %v620
        %705 = vmatprep.subr.mxu0 %v623
        %706 = vmatpush1.msra.mxu0 %v622
        %707 = vmatprep.subr.mxu0 %v625
        %708 = vmatpush1.msra.mxu0 %v624
        %709 = vmatprep.subr.mxu0 %v627
        %710 = vmatpush1.msra.mxu0 %v626
        %711 = vmatprep.subr.mxu0 %v629
        %712 = vmatpush1.msra.mxu0 %v628
        %713 = vmatprep.subr.mxu0 %v631
        %714 = vmatpush1.msra.mxu0 %v630
        %715 = vmatprep.subr.mxu0 %v633
        %716 = vmatpush1.msra.mxu0 %v632
        %717 = vmatprep.subr.mxu0 %v635
        %718 = vmatpush1.msra.mxu0 %v634
        %719 = vmatprep.subr.mxu0 %v637
        %720 = vmatpush1.msra.mxu0 %v636
        %721 = vmatprep.subr.mxu0 %v639
        %722 = vmatpush1.msra.mxu0 %v638
        %723 = vmatprep.subr.mxu0 %v641
        %724 = vmatpush1.msra.mxu0 %v640
        %725 = vmatprep.subr.mxu0 %v643
        %726 = vmatpush1.msra.mxu0 %v642
        %727 = vmatprep.subr.mxu0 %v645
        %728 = vmatpush1.msra.mxu0 %v644
        %729 = vmatprep.subr.mxu0 %v647
        %730 = vmatpush1.msra.mxu0 %v646
        %731 = vmatprep.subr.mxu0 %v649
        %732 = vmatpush1.msra.mxu0 %v648
        %733 = vmatprep.subr.mxu0 %v651
        %734 = vmatpush1.msra.mxu0 %v650
        %735 = vmatprep.subr.mxu0 %v653
        %736 = vmatpush1.msra.mxu0 %v652
        %737 = vmatprep.subr.mxu0 %v655
        %738 = vmatpush1.msra.mxu0 %v654
        %739 = vmatprep.subr.mxu0 %v657
        %740 = vmatpush1.msra.mxu0 %v656
        %741 = vmatprep.mubr.f32.mxu0 %v668
        %742 = vmatmul.mubr.f32.gmra.mrb[0].mxu0 %v665
        %v743 = vpop.f32.mrb[0].mxu0
        %v744 = vadd.f32 0.0, %v743
        %v745 = vpop.f32.mrb[0].mxu0
        %v746 = vadd.f32 0.0, %v745
        %747 = vmatprep.mubr.f32.mxu0 %v672
        %748 = vmatmul.mubr.f32.gmra.mrb[0].mxu0 %v670
        %v749 = vpop.f32.mrb[0].mxu0
        %v750 = vadd.f32 0.0, %v749
        %v751 = vpop.f32.mrb[0].mxu0
        %v752 = vadd.f32 0.0, %v751
        %753 = vdwg.mxu0
        %v754 = vadd.f32 %v579, %v744
        %v755 = vadd.f32 %v581, %v746
        %v756 = vadd.f32 %v585, %v750
        %v757 = vadd.f32 %v587, %v752
        %v758 = vld [vmem:[#allocation2] sm:$0xf8]
        %v759 = vld [vmem:[#allocation2 + $0x8] sm:$0xf8]
        %v760 = vld [vmem:[#allocation2 + $0x20] sm:$0x7]
        %v761 = vld [vmem:[#allocation2 + $0x28] sm:$0x7]
        %s762 = scalar_lea.vmem [#allocation4], 1536
        %v763 = vld [vmem:[%s762] sm:$0xff]
        %v764 = vld [vmem:[%s762 + $0x8] sm:$0xff]
        %v765 = vld [vmem:[%s762 + $0x10] sm:$0xff]
        %v766 = vld [vmem:[%s762 + $0x18] sm:$0xff]
        %v767 = vld [vmem:[%s762 + $0x20] sm:$0xff]
        %v768 = vld [vmem:[%s762 + $0x28] sm:$0xff]
        %v769 = vld [vmem:[%s762 + $0x30] sm:$0xff]
        %v770 = vld [vmem:[%s762 + $0x38] sm:$0xff]
        %v771 = vld [vmem:[%s762 + $0x40] sm:$0xff]
        %v772 = vld [vmem:[%s762 + $0x48] sm:$0xff]
        %v773 = vld [vmem:[%s762 + $0x50] sm:$0xff]
        %v774 = vld [vmem:[%s762 + $0x58] sm:$0xff]
        %v775 = vld [vmem:[%s762 + $0x60] sm:$0xff]
        %v776 = vld [vmem:[%s762 + $0x68] sm:$0xff]
        %v777 = vld [vmem:[%s762 + $0x70] sm:$0xff]
        %v778 = vld [vmem:[%s762 + $0x78] sm:$0xff]
        %v779 = vld [vmem:[%s762 + $0x80] sm:$0xff]
        %v780 = vld [vmem:[%s762 + $0x88] sm:$0xff]
        %v781 = vld [vmem:[%s762 + $0x90] sm:$0xff]
        %v782 = vld [vmem:[%s762 + $0x98] sm:$0xff]
        %v783 = vld [vmem:[%s762 + $0xa0] sm:$0xff]
        %v784 = vld [vmem:[%s762 + $0xa8] sm:$0xff]
        %v785 = vld [vmem:[%s762 + $0xb0] sm:$0xff]
        %v786 = vld [vmem:[%s762 + $0xb8] sm:$0xff]
        %v787 = vld [vmem:[%s762 + $0xc0] sm:$0xff]
        %v788 = vld [vmem:[%s762 + $0xc8] sm:$0xff]
        %v789 = vld [vmem:[%s762 + $0xd0] sm:$0xff]
        %v790 = vld [vmem:[%s762 + $0xd8] sm:$0xff]
        %v791 = vld [vmem:[%s762 + $0xe0] sm:$0xff]
        %v792 = vld [vmem:[%s762 + $0xe8] sm:$0xff]
        %v793 = vld [vmem:[%s762 + $0xf0] sm:$0xff]
        %v794 = vld [vmem:[%s762 + $0xf8] sm:$0xff]
        %v795 = vld [vmem:[%s762 + $0x100] sm:$0xff]
        %v796 = vld [vmem:[%s762 + $0x108] sm:$0xff]
        %v797 = vld [vmem:[%s762 + $0x110] sm:$0xff]
        %v798 = vld [vmem:[%s762 + $0x118] sm:$0xff]
        %v799 = vld [vmem:[%s762 + $0x120] sm:$0xff]
        %v800 = vld [vmem:[%s762 + $0x128] sm:$0xff]
        %v801 = vld [vmem:[%s762 + $0x130] sm:$0xff]
        %v802 = vld [vmem:[%s762 + $0x138] sm:$0xff]
        %v803 = vld [vmem:[%s762 + $0x140] sm:$0xff]
        %v804 = vld [vmem:[%s762 + $0x148] sm:$0xff]
        %v805 = vld [vmem:[%s762 + $0x150] sm:$0xff]
        %v806 = vld [vmem:[%s762 + $0x158] sm:$0xff]
        %v807 = vld [vmem:[%s762 + $0x160] sm:$0xff]
        %v808 = vld [vmem:[%s762 + $0x168] sm:$0xff]
        %v809 = vld [vmem:[%s762 + $0x170] sm:$0xff]
        %v810 = vld [vmem:[%s762 + $0x178] sm:$0xff]
        %v811 = vld [vmem:[%s762 + $0x180] sm:$0xff]
        %v812 = vld [vmem:[%s762 + $0x188] sm:$0xff]
        %v813 = vld [vmem:[%s762 + $0x190] sm:$0xff]
        %v814 = vld [vmem:[%s762 + $0x198] sm:$0xff]
        %v815 = vld [vmem:[%s762 + $0x1a0] sm:$0xff]
        %v816 = vld [vmem:[%s762 + $0x1a8] sm:$0xff]
        %v817 = vld [vmem:[%s762 + $0x1b0] sm:$0xff]
        %v818 = vld [vmem:[%s762 + $0x1b8] sm:$0xff]
        %v819 = vld [vmem:[%s762 + $0x1c0] sm:$0xff]
        %v820 = vld [vmem:[%s762 + $0x1c8] sm:$0xff]
        %v821 = vld [vmem:[%s762 + $0x1d0] sm:$0xff]
        %v822 = vld [vmem:[%s762 + $0x1d8] sm:$0xff]
        %v823 = vld [vmem:[%s762 + $0x1e0] sm:$0xff]
        %v824 = vld [vmem:[%s762 + $0x1e8] sm:$0xff]
        %v825 = vld [vmem:[%s762 + $0x1f0] sm:$0xff]
        %v826 = vld [vmem:[%s762 + $0x1f8] sm:$0xff]
        %vm831 = vcmask 1044480
        %v832 = vrot.slane %v758, 3
        %v833 = vrot.slane %v279, 3
        %v834 = vsel %vm831, %v832, %v833
        %v835 = vrot.slane %v759, 3
        %v836 = vrot.slane %v280, 3
        %v837 = vsel %vm831, %v835, %v836
        %v838 = vrot.slane %v760, 3
        %v839 = vsel %vm831, %v833, %v838
        %v840 = vrot.slane %v761, 3
        %v841 = vsel %vm831, %v836, %v840
        %846 = vmatprep.subr.mxu0 %v764
        %847 = vmatpush1.msra.mxu0 %v763
        %848 = vmatprep.subr.mxu0 %v766
        %849 = vmatpush1.msra.mxu0 %v765
        %850 = vmatprep.subr.mxu0 %v768
        %851 = vmatpush1.msra.mxu0 %v767
        %852 = vmatprep.subr.mxu0 %v770
        %853 = vmatpush1.msra.mxu0 %v769
        %854 = vmatprep.subr.mxu0 %v772
        %855 = vmatpush1.msra.mxu0 %v771
        %856 = vmatprep.subr.mxu0 %v774
        %857 = vmatpush1.msra.mxu0 %v773
        %858 = vmatprep.subr.mxu0 %v776
        %859 = vmatpush1.msra.mxu0 %v775
        %860 = vmatprep.subr.mxu0 %v778
        %861 = vmatpush1.msra.mxu0 %v777
        %862 = vmatprep.subr.mxu0 %v780
        %863 = vmatpush1.msra.mxu0 %v779
        %864 = vmatprep.subr.mxu0 %v782
        %865 = vmatpush1.msra.mxu0 %v781
        %866 = vmatprep.subr.mxu0 %v784
        %867 = vmatpush1.msra.mxu0 %v783
        %868 = vmatprep.subr.mxu0 %v786
        %869 = vmatpush1.msra.mxu0 %v785
        %870 = vmatprep.subr.mxu0 %v788
        %871 = vmatpush1.msra.mxu0 %v787
        %872 = vmatprep.subr.mxu0 %v790
        %873 = vmatpush1.msra.mxu0 %v789
        %874 = vmatprep.subr.mxu0 %v792
        %875 = vmatpush1.msra.mxu0 %v791
        %876 = vmatprep.subr.mxu0 %v794
        %877 = vmatpush1.msra.mxu0 %v793
        %878 = vmatprep.subr.mxu0 %v796
        %879 = vmatpush1.msra.mxu0 %v795
        %880 = vmatprep.subr.mxu0 %v798
        %881 = vmatpush1.msra.mxu0 %v797
        %882 = vmatprep.subr.mxu0 %v800
        %883 = vmatpush1.msra.mxu0 %v799
        %884 = vmatprep.subr.mxu0 %v802
        %885 = vmatpush1.msra.mxu0 %v801
        %886 = vmatprep.subr.mxu0 %v804
        %887 = vmatpush1.msra.mxu0 %v803
        %888 = vmatprep.subr.mxu0 %v806
        %889 = vmatpush1.msra.mxu0 %v805
        %890 = vmatprep.subr.mxu0 %v808
        %891 = vmatpush1.msra.mxu0 %v807
        %892 = vmatprep.subr.mxu0 %v810
        %893 = vmatpush1.msra.mxu0 %v809
        %894 = vmatprep.subr.mxu0 %v812
        %895 = vmatpush1.msra.mxu0 %v811
        %896 = vmatprep.subr.mxu0 %v814
        %897 = vmatpush1.msra.mxu0 %v813
        %898 = vmatprep.subr.mxu0 %v816
        %899 = vmatpush1.msra.mxu0 %v815
        %900 = vmatprep.subr.mxu0 %v818
        %901 = vmatpush1.msra.mxu0 %v817
        %902 = vmatprep.subr.mxu0 %v820
        %903 = vmatpush1.msra.mxu0 %v819
        %904 = vmatprep.subr.mxu0 %v822
        %905 = vmatpush1.msra.mxu0 %v821
        %906 = vmatprep.subr.mxu0 %v824
        %907 = vmatpush1.msra.mxu0 %v823
        %908 = vmatprep.subr.mxu0 %v826
        %909 = vmatpush1.msra.mxu0 %v825
        %910 = vmatprep.mubr.f32.mxu0 %v837
        %911 = vmatmul.mubr.f32.gmra.mrb[0].mxu0 %v834
        %v912 = vpop.f32.mrb[0].mxu0
        %v913 = vadd.f32 0.0, %v912
        %v914 = vpop.f32.mrb[0].mxu0
        %v915 = vadd.f32 0.0, %v914
        %916 = vmatprep.mubr.f32.mxu0 %v841
        %917 = vmatmul.mubr.f32.gmra.mrb[0].mxu0 %v839
        %v918 = vpop.f32.mrb[0].mxu0
        %v919 = vadd.f32 0.0, %v918
        %v920 = vpop.f32.mrb[0].mxu0
        %v921 = vadd.f32 0.0, %v920
        %922 = vdwg.mxu0
        %v923 = vadd.f32 %v754, %v913
        %v924 = vadd.f32 %v755, %v915
        %v925 = vadd.f32 %v756, %v919
        %v926 = vadd.f32 %v757, %v921
        %v927 = vld [vmem:[#allocation2] sm:$0xf0]
        %v928 = vld [vmem:[#allocation2 + $0x8] sm:$0xf0]
        %v929 = vld [vmem:[#allocation2 + $0x20] sm:$0xf]
        %v930 = vld [vmem:[#allocation2 + $0x28] sm:$0xf]
        %s931 = scalar_lea.vmem [#allocation4], 2048
        %v932 = vld [vmem:[%s931] sm:$0xff]
        %v933 = vld [vmem:[%s931 + $0x8] sm:$0xff]
        %v934 = vld [vmem:[%s931 + $0x10] sm:$0xff]
        %v935 = vld [vmem:[%s931 + $0x18] sm:$0xff]
        %v936 = vld [vmem:[%s931 + $0x20] sm:$0xff]
        %v937 = vld [vmem:[%s931 + $0x28] sm:$0xff]
        %v938 = vld [vmem:[%s931 + $0x30] sm:$0xff]
        %v939 = vld [vmem:[%s931 + $0x38] sm:$0xff]
        %v940 = vld [vmem:[%s931 + $0x40] sm:$0xff]
        %v941 = vld [vmem:[%s931 + $0x48] sm:$0xff]
        %v942 = vld [vmem:[%s931 + $0x50] sm:$0xff]
        %v943 = vld [vmem:[%s931 + $0x58] sm:$0xff]
        %v944 = vld [vmem:[%s931 + $0x60] sm:$0xff]
        %v945 = vld [vmem:[%s931 + $0x68] sm:$0xff]
        %v946 = vld [vmem:[%s931 + $0x70] sm:$0xff]
        %v947 = vld [vmem:[%s931 + $0x78] sm:$0xff]
        %v948 = vld [vmem:[%s931 + $0x80] sm:$0xff]
        %v949 = vld [vmem:[%s931 + $0x88] sm:$0xff]
        %v950 = vld [vmem:[%s931 + $0x90] sm:$0xff]
        %v951 = vld [vmem:[%s931 + $0x98] sm:$0xff]
        %v952 = vld [vmem:[%s931 + $0xa0] sm:$0xff]
        %v953 = vld [vmem:[%s931 + $0xa8] sm:$0xff]
        %v954 = vld [vmem:[%s931 + $0xb0] sm:$0xff]
        %v955 = vld [vmem:[%s931 + $0xb8] sm:$0xff]
        %v956 = vld [vmem:[%s931 + $0xc0] sm:$0xff]
        %v957 = vld [vmem:[%s931 + $0xc8] sm:$0xff]
        %v958 = vld [vmem:[%s931 + $0xd0] sm:$0xff]
        %v959 = vld [vmem:[%s931 + $0xd8] sm:$0xff]
        %v960 = vld [vmem:[%s931 + $0xe0] sm:$0xff]
        %v961 = vld [vmem:[%s931 + $0xe8] sm:$0xff]
        %v962 = vld [vmem:[%s931 + $0xf0] sm:$0xff]
        %v963 = vld [vmem:[%s931 + $0xf8] sm:$0xff]
        %v964 = vld [vmem:[%s931 + $0x100] sm:$0xff]
        %v965 = vld [vmem:[%s931 + $0x108] sm:$0xff]
        %v966 = vld [vmem:[%s931 + $0x110] sm:$0xff]
        %v967 = vld [vmem:[%s931 + $0x118] sm:$0xff]
        %v968 = vld [vmem:[%s931 + $0x120] sm:$0xff]
        %v969 = vld [vmem:[%s931 + $0x128] sm:$0xff]
        %v970 = vld [vmem:[%s931 + $0x130] sm:$0xff]
        %v971 = vld [vmem:[%s931 + $0x138] sm:$0xff]
        %v972 = vld [vmem:[%s931 + $0x140] sm:$0xff]
        %v973 = vld [vmem:[%s931 + $0x148] sm:$0xff]
        %v974 = vld [vmem:[%s931 + $0x150] sm:$0xff]
        %v975 = vld [vmem:[%s931 + $0x158] sm:$0xff]
        %v976 = vld [vmem:[%s931 + $0x160] sm:$0xff]
        %v977 = vld [vmem:[%s931 + $0x168] sm:$0xff]
        %v978 = vld [vmem:[%s931 + $0x170] sm:$0xff]
        %v979 = vld [vmem:[%s931 + $0x178] sm:$0xff]
        %v980 = vld [vmem:[%s931 + $0x180] sm:$0xff]
        %v981 = vld [vmem:[%s931 + $0x188] sm:$0xff]
        %v982 = vld [vmem:[%s931 + $0x190] sm:$0xff]
        %v983 = vld [vmem:[%s931 + $0x198] sm:$0xff]
        %v984 = vld [vmem:[%s931 + $0x1a0] sm:$0xff]
        %v985 = vld [vmem:[%s931 + $0x1a8] sm:$0xff]
        %v986 = vld [vmem:[%s931 + $0x1b0] sm:$0xff]
        %v987 = vld [vmem:[%s931 + $0x1b8] sm:$0xff]
        %v988 = vld [vmem:[%s931 + $0x1c0] sm:$0xff]
        %v989 = vld [vmem:[%s931 + $0x1c8] sm:$0xff]
        %v990 = vld [vmem:[%s931 + $0x1d0] sm:$0xff]
        %v991 = vld [vmem:[%s931 + $0x1d8] sm:$0xff]
        %v992 = vld [vmem:[%s931 + $0x1e0] sm:$0xff]
        %v993 = vld [vmem:[%s931 + $0x1e8] sm:$0xff]
        %v994 = vld [vmem:[%s931 + $0x1f0] sm:$0xff]
        %v995 = vld [vmem:[%s931 + $0x1f8] sm:$0xff]
        %vm1000 = vcmask 1043456
        %v1001 = vrot.slane %v927, 4
        %v1002 = vrot.slane %v279, 4
        %v1003 = vsel %vm1000, %v1001, %v1002
        %v1004 = vrot.slane %v928, 4
        %v1005 = vrot.slane %v280, 4
        %v1006 = vsel %vm1000, %v1004, %v1005
        %v1007 = vrot.slane %v929, 4
        %v1008 = vsel %vm1000, %v1002, %v1007
        %v1009 = vrot.slane %v930, 4
        %v1010 = vsel %vm1000, %v1005, %v1009
        %1015 = vmatprep.subr.mxu0 %v933
        %1016 = vmatpush1.msra.mxu0 %v932
        %1017 = vmatprep.subr.mxu0 %v935
        %1018 = vmatpush1.msra.mxu0 %v934
        %1019 = vmatprep.subr.mxu0 %v937
        %1020 = vmatpush1.msra.mxu0 %v936
        %1021 = vmatprep.subr.mxu0 %v939
        %1022 = vmatpush1.msra.mxu0 %v938
        %1023 = vmatprep.subr.mxu0 %v941
        %1024 = vmatpush1.msra.mxu0 %v940
        %1025 = vmatprep.subr.mxu0 %v943
        %1026 = vmatpush1.msra.mxu0 %v942
        %1027 = vmatprep.subr.mxu0 %v945
        %1028 = vmatpush1.msra.mxu0 %v944
        %1029 = vmatprep.subr.mxu0 %v947
        %1030 = vmatpush1.msra.mxu0 %v946
        %1031 = vmatprep.subr.mxu0 %v949
        %1032 = vmatpush1.msra.mxu0 %v948
        %1033 = vmatprep.subr.mxu0 %v951
        %1034 = vmatpush1.msra.mxu0 %v950
        %1035 = vmatprep.subr.mxu0 %v953
        %1036 = vmatpush1.msra.mxu0 %v952
        %1037 = vmatprep.subr.mxu0 %v955
        %1038 = vmatpush1.msra.mxu0 %v954
        %1039 = vmatprep.subr.mxu0 %v957
        %1040 = vmatpush1.msra.mxu0 %v956
        %1041 = vmatprep.subr.mxu0 %v959
        %1042 = vmatpush1.msra.mxu0 %v958
        %1043 = vmatprep.subr.mxu0 %v961
        %1044 = vmatpush1.msra.mxu0 %v960
        %1045 = vmatprep.subr.mxu0 %v963
        %1046 = vmatpush1.msra.mxu0 %v962
        %1047 = vmatprep.subr.mxu0 %v965
        %1048 = vmatpush1.msra.mxu0 %v964
        %1049 = vmatprep.subr.mxu0 %v967
        %1050 = vmatpush1.msra.mxu0 %v966
        %1051 = vmatprep.subr.mxu0 %v969
        %1052 = vmatpush1.msra.mxu0 %v968
        %1053 = vmatprep.subr.mxu0 %v971
        %1054 = vmatpush1.msra.mxu0 %v970
        %1055 = vmatprep.subr.mxu0 %v973
        %1056 = vmatpush1.msra.mxu0 %v972
        %1057 = vmatprep.subr.mxu0 %v975
        %1058 = vmatpush1.msra.mxu0 %v974
        %1059 = vmatprep.subr.mxu0 %v977
        %1060 = vmatpush1.msra.mxu0 %v976
        %1061 = vmatprep.subr.mxu0 %v979
        %1062 = vmatpush1.msra.mxu0 %v978
        %1063 = vmatprep.subr.mxu0 %v981
        %1064 = vmatpush1.msra.mxu0 %v980
        %1065 = vmatprep.subr.mxu0 %v983
        %1066 = vmatpush1.msra.mxu0 %v982
        %1067 = vmatprep.subr.mxu0 %v985
        %1068 = vmatpush1.msra.mxu0 %v984
        %1069 = vmatprep.subr.mxu0 %v987
        %1070 = vmatpush1.msra.mxu0 %v986
        %1071 = vmatprep.subr.mxu0 %v989
        %1072 = vmatpush1.msra.mxu0 %v988
        %1073 = vmatprep.subr.mxu0 %v991
        %1074 = vmatpush1.msra.mxu0 %v990
        %1075 = vmatprep.subr.mxu0 %v993
        %1076 = vmatpush1.msra.mxu0 %v992
        %1077 = vmatprep.subr.mxu0 %v995
        %1078 = vmatpush1.msra.mxu0 %v994
        %1079 = vmatprep.mubr.f32.mxu0 %v1006
        %1080 = vmatmul.mubr.f32.gmra.mrb[0].mxu0 %v1003
        %v1081 = vpop.f32.mrb[0].mxu0
        %v1082 = vadd.f32 0.0, %v1081
        %v1083 = vpop.f32.mrb[0].mxu0
        %v1084 = vadd.f32 0.0, %v1083
        %1085 = vmatprep.mubr.f32.mxu0 %v1010
        %1086 = vmatmul.mubr.f32.gmra.mrb[0].mxu0 %v1008
        %v1087 = vpop.f32.mrb[0].mxu0
        %v1088 = vadd.f32 0.0, %v1087
        %v1089 = vpop.f32.mrb[0].mxu0
        %v1090 = vadd.f32 0.0, %v1089
        %1091 = vdwg.mxu0
        %v1092 = vadd.f32 %v923, %v1082
        %v1093 = vadd.f32 %v924, %v1084
        %v1094 = vadd.f32 %v925, %v1088
        %v1095 = vadd.f32 %v926, %v1090
        %v1100 = vrot.slane %v1092, 6
        %v1101 = vrot.slane %v1093, 6
        %v1102 = vrot.slane %v1094, 6
        %v1103 = vsel %vm258, %v1100, %v1102
        %v1104 = vrot.slane %v1095, 6
        %v1105 = vsel %vm258, %v1101, %v1104
        %1112 = vst [vmem:[#allocation3] sm:$0xfc] %v1100
        %1113 = vst [vmem:[#allocation3 + $0x8] sm:$0xfc] %v1101
        %1114 = vst [vmem:[#allocation3 + $0x10] sm:$0xff] %v1103
        %1115 = vst [vmem:[#allocation3 + $0x18] sm:$0xff] %v1105
        %1116 = vst [vmem:[#allocation3 + $0x20] sm:$0x3] %v1102
        %1117 = vst [vmem:[#allocation3 + $0x28] sm:$0x3] %v1104
        %v1118 = vld [vmem:[#allocation3] sm:$0xff]
        %v1119 = vld [vmem:[#allocation3 + $0x8] sm:$0xff]
        %v1120 = vld [vmem:[#allocation3 + $0x10] sm:$0xff]
        %v1121 = vld [vmem:[#allocation3 + $0x18] sm:$0xff]
        %v1122 = vld [vmem:[#allocation6] sm:$0xff]
        %v1123 = vld [vmem:[#allocation6 + $0x8] sm:$0xff]
        %v1124 = vld [vmem:[#allocation6 + $0x10] sm:$0xff]
        %v1125 = vld [vmem:[#allocation6 + $0x18] sm:$0xff]
        %v1126 = vld [vmem:[#allocation6 + $0x20] sm:$0xff]
        %v1127 = vld [vmem:[#allocation6 + $0x28] sm:$0xff]
        %v1128 = vld [vmem:[#allocation6 + $0x30] sm:$0xff]
        %v1129 = vld [vmem:[#allocation6 + $0x38] sm:$0xff]
        %v1130 = vld [vmem:[#allocation6 + $0x40] sm:$0xff]
        %v1131 = vld [vmem:[#allocation6 + $0x48] sm:$0xff]
        %v1132 = vld [vmem:[#allocation6 + $0x50] sm:$0xff]
        %v1133 = vld [vmem:[#allocation6 + $0x58] sm:$0xff]
        %v1134 = vld [vmem:[#allocation6 + $0x60] sm:$0xff]
        %v1135 = vld [vmem:[#allocation6 + $0x68] sm:$0xff]
        %v1136 = vld [vmem:[#allocation6 + $0x70] sm:$0xff]
        %v1137 = vld [vmem:[#allocation6 + $0x78] sm:$0xff]
        %v1138 = vld [vmem:[#allocation6 + $0x80] sm:$0xff]
        %v1139 = vld [vmem:[#allocation6 + $0x88] sm:$0xff]
        %v1140 = vld [vmem:[#allocation6 + $0x90] sm:$0xff]
        %v1141 = vld [vmem:[#allocation6 + $0x98] sm:$0xff]
        %v1142 = vld [vmem:[#allocation6 + $0xa0] sm:$0xff]
        %v1143 = vld [vmem:[#allocation6 + $0xa8] sm:$0xff]
        %v1144 = vld [vmem:[#allocation6 + $0xb0] sm:$0xff]
        %v1145 = vld [vmem:[#allocation6 + $0xb8] sm:$0xff]
        %v1146 = vld [vmem:[#allocation6 + $0xc0] sm:$0xff]
        %v1147 = vld [vmem:[#allocation6 + $0xc8] sm:$0xff]
        %v1148 = vld [vmem:[#allocation6 + $0xd0] sm:$0xff]
        %v1149 = vld [vmem:[#allocation6 + $0xd8] sm:$0xff]
        %v1150 = vld [vmem:[#allocation6 + $0xe0] sm:$0xff]
        %v1151 = vld [vmem:[#allocation6 + $0xe8] sm:$0xff]
        %v1152 = vld [vmem:[#allocation6 + $0xf0] sm:$0xff]
        %v1153 = vld [vmem:[#allocation6 + $0xf8] sm:$0xff]
        %v1154 = vld [vmem:[#allocation6 + $0x100] sm:$0xff]
        %v1155 = vld [vmem:[#allocation6 + $0x108] sm:$0xff]
        %v1156 = vld [vmem:[#allocation6 + $0x110] sm:$0xff]
        %v1157 = vld [vmem:[#allocation6 + $0x118] sm:$0xff]
        %v1158 = vld [vmem:[#allocation6 + $0x120] sm:$0xff]
        %v1159 = vld [vmem:[#allocation6 + $0x128] sm:$0xff]
        %v1160 = vld [vmem:[#allocation6 + $0x130] sm:$0xff]
        %v1161 = vld [vmem:[#allocation6 + $0x138] sm:$0xff]
        %v1162 = vld [vmem:[#allocation6 + $0x140] sm:$0xff]
        %v1163 = vld [vmem:[#allocation6 + $0x148] sm:$0xff]
        %v1164 = vld [vmem:[#allocation6 + $0x150] sm:$0xff]
        %v1165 = vld [vmem:[#allocation6 + $0x158] sm:$0xff]
        %v1166 = vld [vmem:[#allocation6 + $0x160] sm:$0xff]
        %v1167 = vld [vmem:[#allocation6 + $0x168] sm:$0xff]
        %v1168 = vld [vmem:[#allocation6 + $0x170] sm:$0xff]
        %v1169 = vld [vmem:[#allocation6 + $0x178] sm:$0xff]
        %v1170 = vld [vmem:[#allocation6 + $0x180] sm:$0xff]
        %v1171 = vld [vmem:[#allocation6 + $0x188] sm:$0xff]
        %v1172 = vld [vmem:[#allocation6 + $0x190] sm:$0xff]
        %v1173 = vld [vmem:[#allocation6 + $0x198] sm:$0xff]
        %v1174 = vld [vmem:[#allocation6 + $0x1a0] sm:$0xff]
        %v1175 = vld [vmem:[#allocation6 + $0x1a8] sm:$0xff]
        %v1176 = vld [vmem:[#allocation6 + $0x1b0] sm:$0xff]
        %v1177 = vld [vmem:[#allocation6 + $0x1b8] sm:$0xff]
        %v1178 = vld [vmem:[#allocation6 + $0x1c0] sm:$0xff]
        %v1179 = vld [vmem:[#allocation6 + $0x1c8] sm:$0xff]
        %v1180 = vld [vmem:[#allocation6 + $0x1d0] sm:$0xff]
        %v1181 = vld [vmem:[#allocation6 + $0x1d8] sm:$0xff]
        %v1182 = vld [vmem:[#allocation6 + $0x1e0] sm:$0xff]
        %v1183 = vld [vmem:[#allocation6 + $0x1e8] sm:$0xff]
        %v1184 = vld [vmem:[#allocation6 + $0x1f0] sm:$0xff]
        %v1185 = vld [vmem:[#allocation6 + $0x1f8] sm:$0xff]
        %v1186 = vld [vmem:[#allocation3] sm:$0xfe]
        %v1187 = vld [vmem:[#allocation3 + $0x8] sm:$0xfe]
        %v1188 = vld [vmem:[#allocation3 + $0x20] sm:$0x1]
        %v1189 = vld [vmem:[#allocation3 + $0x28] sm:$0x1]
        %s1190 = scalar_lea.vmem [#allocation6], 512
        %v1191 = vld [vmem:[%s1190] sm:$0xff]
        %v1192 = vld [vmem:[%s1190 + $0x8] sm:$0xff]
        %v1193 = vld [vmem:[%s1190 + $0x10] sm:$0xff]
        %v1194 = vld [vmem:[%s1190 + $0x18] sm:$0xff]
        %v1195 = vld [vmem:[%s1190 + $0x20] sm:$0xff]
        %v1196 = vld [vmem:[%s1190 + $0x28] sm:$0xff]
        %v1197 = vld [vmem:[%s1190 + $0x30] sm:$0xff]
        %v1198 = vld [vmem:[%s1190 + $0x38] sm:$0xff]
        %v1199 = vld [vmem:[%s1190 + $0x40] sm:$0xff]
        %v1200 = vld [vmem:[%s1190 + $0x48] sm:$0xff]
        %v1201 = vld [vmem:[%s1190 + $0x50] sm:$0xff]
        %v1202 = vld [vmem:[%s1190 + $0x58] sm:$0xff]
        %v1203 = vld [vmem:[%s1190 + $0x60] sm:$0xff]
        %v1204 = vld [vmem:[%s1190 + $0x68] sm:$0xff]
        %v1205 = vld [vmem:[%s1190 + $0x70] sm:$0xff]
        %v1206 = vld [vmem:[%s1190 + $0x78] sm:$0xff]
        %v1207 = vld [vmem:[%s1190 + $0x80] sm:$0xff]
        %v1208 = vld [vmem:[%s1190 + $0x88] sm:$0xff]
        %v1209 = vld [vmem:[%s1190 + $0x90] sm:$0xff]
        %v1210 = vld [vmem:[%s1190 + $0x98] sm:$0xff]
        %v1211 = vld [vmem:[%s1190 + $0xa0] sm:$0xff]
        %v1212 = vld [vmem:[%s1190 + $0xa8] sm:$0xff]
        %v1213 = vld [vmem:[%s1190 + $0xb0] sm:$0xff]
        %v1214 = vld [vmem:[%s1190 + $0xb8] sm:$0xff]
        %v1215 = vld [vmem:[%s1190 + $0xc0] sm:$0xff]
        %v1216 = vld [vmem:[%s1190 + $0xc8] sm:$0xff]
        %v1217 = vld [vmem:[%s1190 + $0xd0] sm:$0xff]
        %v1218 = vld [vmem:[%s1190 + $0xd8] sm:$0xff]
        %v1219 = vld [vmem:[%s1190 + $0xe0] sm:$0xff]
        %v1220 = vld [vmem:[%s1190 + $0xe8] sm:$0xff]
        %v1221 = vld [vmem:[%s1190 + $0xf0] sm:$0xff]
        %v1222 = vld [vmem:[%s1190 + $0xf8] sm:$0xff]
        %v1223 = vld [vmem:[%s1190 + $0x100] sm:$0xff]
        %v1224 = vld [vmem:[%s1190 + $0x108] sm:$0xff]
        %v1225 = vld [vmem:[%s1190 + $0x110] sm:$0xff]
        %v1226 = vld [vmem:[%s1190 + $0x118] sm:$0xff]
        %v1227 = vld [vmem:[%s1190 + $0x120] sm:$0xff]
        %v1228 = vld [vmem:[%s1190 + $0x128] sm:$0xff]
        %v1229 = vld [vmem:[%s1190 + $0x130] sm:$0xff]
        %v1230 = vld [vmem:[%s1190 + $0x138] sm:$0xff]
        %v1231 = vld [vmem:[%s1190 + $0x140] sm:$0xff]
        %v1232 = vld [vmem:[%s1190 + $0x148] sm:$0xff]
        %v1233 = vld [vmem:[%s1190 + $0x150] sm:$0xff]
        %v1234 = vld [vmem:[%s1190 + $0x158] sm:$0xff]
        %v1235 = vld [vmem:[%s1190 + $0x160] sm:$0xff]
        %v1236 = vld [vmem:[%s1190 + $0x168] sm:$0xff]
        %v1237 = vld [vmem:[%s1190 + $0x170] sm:$0xff]
        %v1238 = vld [vmem:[%s1190 + $0x178] sm:$0xff]
        %v1239 = vld [vmem:[%s1190 + $0x180] sm:$0xff]
        %v1240 = vld [vmem:[%s1190 + $0x188] sm:$0xff]
        %v1241 = vld [vmem:[%s1190 + $0x190] sm:$0xff]
        %v1242 = vld [vmem:[%s1190 + $0x198] sm:$0xff]
        %v1243 = vld [vmem:[%s1190 + $0x1a0] sm:$0xff]
        %v1244 = vld [vmem:[%s1190 + $0x1a8] sm:$0xff]
        %v1245 = vld [vmem:[%s1190 + $0x1b0] sm:$0xff]
        %v1246 = vld [vmem:[%s1190 + $0x1b8] sm:$0xff]
        %v1247 = vld [vmem:[%s1190 + $0x1c0] sm:$0xff]
        %v1248 = vld [vmem:[%s1190 + $0x1c8] sm:$0xff]
        %v1249 = vld [vmem:[%s1190 + $0x1d0] sm:$0xff]
        %v1250 = vld [vmem:[%s1190 + $0x1d8] sm:$0xff]
        %v1251 = vld [vmem:[%s1190 + $0x1e0] sm:$0xff]
        %v1252 = vld [vmem:[%s1190 + $0x1e8] sm:$0xff]
        %v1253 = vld [vmem:[%s1190 + $0x1f0] sm:$0xff]
        %v1254 = vld [vmem:[%s1190 + $0x1f8] sm:$0xff]
        %v1261 = vrot.slane %v1186, 1
        %v1262 = vrot.slane %v1120, 1
        %v1263 = vsel %vm420, %v1261, %v1262
        %v1264 = vrot.slane %v1187, 1
        %v1265 = vrot.slane %v1121, 1
        %v1266 = vsel %vm420, %v1264, %v1265
        %v1267 = vrot.slane %v1188, 1
        %v1268 = vsel %vm420, %v1262, %v1267
        %v1269 = vrot.slane %v1189, 1
        %v1270 = vsel %vm420, %v1265, %v1269
        %1275 = vmatprep.subr.mxu0 %v1192
        %1276 = vmatpush1.msra.mxu0 %v1191
        %1277 = vmatprep.subr.mxu0 %v1194
        %1278 = vmatpush1.msra.mxu0 %v1193
        %1279 = vmatprep.subr.mxu0 %v1196
        %1280 = vmatpush1.msra.mxu0 %v1195
        %1281 = vmatprep.subr.mxu0 %v1198
        %1282 = vmatpush1.msra.mxu0 %v1197
        %1283 = vmatprep.subr.mxu0 %v1200
        %1284 = vmatpush1.msra.mxu0 %v1199
        %1285 = vmatprep.subr.mxu0 %v1202
        %1286 = vmatpush1.msra.mxu0 %v1201
        %1287 = vmatprep.subr.mxu0 %v1204
        %1288 = vmatpush1.msra.mxu0 %v1203
        %1289 = vmatprep.subr.mxu0 %v1206
        %1290 = vmatpush1.msra.mxu0 %v1205
        %1291 = vmatprep.subr.mxu0 %v1208
        %1292 = vmatpush1.msra.mxu0 %v1207
        %1293 = vmatprep.subr.mxu0 %v1210
        %1294 = vmatpush1.msra.mxu0 %v1209
        %1295 = vmatprep.subr.mxu0 %v1212
        %1296 = vmatpush1.msra.mxu0 %v1211
        %1297 = vmatprep.subr.mxu0 %v1214
        %1298 = vmatpush1.msra.mxu0 %v1213
        %1299 = vmatprep.subr.mxu0 %v1216
        %1300 = vmatpush1.msra.mxu0 %v1215
        %1301 = vmatprep.subr.mxu0 %v1218
        %1302 = vmatpush1.msra.mxu0 %v1217
        %1303 = vmatprep.subr.mxu0 %v1220
        %1304 = vmatpush1.msra.mxu0 %v1219
        %1305 = vmatprep.subr.mxu0 %v1222
        %1306 = vmatpush1.msra.mxu0 %v1221
        %1307 = vmatprep.subr.mxu0 %v1224
        %1308 = vmatpush1.msra.mxu0 %v1223
        %1309 = vmatprep.subr.mxu0 %v1226
        %1310 = vmatpush1.msra.mxu0 %v1225
        %1311 = vmatprep.subr.mxu0 %v1228
        %1312 = vmatpush1.msra.mxu0 %v1227
        %1313 = vmatprep.subr.mxu0 %v1230
        %1314 = vmatpush1.msra.mxu0 %v1229
        %1315 = vmatprep.subr.mxu0 %v1232
        %1316 = vmatpush1.msra.mxu0 %v1231
        %1317 = vmatprep.subr.mxu0 %v1234
        %1318 = vmatpush1.msra.mxu0 %v1233
        %1319 = vmatprep.subr.mxu0 %v1236
        %1320 = vmatpush1.msra.mxu0 %v1235
        %1321 = vmatprep.subr.mxu0 %v1238
        %1322 = vmatpush1.msra.mxu0 %v1237
        %1323 = vmatprep.subr.mxu0 %v1240
        %1324 = vmatpush1.msra.mxu0 %v1239
        %1325 = vmatprep.subr.mxu0 %v1242
        %1326 = vmatpush1.msra.mxu0 %v1241
        %1327 = vmatprep.subr.mxu0 %v1244
        %1328 = vmatpush1.msra.mxu0 %v1243
        %1329 = vmatprep.subr.mxu0 %v1246
        %1330 = vmatpush1.msra.mxu0 %v1245
        %1331 = vmatprep.subr.mxu0 %v1248
        %1332 = vmatpush1.msra.mxu0 %v1247
        %1333 = vmatprep.subr.mxu0 %v1250
        %1334 = vmatpush1.msra.mxu0 %v1249
        %1335 = vmatprep.subr.mxu0 %v1252
        %1336 = vmatpush1.msra.mxu0 %v1251
        %1337 = vmatprep.subr.mxu0 %v1254
        %1338 = vmatpush1.msra.mxu0 %v1253
        %1339 = vmatprep.mubr.f32.mxu0 %v1266
        %1340 = vmatmul.mubr.f32.gmra.mrb[0].mxu0 %v1263
        %v1341 = vpop.f32.mrb[0].mxu0
        %v1342 = vadd.f32 0.0, %v1341
        %v1343 = vpop.f32.mrb[0].mxu0
        %v1344 = vadd.f32 0.0, %v1343
        %1345 = vmatprep.mubr.f32.mxu0 %v1270
        %1346 = vmatmul.mubr.f32.gmra.mrb[0].mxu0 %v1268
        %v1347 = vpop.f32.mrb[0].mxu0
        %v1348 = vadd.f32 0.0, %v1347
        %v1349 = vpop.f32.mrb[0].mxu0
        %v1350 = vadd.f32 0.0, %v1349
        %1351 = vdwg.mxu0
        %1352 = vmatprep.subr.mxu0 %v1123
        %1353 = vmatpush1.msra.mxu0 %v1122
        %1354 = vmatprep.subr.mxu0 %v1125
        %1355 = vmatpush1.msra.mxu0 %v1124
        %1356 = vmatprep.subr.mxu0 %v1127
        %1357 = vmatpush1.msra.mxu0 %v1126
        %1358 = vmatprep.subr.mxu0 %v1129
        %1359 = vmatpush1.msra.mxu0 %v1128
        %1360 = vmatprep.subr.mxu0 %v1131
        %1361 = vmatpush1.msra.mxu0 %v1130
        %1362 = vmatprep.subr.mxu0 %v1133
        %1363 = vmatpush1.msra.mxu0 %v1132
        %1364 = vmatprep.subr.mxu0 %v1135
        %1365 = vmatpush1.msra.mxu0 %v1134
        %1366 = vmatprep.subr.mxu0 %v1137
        %1367 = vmatpush1.msra.mxu0 %v1136
        %1368 = vmatprep.subr.mxu0 %v1139
        %1369 = vmatpush1.msra.mxu0 %v1138
        %1370 = vmatprep.subr.mxu0 %v1141
        %1371 = vmatpush1.msra.mxu0 %v1140
        %1372 = vmatprep.subr.mxu0 %v1143
        %1373 = vmatpush1.msra.mxu0 %v1142
        %1374 = vmatprep.subr.mxu0 %v1145
        %1375 = vmatpush1.msra.mxu0 %v1144
        %1376 = vmatprep.subr.mxu0 %v1147
        %1377 = vmatpush1.msra.mxu0 %v1146
        %1378 = vmatprep.subr.mxu0 %v1149
        %1379 = vmatpush1.msra.mxu0 %v1148
        %1380 = vmatprep.subr.mxu0 %v1151
        %1381 = vmatpush1.msra.mxu0 %v1150
        %1382 = vmatprep.subr.mxu0 %v1153
        %1383 = vmatpush1.msra.mxu0 %v1152
        %1384 = vmatprep.subr.mxu0 %v1155
        %1385 = vmatpush1.msra.mxu0 %v1154
        %1386 = vmatprep.subr.mxu0 %v1157
        %1387 = vmatpush1.msra.mxu0 %v1156
        %1388 = vmatprep.subr.mxu0 %v1159
        %1389 = vmatpush1.msra.mxu0 %v1158
        %1390 = vmatprep.subr.mxu0 %v1161
        %1391 = vmatpush1.msra.mxu0 %v1160
        %1392 = vmatprep.subr.mxu0 %v1163
        %1393 = vmatpush1.msra.mxu0 %v1162
        %1394 = vmatprep.subr.mxu0 %v1165
        %1395 = vmatpush1.msra.mxu0 %v1164
        %1396 = vmatprep.subr.mxu0 %v1167
        %1397 = vmatpush1.msra.mxu0 %v1166
        %1398 = vmatprep.subr.mxu0 %v1169
        %1399 = vmatpush1.msra.mxu0 %v1168
        %1400 = vmatprep.subr.mxu0 %v1171
        %1401 = vmatpush1.msra.mxu0 %v1170
        %1402 = vmatprep.subr.mxu0 %v1173
        %1403 = vmatpush1.msra.mxu0 %v1172
        %1404 = vmatprep.subr.mxu0 %v1175
        %1405 = vmatpush1.msra.mxu0 %v1174
        %1406 = vmatprep.subr.mxu0 %v1177
        %1407 = vmatpush1.msra.mxu0 %v1176
        %1408 = vmatprep.subr.mxu0 %v1179
        %1409 = vmatpush1.msra.mxu0 %v1178
        %1410 = vmatprep.subr.mxu0 %v1181
        %1411 = vmatpush1.msra.mxu0 %v1180
        %1412 = vmatprep.subr.mxu0 %v1183
        %1413 = vmatpush1.msra.mxu0 %v1182
        %1414 = vmatprep.subr.mxu0 %v1185
        %1415 = vmatpush1.msra.mxu0 %v1184
        %1416 = vmatprep.mubr.f32.mxu0 %v1119
        %1417 = vmatmul.mubr.f32.gmra.mrb[0].mxu0 %v1118
        %v1418 = vpop.f32.mrb[0].mxu0
        %v1419 = vadd.f32 %v1342, %v1418
        %v1420 = vpop.f32.mrb[0].mxu0
        %v1421 = vadd.f32 %v1344, %v1420
        %1422 = vmatprep.mubr.f32.mxu0 %v1121
        %1423 = vmatmul.mubr.f32.gmra.mrb[0].mxu0 %v1120
        %v1424 = vpop.f32.mrb[0].mxu0
        %v1425 = vadd.f32 %v1348, %v1424
        %v1426 = vpop.f32.mrb[0].mxu0
        %v1427 = vadd.f32 %v1350, %v1426
        %1428 = vdwg.mxu0
        %v1429 = vld [vmem:[#allocation3] sm:$0xfc]
        %v1430 = vld [vmem:[#allocation3 + $0x8] sm:$0xfc]
        %v1431 = vld [vmem:[#allocation3 + $0x20] sm:$0x3]
        %v1432 = vld [vmem:[#allocation3 + $0x28] sm:$0x3]
        %s1433 = scalar_lea.vmem [#allocation6], 1024
        %v1434 = vld [vmem:[%s1433] sm:$0xff]
        %v1435 = vld [vmem:[%s1433 + $0x8] sm:$0xff]
        %v1436 = vld [vmem:[%s1433 + $0x10] sm:$0xff]
        %v1437 = vld [vmem:[%s1433 + $0x18] sm:$0xff]
        %v1438 = vld [vmem:[%s1433 + $0x20] sm:$0xff]
        %v1439 = vld [vmem:[%s1433 + $0x28] sm:$0xff]
        %v1440 = vld [vmem:[%s1433 + $0x30] sm:$0xff]
        %v1441 = vld [vmem:[%s1433 + $0x38] sm:$0xff]
        %v1442 = vld [vmem:[%s1433 + $0x40] sm:$0xff]
        %v1443 = vld [vmem:[%s1433 + $0x48] sm:$0xff]
        %v1444 = vld [vmem:[%s1433 + $0x50] sm:$0xff]
        %v1445 = vld [vmem:[%s1433 + $0x58] sm:$0xff]
        %v1446 = vld [vmem:[%s1433 + $0x60] sm:$0xff]
        %v1447 = vld [vmem:[%s1433 + $0x68] sm:$0xff]
        %v1448 = vld [vmem:[%s1433 + $0x70] sm:$0xff]
        %v1449 = vld [vmem:[%s1433 + $0x78] sm:$0xff]
        %v1450 = vld [vmem:[%s1433 + $0x80] sm:$0xff]
        %v1451 = vld [vmem:[%s1433 + $0x88] sm:$0xff]
        %v1452 = vld [vmem:[%s1433 + $0x90] sm:$0xff]
        %v1453 = vld [vmem:[%s1433 + $0x98] sm:$0xff]
        %v1454 = vld [vmem:[%s1433 + $0xa0] sm:$0xff]
        %v1455 = vld [vmem:[%s1433 + $0xa8] sm:$0xff]
        %v1456 = vld [vmem:[%s1433 + $0xb0] sm:$0xff]
        %v1457 = vld [vmem:[%s1433 + $0xb8] sm:$0xff]
        %v1458 = vld [vmem:[%s1433 + $0xc0] sm:$0xff]
        %v1459 = vld [vmem:[%s1433 + $0xc8] sm:$0xff]
        %v1460 = vld [vmem:[%s1433 + $0xd0] sm:$0xff]
        %v1461 = vld [vmem:[%s1433 + $0xd8] sm:$0xff]
        %v1462 = vld [vmem:[%s1433 + $0xe0] sm:$0xff]
        %v1463 = vld [vmem:[%s1433 + $0xe8] sm:$0xff]
        %v1464 = vld [vmem:[%s1433 + $0xf0] sm:$0xff]
        %v1465 = vld [vmem:[%s1433 + $0xf8] sm:$0xff]
        %v1466 = vld [vmem:[%s1433 + $0x100] sm:$0xff]
        %v1467 = vld [vmem:[%s1433 + $0x108] sm:$0xff]
        %v1468 = vld [vmem:[%s1433 + $0x110] sm:$0xff]
        %v1469 = vld [vmem:[%s1433 + $0x118] sm:$0xff]
        %v1470 = vld [vmem:[%s1433 + $0x120] sm:$0xff]
        %v1471 = vld [vmem:[%s1433 + $0x128] sm:$0xff]
        %v1472 = vld [vmem:[%s1433 + $0x130] sm:$0xff]
        %v1473 = vld [vmem:[%s1433 + $0x138] sm:$0xff]
        %v1474 = vld [vmem:[%s1433 + $0x140] sm:$0xff]
        %v1475 = vld [vmem:[%s1433 + $0x148] sm:$0xff]
        %v1476 = vld [vmem:[%s1433 + $0x150] sm:$0xff]
        %v1477 = vld [vmem:[%s1433 + $0x158] sm:$0xff]
        %v1478 = vld [vmem:[%s1433 + $0x160] sm:$0xff]
        %v1479 = vld [vmem:[%s1433 + $0x168] sm:$0xff]
        %v1480 = vld [vmem:[%s1433 + $0x170] sm:$0xff]
        %v1481 = vld [vmem:[%s1433 + $0x178] sm:$0xff]
        %v1482 = vld [vmem:[%s1433 + $0x180] sm:$0xff]
        %v1483 = vld [vmem:[%s1433 + $0x188] sm:$0xff]
        %v1484 = vld [vmem:[%s1433 + $0x190] sm:$0xff]
        %v1485 = vld [vmem:[%s1433 + $0x198] sm:$0xff]
        %v1486 = vld [vmem:[%s1433 + $0x1a0] sm:$0xff]
        %v1487 = vld [vmem:[%s1433 + $0x1a8] sm:$0xff]
        %v1488 = vld [vmem:[%s1433 + $0x1b0] sm:$0xff]
        %v1489 = vld [vmem:[%s1433 + $0x1b8] sm:$0xff]
        %v1490 = vld [vmem:[%s1433 + $0x1c0] sm:$0xff]
        %v1491 = vld [vmem:[%s1433 + $0x1c8] sm:$0xff]
        %v1492 = vld [vmem:[%s1433 + $0x1d0] sm:$0xff]
        %v1493 = vld [vmem:[%s1433 + $0x1d8] sm:$0xff]
        %v1494 = vld [vmem:[%s1433 + $0x1e0] sm:$0xff]
        %v1495 = vld [vmem:[%s1433 + $0x1e8] sm:$0xff]
        %v1496 = vld [vmem:[%s1433 + $0x1f0] sm:$0xff]
        %v1497 = vld [vmem:[%s1433 + $0x1f8] sm:$0xff]
        %v1502 = vrot.slane %v1429, 2
        %v1503 = vrot.slane %v1120, 2
        %v1504 = vsel %vm662, %v1502, %v1503
        %v1505 = vrot.slane %v1430, 2
        %v1506 = vrot.slane %v1121, 2
        %v1507 = vsel %vm662, %v1505, %v1506
        %v1508 = vrot.slane %v1431, 2
        %v1509 = vsel %vm662, %v1503, %v1508
        %v1510 = vrot.slane %v1432, 2
        %v1511 = vsel %vm662, %v1506, %v1510
        %1516 = vmatprep.subr.mxu0 %v1435
        %1517 = vmatpush1.msra.mxu0 %v1434
        %1518 = vmatprep.subr.mxu0 %v1437
        %1519 = vmatpush1.msra.mxu0 %v1436
        %1520 = vmatprep.subr.mxu0 %v1439
        %1521 = vmatpush1.msra.mxu0 %v1438
        %1522 = vmatprep.subr.mxu0 %v1441
        %1523 = vmatpush1.msra.mxu0 %v1440
        %1524 = vmatprep.subr.mxu0 %v1443
        %1525 = vmatpush1.msra.mxu0 %v1442
        %1526 = vmatprep.subr.mxu0 %v1445
        %1527 = vmatpush1.msra.mxu0 %v1444
        %1528 = vmatprep.subr.mxu0 %v1447
        %1529 = vmatpush1.msra.mxu0 %v1446
        %1530 = vmatprep.subr.mxu0 %v1449
        %1531 = vmatpush1.msra.mxu0 %v1448
        %1532 = vmatprep.subr.mxu0 %v1451
        %1533 = vmatpush1.msra.mxu0 %v1450
        %1534 = vmatprep.subr.mxu0 %v1453
        %1535 = vmatpush1.msra.mxu0 %v1452
        %1536 = vmatprep.subr.mxu0 %v1455
        %1537 = vmatpush1.msra.mxu0 %v1454
        %1538 = vmatprep.subr.mxu0 %v1457
        %1539 = vmatpush1.msra.mxu0 %v1456
        %1540 = vmatprep.subr.mxu0 %v1459
        %1541 = vmatpush1.msra.mxu0 %v1458
        %1542 = vmatprep.subr.mxu0 %v1461
        %1543 = vmatpush1.msra.mxu0 %v1460
        %1544 = vmatprep.subr.mxu0 %v1463
        %1545 = vmatpush1.msra.mxu0 %v1462
        %1546 = vmatprep.subr.mxu0 %v1465
        %1547 = vmatpush1.msra.mxu0 %v1464
        %1548 = vmatprep.subr.mxu0 %v1467
        %1549 = vmatpush1.msra.mxu0 %v1466
        %1550 = vmatprep.subr.mxu0 %v1469
        %1551 = vmatpush1.msra.mxu0 %v1468
        %1552 = vmatprep.subr.mxu0 %v1471
        %1553 = vmatpush1.msra.mxu0 %v1470
        %1554 = vmatprep.subr.mxu0 %v1473
        %1555 = vmatpush1.msra.mxu0 %v1472
        %1556 = vmatprep.subr.mxu0 %v1475
        %1557 = vmatpush1.msra.mxu0 %v1474
        %1558 = vmatprep.subr.mxu0 %v1477
        %1559 = vmatpush1.msra.mxu0 %v1476
        %1560 = vmatprep.subr.mxu0 %v1479
        %1561 = vmatpush1.msra.mxu0 %v1478
        %1562 = vmatprep.subr.mxu0 %v1481
        %1563 = vmatpush1.msra.mxu0 %v1480
        %1564 = vmatprep.subr.mxu0 %v1483
        %1565 = vmatpush1.msra.mxu0 %v1482
        %1566 = vmatprep.subr.mxu0 %v1485
        %1567 = vmatpush1.msra.mxu0 %v1484
        %1568 = vmatprep.subr.mxu0 %v1487
        %1569 = vmatpush1.msra.mxu0 %v1486
        %1570 = vmatprep.subr.mxu0 %v1489
        %1571 = vmatpush1.msra.mxu0 %v1488
        %1572 = vmatprep.subr.mxu0 %v1491
        %1573 = vmatpush1.msra.mxu0 %v1490
        %1574 = vmatprep.subr.mxu0 %v1493
        %1575 = vmatpush1.msra.mxu0 %v1492
        %1576 = vmatprep.subr.mxu0 %v1495
        %1577 = vmatpush1.msra.mxu0 %v1494
        %1578 = vmatprep.subr.mxu0 %v1497
        %1579 = vmatpush1.msra.mxu0 %v1496
        %1580 = vmatprep.mubr.f32.mxu0 %v1507
        %1581 = vmatmul.mubr.f32.gmra.mrb[0].mxu0 %v1504
        %v1582 = vpop.f32.mrb[0].mxu0
        %v1583 = vadd.f32 0.0, %v1582
        %v1584 = vpop.f32.mrb[0].mxu0
        %v1585 = vadd.f32 0.0, %v1584
        %1586 = vmatprep.mubr.f32.mxu0 %v1511
        %1587 = vmatmul.mubr.f32.gmra.mrb[0].mxu0 %v1509
        %v1588 = vpop.f32.mrb[0].mxu0
        %v1589 = vadd.f32 0.0, %v1588
        %v1590 = vpop.f32.mrb[0].mxu0
        %v1591 = vadd.f32 0.0, %v1590
        %1592 = vdwg.mxu0
        %v1593 = vadd.f32 %v1419, %v1583
        %v1594 = vadd.f32 %v1421, %v1585
        %v1595 = vadd.f32 %v1425, %v1589
        %v1596 = vadd.f32 %v1427, %v1591
        %v1597 = vld [vmem:[#allocation3] sm:$0xf8]
        %v1598 = vld [vmem:[#allocation3 + $0x8] sm:$0xf8]
        %v1599 = vld [vmem:[#allocation3 + $0x20] sm:$0x7]
        %v1600 = vld [vmem:[#allocation3 + $0x28] sm:$0x7]
        %s1601 = scalar_lea.vmem [#allocation6], 1536
        %v1602 = vld [vmem:[%s1601] sm:$0xff]
        %v1603 = vld [vmem:[%s1601 + $0x8] sm:$0xff]
        %v1604 = vld [vmem:[%s1601 + $0x10] sm:$0xff]
        %v1605 = vld [vmem:[%s1601 + $0x18] sm:$0xff]
        %v1606 = vld [vmem:[%s1601 + $0x20] sm:$0xff]
        %v1607 = vld [vmem:[%s1601 + $0x28] sm:$0xff]
        %v1608 = vld [vmem:[%s1601 + $0x30] sm:$0xff]
        %v1609 = vld [vmem:[%s1601 + $0x38] sm:$0xff]
        %v1610 = vld [vmem:[%s1601 + $0x40] sm:$0xff]
        %v1611 = vld [vmem:[%s1601 + $0x48] sm:$0xff]
        %v1612 = vld [vmem:[%s1601 + $0x50] sm:$0xff]
        %v1613 = vld [vmem:[%s1601 + $0x58] sm:$0xff]
        %v1614 = vld [vmem:[%s1601 + $0x60] sm:$0xff]
        %v1615 = vld [vmem:[%s1601 + $0x68] sm:$0xff]
        %v1616 = vld [vmem:[%s1601 + $0x70] sm:$0xff]
        %v1617 = vld [vmem:[%s1601 + $0x78] sm:$0xff]
        %v1618 = vld [vmem:[%s1601 + $0x80] sm:$0xff]
        %v1619 = vld [vmem:[%s1601 + $0x88] sm:$0xff]
        %v1620 = vld [vmem:[%s1601 + $0x90] sm:$0xff]
        %v1621 = vld [vmem:[%s1601 + $0x98] sm:$0xff]
        %v1622 = vld [vmem:[%s1601 + $0xa0] sm:$0xff]
        %v1623 = vld [vmem:[%s1601 + $0xa8] sm:$0xff]
        %v1624 = vld [vmem:[%s1601 + $0xb0] sm:$0xff]
        %v1625 = vld [vmem:[%s1601 + $0xb8] sm:$0xff]
        %v1626 = vld [vmem:[%s1601 + $0xc0] sm:$0xff]
        %v1627 = vld [vmem:[%s1601 + $0xc8] sm:$0xff]
        %v1628 = vld [vmem:[%s1601 + $0xd0] sm:$0xff]
        %v1629 = vld [vmem:[%s1601 + $0xd8] sm:$0xff]
        %v1630 = vld [vmem:[%s1601 + $0xe0] sm:$0xff]
        %v1631 = vld [vmem:[%s1601 + $0xe8] sm:$0xff]
        %v1632 = vld [vmem:[%s1601 + $0xf0] sm:$0xff]
        %v1633 = vld [vmem:[%s1601 + $0xf8] sm:$0xff]
        %v1634 = vld [vmem:[%s1601 + $0x100] sm:$0xff]
        %v1635 = vld [vmem:[%s1601 + $0x108] sm:$0xff]
        %v1636 = vld [vmem:[%s1601 + $0x110] sm:$0xff]
        %v1637 = vld [vmem:[%s1601 + $0x118] sm:$0xff]
        %v1638 = vld [vmem:[%s1601 + $0x120] sm:$0xff]
        %v1639 = vld [vmem:[%s1601 + $0x128] sm:$0xff]
        %v1640 = vld [vmem:[%s1601 + $0x130] sm:$0xff]
        %v1641 = vld [vmem:[%s1601 + $0x138] sm:$0xff]
        %v1642 = vld [vmem:[%s1601 + $0x140] sm:$0xff]
        %v1643 = vld [vmem:[%s1601 + $0x148] sm:$0xff]
        %v1644 = vld [vmem:[%s1601 + $0x150] sm:$0xff]
        %v1645 = vld [vmem:[%s1601 + $0x158] sm:$0xff]
        %v1646 = vld [vmem:[%s1601 + $0x160] sm:$0xff]
        %v1647 = vld [vmem:[%s1601 + $0x168] sm:$0xff]
        %v1648 = vld [vmem:[%s1601 + $0x170] sm:$0xff]
        %v1649 = vld [vmem:[%s1601 + $0x178] sm:$0xff]
        %v1650 = vld [vmem:[%s1601 + $0x180] sm:$0xff]
        %v1651 = vld [vmem:[%s1601 + $0x188] sm:$0xff]
        %v1652 = vld [vmem:[%s1601 + $0x190] sm:$0xff]
        %v1653 = vld [vmem:[%s1601 + $0x198] sm:$0xff]
        %v1654 = vld [vmem:[%s1601 + $0x1a0] sm:$0xff]
        %v1655 = vld [vmem:[%s1601 + $0x1a8] sm:$0xff]
        %v1656 = vld [vmem:[%s1601 + $0x1b0] sm:$0xff]
        %v1657 = vld [vmem:[%s1601 + $0x1b8] sm:$0xff]
        %v1658 = vld [vmem:[%s1601 + $0x1c0] sm:$0xff]
        %v1659 = vld [vmem:[%s1601 + $0x1c8] sm:$0xff]
        %v1660 = vld [vmem:[%s1601 + $0x1d0] sm:$0xff]
        %v1661 = vld [vmem:[%s1601 + $0x1d8] sm:$0xff]
        %v1662 = vld [vmem:[%s1601 + $0x1e0] sm:$0xff]
        %v1663 = vld [vmem:[%s1601 + $0x1e8] sm:$0xff]
        %v1664 = vld [vmem:[%s1601 + $0x1f0] sm:$0xff]
        %v1665 = vld [vmem:[%s1601 + $0x1f8] sm:$0xff]
        %v1670 = vrot.slane %v1597, 3
        %v1671 = vrot.slane %v1120, 3
        %v1672 = vsel %vm831, %v1670, %v1671
        %v1673 = vrot.slane %v1598, 3
        %v1674 = vrot.slane %v1121, 3
        %v1675 = vsel %vm831, %v1673, %v1674
        %v1676 = vrot.slane %v1599, 3
        %v1677 = vsel %vm831, %v1671, %v1676
        %v1678 = vrot.slane %v1600, 3
        %v1679 = vsel %vm831, %v1674, %v1678
        %1684 = vmatprep.subr.mxu0 %v1603
        %1685 = vmatpush1.msra.mxu0 %v1602
        %1686 = vmatprep.subr.mxu0 %v1605
        %1687 = vmatpush1.msra.mxu0 %v1604
        %1688 = vmatprep.subr.mxu0 %v1607
        %1689 = vmatpush1.msra.mxu0 %v1606
        %1690 = vmatprep.subr.mxu0 %v1609
        %1691 = vmatpush1.msra.mxu0 %v1608
        %1692 = vmatprep.subr.mxu0 %v1611
        %1693 = vmatpush1.msra.mxu0 %v1610
        %1694 = vmatprep.subr.mxu0 %v1613
        %1695 = vmatpush1.msra.mxu0 %v1612
        %1696 = vmatprep.subr.mxu0 %v1615
        %1697 = vmatpush1.msra.mxu0 %v1614
        %1698 = vmatprep.subr.mxu0 %v1617
        %1699 = vmatpush1.msra.mxu0 %v1616
        %1700 = vmatprep.subr.mxu0 %v1619
        %1701 = vmatpush1.msra.mxu0 %v1618
        %1702 = vmatprep.subr.mxu0 %v1621
        %1703 = vmatpush1.msra.mxu0 %v1620
        %1704 = vmatprep.subr.mxu0 %v1623
        %1705 = vmatpush1.msra.mxu0 %v1622
        %1706 = vmatprep.subr.mxu0 %v1625
        %1707 = vmatpush1.msra.mxu0 %v1624
        %1708 = vmatprep.subr.mxu0 %v1627
        %1709 = vmatpush1.msra.mxu0 %v1626
        %1710 = vmatprep.subr.mxu0 %v1629
        %1711 = vmatpush1.msra.mxu0 %v1628
        %1712 = vmatprep.subr.mxu0 %v1631
        %1713 = vmatpush1.msra.mxu0 %v1630
        %1714 = vmatprep.subr.mxu0 %v1633
        %1715 = vmatpush1.msra.mxu0 %v1632
        %1716 = vmatprep.subr.mxu0 %v1635
        %1717 = vmatpush1.msra.mxu0 %v1634
        %1718 = vmatprep.subr.mxu0 %v1637
        %1719 = vmatpush1.msra.mxu0 %v1636
        %1720 = vmatprep.subr.mxu0 %v1639
        %1721 = vmatpush1.msra.mxu0 %v1638
        %1722 = vmatprep.subr.mxu0 %v1641
        %1723 = vmatpush1.msra.mxu0 %v1640
        %1724 = vmatprep.subr.mxu0 %v1643
        %1725 = vmatpush1.msra.mxu0 %v1642
        %1726 = vmatprep.subr.mxu0 %v1645
        %1727 = vmatpush1.msra.mxu0 %v1644
        %1728 = vmatprep.subr.mxu0 %v1647
        %1729 = vmatpush1.msra.mxu0 %v1646
        %1730 = vmatprep.subr.mxu0 %v1649
        %1731 = vmatpush1.msra.mxu0 %v1648
        %1732 = vmatprep.subr.mxu0 %v1651
        %1733 = vmatpush1.msra.mxu0 %v1650
        %1734 = vmatprep.subr.mxu0 %v1653
        %1735 = vmatpush1.msra.mxu0 %v1652
        %1736 = vmatprep.subr.mxu0 %v1655
        %1737 = vmatpush1.msra.mxu0 %v1654
        %1738 = vmatprep.subr.mxu0 %v1657
        %1739 = vmatpush1.msra.mxu0 %v1656
        %1740 = vmatprep.subr.mxu0 %v1659
        %1741 = vmatpush1.msra.mxu0 %v1658
        %1742 = vmatprep.subr.mxu0 %v1661
        %1743 = vmatpush1.msra.mxu0 %v1660
        %1744 = vmatprep.subr.mxu0 %v1663
        %1745 = vmatpush1.msra.mxu0 %v1662
        %1746 = vmatprep.subr.mxu0 %v1665
        %1747 = vmatpush1.msra.mxu0 %v1664
        %1748 = vmatprep.mubr.f32.mxu0 %v1675
        %1749 = vmatmul.mubr.f32.gmra.mrb[0].mxu0 %v1672
        %v1750 = vpop.f32.mrb[0].mxu0
        %v1751 = vadd.f32 0.0, %v1750
        %v1752 = vpop.f32.mrb[0].mxu0
        %v1753 = vadd.f32 0.0, %v1752
        %1754 = vmatprep.mubr.f32.mxu0 %v1679
        %1755 = vmatmul.mubr.f32.gmra.mrb[0].mxu0 %v1677
        %v1756 = vpop.f32.mrb[0].mxu0
        %v1757 = vadd.f32 0.0, %v1756
        %v1758 = vpop.f32.mrb[0].mxu0
        %v1759 = vadd.f32 0.0, %v1758
        %1760 = vdwg.mxu0
        %v1761 = vadd.f32 %v1593, %v1751
        %v1762 = vadd.f32 %v1594, %v1753
        %v1763 = vadd.f32 %v1595, %v1757
        %v1764 = vadd.f32 %v1596, %v1759
        %v1765 = vld [vmem:[#allocation3] sm:$0xf0]
        %v1766 = vld [vmem:[#allocation3 + $0x8] sm:$0xf0]
        %v1767 = vld [vmem:[#allocation3 + $0x20] sm:$0xf]
        %v1768 = vld [vmem:[#allocation3 + $0x28] sm:$0xf]
        %s1769 = scalar_lea.vmem [#allocation6], 2048
        %v1770 = vld [vmem:[%s1769] sm:$0xff]
        %v1771 = vld [vmem:[%s1769 + $0x8] sm:$0xff]
        %v1772 = vld [vmem:[%s1769 + $0x10] sm:$0xff]
        %v1773 = vld [vmem:[%s1769 + $0x18] sm:$0xff]
        %v1774 = vld [vmem:[%s1769 + $0x20] sm:$0xff]
        %v1775 = vld [vmem:[%s1769 + $0x28] sm:$0xff]
        %v1776 = vld [vmem:[%s1769 + $0x30] sm:$0xff]
        %v1777 = vld [vmem:[%s1769 + $0x38] sm:$0xff]
        %v1778 = vld [vmem:[%s1769 + $0x40] sm:$0xff]
        %v1779 = vld [vmem:[%s1769 + $0x48] sm:$0xff]
        %v1780 = vld [vmem:[%s1769 + $0x50] sm:$0xff]
        %v1781 = vld [vmem:[%s1769 + $0x58] sm:$0xff]
        %v1782 = vld [vmem:[%s1769 + $0x60] sm:$0xff]
        %v1783 = vld [vmem:[%s1769 + $0x68] sm:$0xff]
        %v1784 = vld [vmem:[%s1769 + $0x70] sm:$0xff]
        %v1785 = vld [vmem:[%s1769 + $0x78] sm:$0xff]
        %v1786 = vld [vmem:[%s1769 + $0x80] sm:$0xff]
        %v1787 = vld [vmem:[%s1769 + $0x88] sm:$0xff]
        %v1788 = vld [vmem:[%s1769 + $0x90] sm:$0xff]
        %v1789 = vld [vmem:[%s1769 + $0x98] sm:$0xff]
        %v1790 = vld [vmem:[%s1769 + $0xa0] sm:$0xff]
        %v1791 = vld [vmem:[%s1769 + $0xa8] sm:$0xff]
        %v1792 = vld [vmem:[%s1769 + $0xb0] sm:$0xff]
        %v1793 = vld [vmem:[%s1769 + $0xb8] sm:$0xff]
        %v1794 = vld [vmem:[%s1769 + $0xc0] sm:$0xff]
        %v1795 = vld [vmem:[%s1769 + $0xc8] sm:$0xff]
        %v1796 = vld [vmem:[%s1769 + $0xd0] sm:$0xff]
        %v1797 = vld [vmem:[%s1769 + $0xd8] sm:$0xff]
        %v1798 = vld [vmem:[%s1769 + $0xe0] sm:$0xff]
        %v1799 = vld [vmem:[%s1769 + $0xe8] sm:$0xff]
        %v1800 = vld [vmem:[%s1769 + $0xf0] sm:$0xff]
        %v1801 = vld [vmem:[%s1769 + $0xf8] sm:$0xff]
        %v1802 = vld [vmem:[%s1769 + $0x100] sm:$0xff]
        %v1803 = vld [vmem:[%s1769 + $0x108] sm:$0xff]
        %v1804 = vld [vmem:[%s1769 + $0x110] sm:$0xff]
        %v1805 = vld [vmem:[%s1769 + $0x118] sm:$0xff]
        %v1806 = vld [vmem:[%s1769 + $0x120] sm:$0xff]
        %v1807 = vld [vmem:[%s1769 + $0x128] sm:$0xff]
        %v1808 = vld [vmem:[%s1769 + $0x130] sm:$0xff]
        %v1809 = vld [vmem:[%s1769 + $0x138] sm:$0xff]
        %v1810 = vld [vmem:[%s1769 + $0x140] sm:$0xff]
        %v1811 = vld [vmem:[%s1769 + $0x148] sm:$0xff]
        %v1812 = vld [vmem:[%s1769 + $0x150] sm:$0xff]
        %v1813 = vld [vmem:[%s1769 + $0x158] sm:$0xff]
        %v1814 = vld [vmem:[%s1769 + $0x160] sm:$0xff]
        %v1815 = vld [vmem:[%s1769 + $0x168] sm:$0xff]
        %v1816 = vld [vmem:[%s1769 + $0x170] sm:$0xff]
        %v1817 = vld [vmem:[%s1769 + $0x178] sm:$0xff]
        %v1818 = vld [vmem:[%s1769 + $0x180] sm:$0xff]
        %v1819 = vld [vmem:[%s1769 + $0x188] sm:$0xff]
        %v1820 = vld [vmem:[%s1769 + $0x190] sm:$0xff]
        %v1821 = vld [vmem:[%s1769 + $0x198] sm:$0xff]
        %v1822 = vld [vmem:[%s1769 + $0x1a0] sm:$0xff]
        %v1823 = vld [vmem:[%s1769 + $0x1a8] sm:$0xff]
        %v1824 = vld [vmem:[%s1769 + $0x1b0] sm:$0xff]
        %v1825 = vld [vmem:[%s1769 + $0x1b8] sm:$0xff]
        %v1826 = vld [vmem:[%s1769 + $0x1c0] sm:$0xff]
        %v1827 = vld [vmem:[%s1769 + $0x1c8] sm:$0xff]
        %v1828 = vld [vmem:[%s1769 + $0x1d0] sm:$0xff]
        %v1829 = vld [vmem:[%s1769 + $0x1d8] sm:$0xff]
        %v1830 = vld [vmem:[%s1769 + $0x1e0] sm:$0xff]
        %v1831 = vld [vmem:[%s1769 + $0x1e8] sm:$0xff]
        %v1832 = vld [vmem:[%s1769 + $0x1f0] sm:$0xff]
        %v1833 = vld [vmem:[%s1769 + $0x1f8] sm:$0xff]
        %v1838 = vrot.slane %v1765, 4
        %v1839 = vrot.slane %v1120, 4
        %v1840 = vsel %vm1000, %v1838, %v1839
        %v1841 = vrot.slane %v1766, 4
        %v1842 = vrot.slane %v1121, 4
        %v1843 = vsel %vm1000, %v1841, %v1842
        %v1844 = vrot.slane %v1767, 4
        %v1845 = vsel %vm1000, %v1839, %v1844
        %v1846 = vrot.slane %v1768, 4
        %v1847 = vsel %vm1000, %v1842, %v1846
        %1852 = vmatprep.subr.mxu0 %v1771
        %1853 = vmatpush1.msra.mxu0 %v1770
        %1854 = vmatprep.subr.mxu0 %v1773
        %1855 = vmatpush1.msra.mxu0 %v1772
        %1856 = vmatprep.subr.mxu0 %v1775
        %1857 = vmatpush1.msra.mxu0 %v1774
        %1858 = vmatprep.subr.mxu0 %v1777
        %1859 = vmatpush1.msra.mxu0 %v1776
        %1860 = vmatprep.subr.mxu0 %v1779
        %1861 = vmatpush1.msra.mxu0 %v1778
        %1862 = vmatprep.subr.mxu0 %v1781
        %1863 = vmatpush1.msra.mxu0 %v1780
        %1864 = vmatprep.subr.mxu0 %v1783
        %1865 = vmatpush1.msra.mxu0 %v1782
        %1866 = vmatprep.subr.mxu0 %v1785
        %1867 = vmatpush1.msra.mxu0 %v1784
        %1868 = vmatprep.subr.mxu0 %v1787
        %1869 = vmatpush1.msra.mxu0 %v1786
        %1870 = vmatprep.subr.mxu0 %v1789
        %1871 = vmatpush1.msra.mxu0 %v1788
        %1872 = vmatprep.subr.mxu0 %v1791
        %1873 = vmatpush1.msra.mxu0 %v1790
        %1874 = vmatprep.subr.mxu0 %v1793
        %1875 = vmatpush1.msra.mxu0 %v1792
        %1876 = vmatprep.subr.mxu0 %v1795
        %1877 = vmatpush1.msra.mxu0 %v1794
        %1878 = vmatprep.subr.mxu0 %v1797
        %1879 = vmatpush1.msra.mxu0 %v1796
        %1880 = vmatprep.subr.mxu0 %v1799
        %1881 = vmatpush1.msra.mxu0 %v1798
        %1882 = vmatprep.subr.mxu0 %v1801
        %1883 = vmatpush1.msra.mxu0 %v1800
        %1884 = vmatprep.subr.mxu0 %v1803
        %1885 = vmatpush1.msra.mxu0 %v1802
        %1886 = vmatprep.subr.mxu0 %v1805
        %1887 = vmatpush1.msra.mxu0 %v1804
        %1888 = vmatprep.subr.mxu0 %v1807
        %1889 = vmatpush1.msra.mxu0 %v1806
        %1890 = vmatprep.subr.mxu0 %v1809
        %1891 = vmatpush1.msra.mxu0 %v1808
        %1892 = vmatprep.subr.mxu0 %v1811
        %1893 = vmatpush1.msra.mxu0 %v1810
        %1894 = vmatprep.subr.mxu0 %v1813
        %1895 = vmatpush1.msra.mxu0 %v1812
        %1896 = vmatprep.subr.mxu0 %v1815
        %1897 = vmatpush1.msra.mxu0 %v1814
        %1898 = vmatprep.subr.mxu0 %v1817
        %1899 = vmatpush1.msra.mxu0 %v1816
        %1900 = vmatprep.subr.mxu0 %v1819
        %1901 = vmatpush1.msra.mxu0 %v1818
        %1902 = vmatprep.subr.mxu0 %v1821
        %1903 = vmatpush1.msra.mxu0 %v1820
        %1904 = vmatprep.subr.mxu0 %v1823
        %1905 = vmatpush1.msra.mxu0 %v1822
        %1906 = vmatprep.subr.mxu0 %v1825
        %1907 = vmatpush1.msra.mxu0 %v1824
        %1908 = vmatprep.subr.mxu0 %v1827
        %1909 = vmatpush1.msra.mxu0 %v1826
        %1910 = vmatprep.subr.mxu0 %v1829
        %1911 = vmatpush1.msra.mxu0 %v1828
        %1912 = vmatprep.subr.mxu0 %v1831
        %1913 = vmatpush1.msra.mxu0 %v1830
        %1914 = vmatprep.subr.mxu0 %v1833
        %1915 = vmatpush1.msra.mxu0 %v1832
        %1916 = vmatprep.mubr.f32.mxu0 %v1843
        %1917 = vmatmul.mubr.f32.gmra.mrb[0].mxu0 %v1840
        %v1918 = vpop.f32.mrb[0].mxu0
        %v1919 = vadd.f32 0.0, %v1918
        %v1920 = vpop.f32.mrb[0].mxu0
        %v1921 = vadd.f32 0.0, %v1920
        %1922 = vmatprep.mubr.f32.mxu0 %v1847
        %1923 = vmatmul.mubr.f32.gmra.mrb[0].mxu0 %v1845
        %v1924 = vpop.f32.mrb[0].mxu0
        %v1925 = vadd.f32 0.0, %v1924
        %v1926 = vpop.f32.mrb[0].mxu0
        %v1927 = vadd.f32 0.0, %v1926
        %1928 = vdwg.mxu0
        %v1929 = vadd.f32 %v1761, %v1919
        %v1930 = vadd.f32 %v1762, %v1921
        %v1931 = vadd.f32 %v1763, %v1925
        %v1932 = vadd.f32 %v1764, %v1927
        %v1937 = vrot.slane %v1929, 6
        %v1938 = vrot.slane %v1930, 6
        %v1939 = vrot.slane %v1931, 6
        %v1940 = vsel %vm258, %v1937, %v1939
        %v1941 = vrot.slane %v1932, 6
        %v1942 = vsel %vm258, %v1938, %v1941
        %1949 = vst [vmem:[#allocation3] sm:$0xfc] %v1937
        %1950 = vst [vmem:[#allocation3 + $0x8] sm:$0xfc] %v1938
        %1951 = vst [vmem:[#allocation3 + $0x10] sm:$0xff] %v1940
        %1952 = vst [vmem:[#allocation3 + $0x18] sm:$0xff] %v1942
        %1953 = vst [vmem:[#allocation3 + $0x20] sm:$0x3] %v1939
        %1954 = vst [vmem:[#allocation3 + $0x28] sm:$0x3] %v1941
        %v1955 = vld [vmem:[#allocation3] sm:$0xff]
        %v1956 = vld [vmem:[#allocation3 + $0x8] sm:$0xff]
        %v1957 = vld [vmem:[#allocation3 + $0x10] sm:$0xff]
        %v1958 = vld [vmem:[#allocation3 + $0x18] sm:$0xff]
        %v1959 = vld [vmem:[#allocation8] sm:$0xff]
        %v1960 = vld [vmem:[#allocation8 + $0x8] sm:$0xff]
        %v1961 = vld [vmem:[#allocation8 + $0x10] sm:$0xff]
        %v1962 = vld [vmem:[#allocation8 + $0x18] sm:$0xff]
        %v1963 = vld [vmem:[#allocation8 + $0x20] sm:$0xff]
        %v1964 = vld [vmem:[#allocation8 + $0x28] sm:$0xff]
        %v1965 = vld [vmem:[#allocation8 + $0x30] sm:$0xff]
        %v1966 = vld [vmem:[#allocation8 + $0x38] sm:$0xff]
        %v1967 = vld [vmem:[#allocation8 + $0x40] sm:$0xff]
        %v1968 = vld [vmem:[#allocation8 + $0x48] sm:$0xff]
        %v1969 = vld [vmem:[#allocation8 + $0x50] sm:$0xff]
        %v1970 = vld [vmem:[#allocation8 + $0x58] sm:$0xff]
        %v1971 = vld [vmem:[#allocation8 + $0x60] sm:$0xff]
        %v1972 = vld [vmem:[#allocation8 + $0x68] sm:$0xff]
        %v1973 = vld [vmem:[#allocation8 + $0x70] sm:$0xff]
        %v1974 = vld [vmem:[#allocation8 + $0x78] sm:$0xff]
        %v1975 = vld [vmem:[#allocation8 + $0x80] sm:$0xff]
        %v1976 = vld [vmem:[#allocation8 + $0x88] sm:$0xff]
        %v1977 = vld [vmem:[#allocation8 + $0x90] sm:$0xff]
        %v1978 = vld [vmem:[#allocation8 + $0x98] sm:$0xff]
        %v1979 = vld [vmem:[#allocation8 + $0xa0] sm:$0xff]
        %v1980 = vld [vmem:[#allocation8 + $0xa8] sm:$0xff]
        %v1981 = vld [vmem:[#allocation8 + $0xb0] sm:$0xff]
        %v1982 = vld [vmem:[#allocation8 + $0xb8] sm:$0xff]
        %v1983 = vld [vmem:[#allocation8 + $0xc0] sm:$0xff]
        %v1984 = vld [vmem:[#allocation8 + $0xc8] sm:$0xff]
        %v1985 = vld [vmem:[#allocation8 + $0xd0] sm:$0xff]
        %v1986 = vld [vmem:[#allocation8 + $0xd8] sm:$0xff]
        %v1987 = vld [vmem:[#allocation8 + $0xe0] sm:$0xff]
        %v1988 = vld [vmem:[#allocation8 + $0xe8] sm:$0xff]
        %v1989 = vld [vmem:[#allocation8 + $0xf0] sm:$0xff]
        %v1990 = vld [vmem:[#allocation8 + $0xf8] sm:$0xff]
        %v1991 = vld [vmem:[#allocation8 + $0x100] sm:$0xff]
        %v1992 = vld [vmem:[#allocation8 + $0x108] sm:$0xff]
        %v1993 = vld [vmem:[#allocation8 + $0x110] sm:$0xff]
        %v1994 = vld [vmem:[#allocation8 + $0x118] sm:$0xff]
        %v1995 = vld [vmem:[#allocation8 + $0x120] sm:$0xff]
        %v1996 = vld [vmem:[#allocation8 + $0x128] sm:$0xff]
        %v1997 = vld [vmem:[#allocation8 + $0x130] sm:$0xff]
        %v1998 = vld [vmem:[#allocation8 + $0x138] sm:$0xff]
        %v1999 = vld [vmem:[#allocation8 + $0x140] sm:$0xff]
        %v2000 = vld [vmem:[#allocation8 + $0x148] sm:$0xff]
        %v2001 = vld [vmem:[#allocation8 + $0x150] sm:$0xff]
        %v2002 = vld [vmem:[#allocation8 + $0x158] sm:$0xff]
        %v2003 = vld [vmem:[#allocation8 + $0x160] sm:$0xff]
        %v2004 = vld [vmem:[#allocation8 + $0x168] sm:$0xff]
        %v2005 = vld [vmem:[#allocation8 + $0x170] sm:$0xff]
        %v2006 = vld [vmem:[#allocation8 + $0x178] sm:$0xff]
        %v2007 = vld [vmem:[#allocation8 + $0x180] sm:$0xff]
        %v2008 = vld [vmem:[#allocation8 + $0x188] sm:$0xff]
        %v2009 = vld [vmem:[#allocation8 + $0x190] sm:$0xff]
        %v2010 = vld [vmem:[#allocation8 + $0x198] sm:$0xff]
        %v2011 = vld [vmem:[#allocation8 + $0x1a0] sm:$0xff]
        %v2012 = vld [vmem:[#allocation8 + $0x1a8] sm:$0xff]
        %v2013 = vld [vmem:[#allocation8 + $0x1b0] sm:$0xff]
        %v2014 = vld [vmem:[#allocation8 + $0x1b8] sm:$0xff]
        %v2015 = vld [vmem:[#allocation8 + $0x1c0] sm:$0xff]
        %v2016 = vld [vmem:[#allocation8 + $0x1c8] sm:$0xff]
        %v2017 = vld [vmem:[#allocation8 + $0x1d0] sm:$0xff]
        %v2018 = vld [vmem:[#allocation8 + $0x1d8] sm:$0xff]
        %v2019 = vld [vmem:[#allocation8 + $0x1e0] sm:$0xff]
        %v2020 = vld [vmem:[#allocation8 + $0x1e8] sm:$0xff]
        %v2021 = vld [vmem:[#allocation8 + $0x1f0] sm:$0xff]
        %v2022 = vld [vmem:[#allocation8 + $0x1f8] sm:$0xff]
        %v2023 = vld [vmem:[#allocation3] sm:$0xfe]
        %v2024 = vld [vmem:[#allocation3 + $0x8] sm:$0xfe]
        %v2025 = vld [vmem:[#allocation3 + $0x20] sm:$0x1]
        %v2026 = vld [vmem:[#allocation3 + $0x28] sm:$0x1]
        %s2027 = scalar_lea.vmem [#allocation8], 512
        %v2028 = vld [vmem:[%s2027] sm:$0xff]
        %v2029 = vld [vmem:[%s2027 + $0x8] sm:$0xff]
        %v2030 = vld [vmem:[%s2027 + $0x10] sm:$0xff]
        %v2031 = vld [vmem:[%s2027 + $0x18] sm:$0xff]
        %v2032 = vld [vmem:[%s2027 + $0x20] sm:$0xff]
        %v2033 = vld [vmem:[%s2027 + $0x28] sm:$0xff]
        %v2034 = vld [vmem:[%s2027 + $0x30] sm:$0xff]
        %v2035 = vld [vmem:[%s2027 + $0x38] sm:$0xff]
        %v2036 = vld [vmem:[%s2027 + $0x40] sm:$0xff]
        %v2037 = vld [vmem:[%s2027 + $0x48] sm:$0xff]
        %v2038 = vld [vmem:[%s2027 + $0x50] sm:$0xff]
        %v2039 = vld [vmem:[%s2027 + $0x58] sm:$0xff]
        %v2040 = vld [vmem:[%s2027 + $0x60] sm:$0xff]
        %v2041 = vld [vmem:[%s2027 + $0x68] sm:$0xff]
        %v2042 = vld [vmem:[%s2027 + $0x70] sm:$0xff]
        %v2043 = vld [vmem:[%s2027 + $0x78] sm:$0xff]
        %v2044 = vld [vmem:[%s2027 + $0x80] sm:$0xff]
        %v2045 = vld [vmem:[%s2027 + $0x88] sm:$0xff]
        %v2046 = vld [vmem:[%s2027 + $0x90] sm:$0xff]
        %v2047 = vld [vmem:[%s2027 + $0x98] sm:$0xff]
        %v2048 = vld [vmem:[%s2027 + $0xa0] sm:$0xff]
        %v2049 = vld [vmem:[%s2027 + $0xa8] sm:$0xff]
        %v2050 = vld [vmem:[%s2027 + $0xb0] sm:$0xff]
        %v2051 = vld [vmem:[%s2027 + $0xb8] sm:$0xff]
        %v2052 = vld [vmem:[%s2027 + $0xc0] sm:$0xff]
        %v2053 = vld [vmem:[%s2027 + $0xc8] sm:$0xff]
        %v2054 = vld [vmem:[%s2027 + $0xd0] sm:$0xff]
        %v2055 = vld [vmem:[%s2027 + $0xd8] sm:$0xff]
        %v2056 = vld [vmem:[%s2027 + $0xe0] sm:$0xff]
        %v2057 = vld [vmem:[%s2027 + $0xe8] sm:$0xff]
        %v2058 = vld [vmem:[%s2027 + $0xf0] sm:$0xff]
        %v2059 = vld [vmem:[%s2027 + $0xf8] sm:$0xff]
        %v2060 = vld [vmem:[%s2027 + $0x100] sm:$0xff]
        %v2061 = vld [vmem:[%s2027 + $0x108] sm:$0xff]
        %v2062 = vld [vmem:[%s2027 + $0x110] sm:$0xff]
        %v2063 = vld [vmem:[%s2027 + $0x118] sm:$0xff]
        %v2064 = vld [vmem:[%s2027 + $0x120] sm:$0xff]
        %v2065 = vld [vmem:[%s2027 + $0x128] sm:$0xff]
        %v2066 = vld [vmem:[%s2027 + $0x130] sm:$0xff]
        %v2067 = vld [vmem:[%s2027 + $0x138] sm:$0xff]
        %v2068 = vld [vmem:[%s2027 + $0x140] sm:$0xff]
        %v2069 = vld [vmem:[%s2027 + $0x148] sm:$0xff]
        %v2070 = vld [vmem:[%s2027 + $0x150] sm:$0xff]
        %v2071 = vld [vmem:[%s2027 + $0x158] sm:$0xff]
        %v2072 = vld [vmem:[%s2027 + $0x160] sm:$0xff]
        %v2073 = vld [vmem:[%s2027 + $0x168] sm:$0xff]
        %v2074 = vld [vmem:[%s2027 + $0x170] sm:$0xff]
        %v2075 = vld [vmem:[%s2027 + $0x178] sm:$0xff]
        %v2076 = vld [vmem:[%s2027 + $0x180] sm:$0xff]
        %v2077 = vld [vmem:[%s2027 + $0x188] sm:$0xff]
        %v2078 = vld [vmem:[%s2027 + $0x190] sm:$0xff]
        %v2079 = vld [vmem:[%s2027 + $0x198] sm:$0xff]
        %v2080 = vld [vmem:[%s2027 + $0x1a0] sm:$0xff]
        %v2081 = vld [vmem:[%s2027 + $0x1a8] sm:$0xff]
        %v2082 = vld [vmem:[%s2027 + $0x1b0] sm:$0xff]
        %v2083 = vld [vmem:[%s2027 + $0x1b8] sm:$0xff]
        %v2084 = vld [vmem:[%s2027 + $0x1c0] sm:$0xff]
        %v2085 = vld [vmem:[%s2027 + $0x1c8] sm:$0xff]
        %v2086 = vld [vmem:[%s2027 + $0x1d0] sm:$0xff]
        %v2087 = vld [vmem:[%s2027 + $0x1d8] sm:$0xff]
        %v2088 = vld [vmem:[%s2027 + $0x1e0] sm:$0xff]
        %v2089 = vld [vmem:[%s2027 + $0x1e8] sm:$0xff]
        %v2090 = vld [vmem:[%s2027 + $0x1f0] sm:$0xff]
        %v2091 = vld [vmem:[%s2027 + $0x1f8] sm:$0xff]
        %v2098 = vrot.slane %v2023, 1
        %v2099 = vrot.slane %v1957, 1
        %v2100 = vsel %vm420, %v2098, %v2099
        %v2101 = vrot.slane %v2024, 1
        %v2102 = vrot.slane %v1958, 1
        %v2103 = vsel %vm420, %v2101, %v2102
        %v2104 = vrot.slane %v2025, 1
        %v2105 = vsel %vm420, %v2099, %v2104
        %v2106 = vrot.slane %v2026, 1
        %v2107 = vsel %vm420, %v2102, %v2106
        %2112 = vmatprep.subr.mxu0 %v2029
        %2113 = vmatpush1.msra.mxu0 %v2028
        %2114 = vmatprep.subr.mxu0 %v2031
        %2115 = vmatpush1.msra.mxu0 %v2030
        %2116 = vmatprep.subr.mxu0 %v2033
        %2117 = vmatpush1.msra.mxu0 %v2032
        %2118 = vmatprep.subr.mxu0 %v2035
        %2119 = vmatpush1.msra.mxu0 %v2034
        %2120 = vmatprep.subr.mxu0 %v2037
        %2121 = vmatpush1.msra.mxu0 %v2036
        %2122 = vmatprep.subr.mxu0 %v2039
        %2123 = vmatpush1.msra.mxu0 %v2038
        %2124 = vmatprep.subr.mxu0 %v2041
        %2125 = vmatpush1.msra.mxu0 %v2040
        %2126 = vmatprep.subr.mxu0 %v2043
        %2127 = vmatpush1.msra.mxu0 %v2042
        %2128 = vmatprep.subr.mxu0 %v2045
        %2129 = vmatpush1.msra.mxu0 %v2044
        %2130 = vmatprep.subr.mxu0 %v2047
        %2131 = vmatpush1.msra.mxu0 %v2046
        %2132 = vmatprep.subr.mxu0 %v2049
        %2133 = vmatpush1.msra.mxu0 %v2048
        %2134 = vmatprep.subr.mxu0 %v2051
        %2135 = vmatpush1.msra.mxu0 %v2050
        %2136 = vmatprep.subr.mxu0 %v2053
        %2137 = vmatpush1.msra.mxu0 %v2052
        %2138 = vmatprep.subr.mxu0 %v2055
        %2139 = vmatpush1.msra.mxu0 %v2054
        %2140 = vmatprep.subr.mxu0 %v2057
        %2141 = vmatpush1.msra.mxu0 %v2056
        %2142 = vmatprep.subr.mxu0 %v2059
        %2143 = vmatpush1.msra.mxu0 %v2058
        %2144 = vmatprep.subr.mxu0 %v2061
        %2145 = vmatpush1.msra.mxu0 %v2060
        %2146 = vmatprep.subr.mxu0 %v2063
        %2147 = vmatpush1.msra.mxu0 %v2062
        %2148 = vmatprep.subr.mxu0 %v2065
        %2149 = vmatpush1.msra.mxu0 %v2064
        %2150 = vmatprep.subr.mxu0 %v2067
        %2151 = vmatpush1.msra.mxu0 %v2066
        %2152 = vmatprep.subr.mxu0 %v2069
        %2153 = vmatpush1.msra.mxu0 %v2068
        %2154 = vmatprep.subr.mxu0 %v2071
        %2155 = vmatpush1.msra.mxu0 %v2070
        %2156 = vmatprep.subr.mxu0 %v2073
        %2157 = vmatpush1.msra.mxu0 %v2072
        %2158 = vmatprep.subr.mxu0 %v2075
        %2159 = vmatpush1.msra.mxu0 %v2074
        %2160 = vmatprep.subr.mxu0 %v2077
        %2161 = vmatpush1.msra.mxu0 %v2076
        %2162 = vmatprep.subr.mxu0 %v2079
        %2163 = vmatpush1.msra.mxu0 %v2078
        %2164 = vmatprep.subr.mxu0 %v2081
        %2165 = vmatpush1.msra.mxu0 %v2080
        %2166 = vmatprep.subr.mxu0 %v2083
        %2167 = vmatpush1.msra.mxu0 %v2082
        %2168 = vmatprep.subr.mxu0 %v2085
        %2169 = vmatpush1.msra.mxu0 %v2084
        %2170 = vmatprep.subr.mxu0 %v2087
        %2171 = vmatpush1.msra.mxu0 %v2086
        %2172 = vmatprep.subr.mxu0 %v2089
        %2173 = vmatpush1.msra.mxu0 %v2088
        %2174 = vmatprep.subr.mxu0 %v2091
        %2175 = vmatpush1.msra.mxu0 %v2090
        %2176 = vmatprep.mubr.f32.mxu0 %v2103
        %2177 = vmatmul.mubr.f32.gmra.mrb[0].mxu0 %v2100
        %v2178 = vpop.f32.mrb[0].mxu0
        %v2179 = vadd.f32 0.0, %v2178
        %v2180 = vpop.f32.mrb[0].mxu0
        %v2181 = vadd.f32 0.0, %v2180
        %2182 = vmatprep.mubr.f32.mxu0 %v2107
        %2183 = vmatmul.mubr.f32.gmra.mrb[0].mxu0 %v2105
        %v2184 = vpop.f32.mrb[0].mxu0
        %v2185 = vadd.f32 0.0, %v2184
        %v2186 = vpop.f32.mrb[0].mxu0
        %v2187 = vadd.f32 0.0, %v2186
        %2188 = vdwg.mxu0
        %2189 = vmatprep.subr.mxu0 %v1960
        %2190 = vmatpush1.msra.mxu0 %v1959
        %2191 = vmatprep.subr.mxu0 %v1962
        %2192 = vmatpush1.msra.mxu0 %v1961
        %2193 = vmatprep.subr.mxu0 %v1964
        %2194 = vmatpush1.msra.mxu0 %v1963
        %2195 = vmatprep.subr.mxu0 %v1966
        %2196 = vmatpush1.msra.mxu0 %v1965
        %2197 = vmatprep.subr.mxu0 %v1968
        %2198 = vmatpush1.msra.mxu0 %v1967
        %2199 = vmatprep.subr.mxu0 %v1970
        %2200 = vmatpush1.msra.mxu0 %v1969
        %2201 = vmatprep.subr.mxu0 %v1972
        %2202 = vmatpush1.msra.mxu0 %v1971
        %2203 = vmatprep.subr.mxu0 %v1974
        %2204 = vmatpush1.msra.mxu0 %v1973
        %2205 = vmatprep.subr.mxu0 %v1976
        %2206 = vmatpush1.msra.mxu0 %v1975
        %2207 = vmatprep.subr.mxu0 %v1978
        %2208 = vmatpush1.msra.mxu0 %v1977
        %2209 = vmatprep.subr.mxu0 %v1980
        %2210 = vmatpush1.msra.mxu0 %v1979
        %2211 = vmatprep.subr.mxu0 %v1982
        %2212 = vmatpush1.msra.mxu0 %v1981
        %2213 = vmatprep.subr.mxu0 %v1984
        %2214 = vmatpush1.msra.mxu0 %v1983
        %2215 = vmatprep.subr.mxu0 %v1986
        %2216 = vmatpush1.msra.mxu0 %v1985
        %2217 = vmatprep.subr.mxu0 %v1988
        %2218 = vmatpush1.msra.mxu0 %v1987
        %2219 = vmatprep.subr.mxu0 %v1990
        %2220 = vmatpush1.msra.mxu0 %v1989
        %2221 = vmatprep.subr.mxu0 %v1992
        %2222 = vmatpush1.msra.mxu0 %v1991
        %2223 = vmatprep.subr.mxu0 %v1994
        %2224 = vmatpush1.msra.mxu0 %v1993
        %2225 = vmatprep.subr.mxu0 %v1996
        %2226 = vmatpush1.msra.mxu0 %v1995
        %2227 = vmatprep.subr.mxu0 %v1998
        %2228 = vmatpush1.msra.mxu0 %v1997
        %2229 = vmatprep.subr.mxu0 %v2000
        %2230 = vmatpush1.msra.mxu0 %v1999
        %2231 = vmatprep.subr.mxu0 %v2002
        %2232 = vmatpush1.msra.mxu0 %v2001
        %2233 = vmatprep.subr.mxu0 %v2004
        %2234 = vmatpush1.msra.mxu0 %v2003
        %2235 = vmatprep.subr.mxu0 %v2006
        %2236 = vmatpush1.msra.mxu0 %v2005
        %2237 = vmatprep.subr.mxu0 %v2008
        %2238 = vmatpush1.msra.mxu0 %v2007
        %2239 = vmatprep.subr.mxu0 %v2010
        %2240 = vmatpush1.msra.mxu0 %v2009
        %2241 = vmatprep.subr.mxu0 %v2012
        %2242 = vmatpush1.msra.mxu0 %v2011
        %2243 = vmatprep.subr.mxu0 %v2014
        %2244 = vmatpush1.msra.mxu0 %v2013
        %2245 = vmatprep.subr.mxu0 %v2016
        %2246 = vmatpush1.msra.mxu0 %v2015
        %2247 = vmatprep.subr.mxu0 %v2018
        %2248 = vmatpush1.msra.mxu0 %v2017
        %2249 = vmatprep.subr.mxu0 %v2020
        %2250 = vmatpush1.msra.mxu0 %v2019
        %2251 = vmatprep.subr.mxu0 %v2022
        %2252 = vmatpush1.msra.mxu0 %v2021
        %2253 = vmatprep.mubr.f32.mxu0 %v1956
        %2254 = vmatmul.mubr.f32.gmra.mrb[0].mxu0 %v1955
        %v2255 = vpop.f32.mrb[0].mxu0
        %v2256 = vadd.f32 %v2179, %v2255
        %v2257 = vpop.f32.mrb[0].mxu0
        %v2258 = vadd.f32 %v2181, %v2257
        %2259 = vmatprep.mubr.f32.mxu0 %v1958
        %2260 = vmatmul.mubr.f32.gmra.mrb[0].mxu0 %v1957
        %v2261 = vpop.f32.mrb[0].mxu0
        %v2262 = vadd.f32 %v2185, %v2261
        %v2263 = vpop.f32.mrb[0].mxu0
        %v2264 = vadd.f32 %v2187, %v2263
        %2265 = vdwg.mxu0
        %v2266 = vld [vmem:[#allocation3] sm:$0xfc]
        %v2267 = vld [vmem:[#allocation3 + $0x8] sm:$0xfc]
        %v2268 = vld [vmem:[#allocation3 + $0x20] sm:$0x3]
        %v2269 = vld [vmem:[#allocation3 + $0x28] sm:$0x3]
        %s2270 = scalar_lea.vmem [#allocation8], 1024
        %v2271 = vld [vmem:[%s2270] sm:$0xff]
        %v2272 = vld [vmem:[%s2270 + $0x8] sm:$0xff]
        %v2273 = vld [vmem:[%s2270 + $0x10] sm:$0xff]
        %v2274 = vld [vmem:[%s2270 + $0x18] sm:$0xff]
        %v2275 = vld [vmem:[%s2270 + $0x20] sm:$0xff]
        %v2276 = vld [vmem:[%s2270 + $0x28] sm:$0xff]
        %v2277 = vld [vmem:[%s2270 + $0x30] sm:$0xff]
        %v2278 = vld [vmem:[%s2270 + $0x38] sm:$0xff]
        %v2279 = vld [vmem:[%s2270 + $0x40] sm:$0xff]
        %v2280 = vld [vmem:[%s2270 + $0x48] sm:$0xff]
        %v2281 = vld [vmem:[%s2270 + $0x50] sm:$0xff]
        %v2282 = vld [vmem:[%s2270 + $0x58] sm:$0xff]
        %v2283 = vld [vmem:[%s2270 + $0x60] sm:$0xff]
        %v2284 = vld [vmem:[%s2270 + $0x68] sm:$0xff]
        %v2285 = vld [vmem:[%s2270 + $0x70] sm:$0xff]
        %v2286 = vld [vmem:[%s2270 + $0x78] sm:$0xff]
        %v2287 = vld [vmem:[%s2270 + $0x80] sm:$0xff]
        %v2288 = vld [vmem:[%s2270 + $0x88] sm:$0xff]
        %v2289 = vld [vmem:[%s2270 + $0x90] sm:$0xff]
        %v2290 = vld [vmem:[%s2270 + $0x98] sm:$0xff]
        %v2291 = vld [vmem:[%s2270 + $0xa0] sm:$0xff]
        %v2292 = vld [vmem:[%s2270 + $0xa8] sm:$0xff]
        %v2293 = vld [vmem:[%s2270 + $0xb0] sm:$0xff]
        %v2294 = vld [vmem:[%s2270 + $0xb8] sm:$0xff]
        %v2295 = vld [vmem:[%s2270 + $0xc0] sm:$0xff]
        %v2296 = vld [vmem:[%s2270 + $0xc8] sm:$0xff]
        %v2297 = vld [vmem:[%s2270 + $0xd0] sm:$0xff]
        %v2298 = vld [vmem:[%s2270 + $0xd8] sm:$0xff]
        %v2299 = vld [vmem:[%s2270 + $0xe0] sm:$0xff]
        %v2300 = vld [vmem:[%s2270 + $0xe8] sm:$0xff]
        %v2301 = vld [vmem:[%s2270 + $0xf0] sm:$0xff]
        %v2302 = vld [vmem:[%s2270 + $0xf8] sm:$0xff]
        %v2303 = vld [vmem:[%s2270 + $0x100] sm:$0xff]
        %v2304 = vld [vmem:[%s2270 + $0x108] sm:$0xff]
        %v2305 = vld [vmem:[%s2270 + $0x110] sm:$0xff]
        %v2306 = vld [vmem:[%s2270 + $0x118] sm:$0xff]
        %v2307 = vld [vmem:[%s2270 + $0x120] sm:$0xff]
        %v2308 = vld [vmem:[%s2270 + $0x128] sm:$0xff]
        %v2309 = vld [vmem:[%s2270 + $0x130] sm:$0xff]
        %v2310 = vld [vmem:[%s2270 + $0x138] sm:$0xff]
        %v2311 = vld [vmem:[%s2270 + $0x140] sm:$0xff]
        %v2312 = vld [vmem:[%s2270 + $0x148] sm:$0xff]
        %v2313 = vld [vmem:[%s2270 + $0x150] sm:$0xff]
        %v2314 = vld [vmem:[%s2270 + $0x158] sm:$0xff]
        %v2315 = vld [vmem:[%s2270 + $0x160] sm:$0xff]
        %v2316 = vld [vmem:[%s2270 + $0x168] sm:$0xff]
        %v2317 = vld [vmem:[%s2270 + $0x170] sm:$0xff]
        %v2318 = vld [vmem:[%s2270 + $0x178] sm:$0xff]
        %v2319 = vld [vmem:[%s2270 + $0x180] sm:$0xff]
        %v2320 = vld [vmem:[%s2270 + $0x188] sm:$0xff]
        %v2321 = vld [vmem:[%s2270 + $0x190] sm:$0xff]
        %v2322 = vld [vmem:[%s2270 + $0x198] sm:$0xff]
        %v2323 = vld [vmem:[%s2270 + $0x1a0] sm:$0xff]
        %v2324 = vld [vmem:[%s2270 + $0x1a8] sm:$0xff]
        %v2325 = vld [vmem:[%s2270 + $0x1b0] sm:$0xff]
        %v2326 = vld [vmem:[%s2270 + $0x1b8] sm:$0xff]
        %v2327 = vld [vmem:[%s2270 + $0x1c0] sm:$0xff]
        %v2328 = vld [vmem:[%s2270 + $0x1c8] sm:$0xff]
        %v2329 = vld [vmem:[%s2270 + $0x1d0] sm:$0xff]
        %v2330 = vld [vmem:[%s2270 + $0x1d8] sm:$0xff]
        %v2331 = vld [vmem:[%s2270 + $0x1e0] sm:$0xff]
        %v2332 = vld [vmem:[%s2270 + $0x1e8] sm:$0xff]
        %v2333 = vld [vmem:[%s2270 + $0x1f0] sm:$0xff]
        %v2334 = vld [vmem:[%s2270 + $0x1f8] sm:$0xff]
        %v2339 = vrot.slane %v2266, 2
        %v2340 = vrot.slane %v1957, 2
        %v2341 = vsel %vm662, %v2339, %v2340
        %v2342 = vrot.slane %v2267, 2
        %v2343 = vrot.slane %v1958, 2
        %v2344 = vsel %vm662, %v2342, %v2343
        %v2345 = vrot.slane %v2268, 2
        %v2346 = vsel %vm662, %v2340, %v2345
        %v2347 = vrot.slane %v2269, 2
        %v2348 = vsel %vm662, %v2343, %v2347
        %2353 = vmatprep.subr.mxu0 %v2272
        %2354 = vmatpush1.msra.mxu0 %v2271
        %2355 = vmatprep.subr.mxu0 %v2274
        %2356 = vmatpush1.msra.mxu0 %v2273
        %2357 = vmatprep.subr.mxu0 %v2276
        %2358 = vmatpush1.msra.mxu0 %v2275
        %2359 = vmatprep.subr.mxu0 %v2278
        %2360 = vmatpush1.msra.mxu0 %v2277
        %2361 = vmatprep.subr.mxu0 %v2280
        %2362 = vmatpush1.msra.mxu0 %v2279
        %2363 = vmatprep.subr.mxu0 %v2282
        %2364 = vmatpush1.msra.mxu0 %v2281
        %2365 = vmatprep.subr.mxu0 %v2284
        %2366 = vmatpush1.msra.mxu0 %v2283
        %2367 = vmatprep.subr.mxu0 %v2286
        %2368 = vmatpush1.msra.mxu0 %v2285
        %2369 = vmatprep.subr.mxu0 %v2288
        %2370 = vmatpush1.msra.mxu0 %v2287
        %2371 = vmatprep.subr.mxu0 %v2290
        %2372 = vmatpush1.msra.mxu0 %v2289
        %2373 = vmatprep.subr.mxu0 %v2292
        %2374 = vmatpush1.msra.mxu0 %v2291
        %2375 = vmatprep.subr.mxu0 %v2294
        %2376 = vmatpush1.msra.mxu0 %v2293
        %2377 = vmatprep.subr.mxu0 %v2296
        %2378 = vmatpush1.msra.mxu0 %v2295
        %2379 = vmatprep.subr.mxu0 %v2298
        %2380 = vmatpush1.msra.mxu0 %v2297
        %2381 = vmatprep.subr.mxu0 %v2300
        %2382 = vmatpush1.msra.mxu0 %v2299
        %2383 = vmatprep.subr.mxu0 %v2302
        %2384 = vmatpush1.msra.mxu0 %v2301
        %2385 = vmatprep.subr.mxu0 %v2304
        %2386 = vmatpush1.msra.mxu0 %v2303
        %2387 = vmatprep.subr.mxu0 %v2306
        %2388 = vmatpush1.msra.mxu0 %v2305
        %2389 = vmatprep.subr.mxu0 %v2308
        %2390 = vmatpush1.msra.mxu0 %v2307
        %2391 = vmatprep.subr.mxu0 %v2310
        %2392 = vmatpush1.msra.mxu0 %v2309
        %2393 = vmatprep.subr.mxu0 %v2312
        %2394 = vmatpush1.msra.mxu0 %v2311
        %2395 = vmatprep.subr.mxu0 %v2314
        %2396 = vmatpush1.msra.mxu0 %v2313
        %2397 = vmatprep.subr.mxu0 %v2316
        %2398 = vmatpush1.msra.mxu0 %v2315
        %2399 = vmatprep.subr.mxu0 %v2318
        %2400 = vmatpush1.msra.mxu0 %v2317
        %2401 = vmatprep.subr.mxu0 %v2320
        %2402 = vmatpush1.msra.mxu0 %v2319
        %2403 = vmatprep.subr.mxu0 %v2322
        %2404 = vmatpush1.msra.mxu0 %v2321
        %2405 = vmatprep.subr.mxu0 %v2324
        %2406 = vmatpush1.msra.mxu0 %v2323
        %2407 = vmatprep.subr.mxu0 %v2326
        %2408 = vmatpush1.msra.mxu0 %v2325
        %2409 = vmatprep.subr.mxu0 %v2328
        %2410 = vmatpush1.msra.mxu0 %v2327
        %2411 = vmatprep.subr.mxu0 %v2330
        %2412 = vmatpush1.msra.mxu0 %v2329
        %2413 = vmatprep.subr.mxu0 %v2332
        %2414 = vmatpush1.msra.mxu0 %v2331
        %2415 = vmatprep.subr.mxu0 %v2334
        %2416 = vmatpush1.msra.mxu0 %v2333
        %2417 = vmatprep.mubr.f32.mxu0 %v2344
        %2418 = vmatmul.mubr.f32.gmra.mrb[0].mxu0 %v2341
        %v2419 = vpop.f32.mrb[0].mxu0
        %v2420 = vadd.f32 0.0, %v2419
        %v2421 = vpop.f32.mrb[0].mxu0
        %v2422 = vadd.f32 0.0, %v2421
        %2423 = vmatprep.mubr.f32.mxu0 %v2348
        %2424 = vmatmul.mubr.f32.gmra.mrb[0].mxu0 %v2346
        %v2425 = vpop.f32.mrb[0].mxu0
        %v2426 = vadd.f32 0.0, %v2425
        %v2427 = vpop.f32.mrb[0].mxu0
        %v2428 = vadd.f32 0.0, %v2427
        %2429 = vdwg.mxu0
        %v2430 = vadd.f32 %v2256, %v2420
        %v2431 = vadd.f32 %v2258, %v2422
        %v2432 = vadd.f32 %v2262, %v2426
        %v2433 = vadd.f32 %v2264, %v2428
        %v2434 = vld [vmem:[#allocation3] sm:$0xf8]
        %v2435 = vld [vmem:[#allocation3 + $0x8] sm:$0xf8]
        %v2436 = vld [vmem:[#allocation3 + $0x20] sm:$0x7]
        %v2437 = vld [vmem:[#allocation3 + $0x28] sm:$0x7]
        %s2438 = scalar_lea.vmem [#allocation8], 1536
        %v2439 = vld [vmem:[%s2438] sm:$0xff]
        %v2440 = vld [vmem:[%s2438 + $0x8] sm:$0xff]
        %v2441 = vld [vmem:[%s2438 + $0x10] sm:$0xff]
        %v2442 = vld [vmem:[%s2438 + $0x18] sm:$0xff]
        %v2443 = vld [vmem:[%s2438 + $0x20] sm:$0xff]
        %v2444 = vld [vmem:[%s2438 + $0x28] sm:$0xff]
        %v2445 = vld [vmem:[%s2438 + $0x30] sm:$0xff]
        %v2446 = vld [vmem:[%s2438 + $0x38] sm:$0xff]
        %v2447 = vld [vmem:[%s2438 + $0x40] sm:$0xff]
        %v2448 = vld [vmem:[%s2438 + $0x48] sm:$0xff]
        %v2449 = vld [vmem:[%s2438 + $0x50] sm:$0xff]
        %v2450 = vld [vmem:[%s2438 + $0x58] sm:$0xff]
        %v2451 = vld [vmem:[%s2438 + $0x60] sm:$0xff]
        %v2452 = vld [vmem:[%s2438 + $0x68] sm:$0xff]
        %v2453 = vld [vmem:[%s2438 + $0x70] sm:$0xff]
        %v2454 = vld [vmem:[%s2438 + $0x78] sm:$0xff]
        %v2455 = vld [vmem:[%s2438 + $0x80] sm:$0xff]
        %v2456 = vld [vmem:[%s2438 + $0x88] sm:$0xff]
        %v2457 = vld [vmem:[%s2438 + $0x90] sm:$0xff]
        %v2458 = vld [vmem:[%s2438 + $0x98] sm:$0xff]
        %v2459 = vld [vmem:[%s2438 + $0xa0] sm:$0xff]
        %v2460 = vld [vmem:[%s2438 + $0xa8] sm:$0xff]
        %v2461 = vld [vmem:[%s2438 + $0xb0] sm:$0xff]
        %v2462 = vld [vmem:[%s2438 + $0xb8] sm:$0xff]
        %v2463 = vld [vmem:[%s2438 + $0xc0] sm:$0xff]
        %v2464 = vld [vmem:[%s2438 + $0xc8] sm:$0xff]
        %v2465 = vld [vmem:[%s2438 + $0xd0] sm:$0xff]
        %v2466 = vld [vmem:[%s2438 + $0xd8] sm:$0xff]
        %v2467 = vld [vmem:[%s2438 + $0xe0] sm:$0xff]
        %v2468 = vld [vmem:[%s2438 + $0xe8] sm:$0xff]
        %v2469 = vld [vmem:[%s2438 + $0xf0] sm:$0xff]
        %v2470 = vld [vmem:[%s2438 + $0xf8] sm:$0xff]
        %v2471 = vld [vmem:[%s2438 + $0x100] sm:$0xff]
        %v2472 = vld [vmem:[%s2438 + $0x108] sm:$0xff]
        %v2473 = vld [vmem:[%s2438 + $0x110] sm:$0xff]
        %v2474 = vld [vmem:[%s2438 + $0x118] sm:$0xff]
        %v2475 = vld [vmem:[%s2438 + $0x120] sm:$0xff]
        %v2476 = vld [vmem:[%s2438 + $0x128] sm:$0xff]
        %v2477 = vld [vmem:[%s2438 + $0x130] sm:$0xff]
        %v2478 = vld [vmem:[%s2438 + $0x138] sm:$0xff]
        %v2479 = vld [vmem:[%s2438 + $0x140] sm:$0xff]
        %v2480 = vld [vmem:[%s2438 + $0x148] sm:$0xff]
        %v2481 = vld [vmem:[%s2438 + $0x150] sm:$0xff]
        %v2482 = vld [vmem:[%s2438 + $0x158] sm:$0xff]
        %v2483 = vld [vmem:[%s2438 + $0x160] sm:$0xff]
        %v2484 = vld [vmem:[%s2438 + $0x168] sm:$0xff]
        %v2485 = vld [vmem:[%s2438 + $0x170] sm:$0xff]
        %v2486 = vld [vmem:[%s2438 + $0x178] sm:$0xff]
        %v2487 = vld [vmem:[%s2438 + $0x180] sm:$0xff]
        %v2488 = vld [vmem:[%s2438 + $0x188] sm:$0xff]
        %v2489 = vld [vmem:[%s2438 + $0x190] sm:$0xff]
        %v2490 = vld [vmem:[%s2438 + $0x198] sm:$0xff]
        %v2491 = vld [vmem:[%s2438 + $0x1a0] sm:$0xff]
        %v2492 = vld [vmem:[%s2438 + $0x1a8] sm:$0xff]
        %v2493 = vld [vmem:[%s2438 + $0x1b0] sm:$0xff]
        %v2494 = vld [vmem:[%s2438 + $0x1b8] sm:$0xff]
        %v2495 = vld [vmem:[%s2438 + $0x1c0] sm:$0xff]
        %v2496 = vld [vmem:[%s2438 + $0x1c8] sm:$0xff]
        %v2497 = vld [vmem:[%s2438 + $0x1d0] sm:$0xff]
        %v2498 = vld [vmem:[%s2438 + $0x1d8] sm:$0xff]
        %v2499 = vld [vmem:[%s2438 + $0x1e0] sm:$0xff]
        %v2500 = vld [vmem:[%s2438 + $0x1e8] sm:$0xff]
        %v2501 = vld [vmem:[%s2438 + $0x1f0] sm:$0xff]
        %v2502 = vld [vmem:[%s2438 + $0x1f8] sm:$0xff]
        %v2507 = vrot.slane %v2434, 3
        %v2508 = vrot.slane %v1957, 3
        %v2509 = vsel %vm831, %v2507, %v2508
        %v2510 = vrot.slane %v2435, 3
        %v2511 = vrot.slane %v1958, 3
        %v2512 = vsel %vm831, %v2510, %v2511
        %v2513 = vrot.slane %v2436, 3
        %v2514 = vsel %vm831, %v2508, %v2513
        %v2515 = vrot.slane %v2437, 3
        %v2516 = vsel %vm831, %v2511, %v2515
        %2521 = vmatprep.subr.mxu0 %v2440
        %2522 = vmatpush1.msra.mxu0 %v2439
        %2523 = vmatprep.subr.mxu0 %v2442
        %2524 = vmatpush1.msra.mxu0 %v2441
        %2525 = vmatprep.subr.mxu0 %v2444
        %2526 = vmatpush1.msra.mxu0 %v2443
        %2527 = vmatprep.subr.mxu0 %v2446
        %2528 = vmatpush1.msra.mxu0 %v2445
        %2529 = vmatprep.subr.mxu0 %v2448
        %2530 = vmatpush1.msra.mxu0 %v2447
        %2531 = vmatprep.subr.mxu0 %v2450
        %2532 = vmatpush1.msra.mxu0 %v2449
        %2533 = vmatprep.subr.mxu0 %v2452
        %2534 = vmatpush1.msra.mxu0 %v2451
        %2535 = vmatprep.subr.mxu0 %v2454
        %2536 = vmatpush1.msra.mxu0 %v2453
        %2537 = vmatprep.subr.mxu0 %v2456
        %2538 = vmatpush1.msra.mxu0 %v2455
        %2539 = vmatprep.subr.mxu0 %v2458
        %2540 = vmatpush1.msra.mxu0 %v2457
        %2541 = vmatprep.subr.mxu0 %v2460
        %2542 = vmatpush1.msra.mxu0 %v2459
        %2543 = vmatprep.subr.mxu0 %v2462
        %2544 = vmatpush1.msra.mxu0 %v2461
        %2545 = vmatprep.subr.mxu0 %v2464
        %2546 = vmatpush1.msra.mxu0 %v2463
        %2547 = vmatprep.subr.mxu0 %v2466
        %2548 = vmatpush1.msra.mxu0 %v2465
        %2549 = vmatprep.subr.mxu0 %v2468
        %2550 = vmatpush1.msra.mxu0 %v2467
        %2551 = vmatprep.subr.mxu0 %v2470
        %2552 = vmatpush1.msra.mxu0 %v2469
        %2553 = vmatprep.subr.mxu0 %v2472
        %2554 = vmatpush1.msra.mxu0 %v2471
        %2555 = vmatprep.subr.mxu0 %v2474
        %2556 = vmatpush1.msra.mxu0 %v2473
        %2557 = vmatprep.subr.mxu0 %v2476
        %2558 = vmatpush1.msra.mxu0 %v2475
        %2559 = vmatprep.subr.mxu0 %v2478
        %2560 = vmatpush1.msra.mxu0 %v2477
        %2561 = vmatprep.subr.mxu0 %v2480
        %2562 = vmatpush1.msra.mxu0 %v2479
        %2563 = vmatprep.subr.mxu0 %v2482
        %2564 = vmatpush1.msra.mxu0 %v2481
        %2565 = vmatprep.subr.mxu0 %v2484
        %2566 = vmatpush1.msra.mxu0 %v2483
        %2567 = vmatprep.subr.mxu0 %v2486
        %2568 = vmatpush1.msra.mxu0 %v2485
        %2569 = vmatprep.subr.mxu0 %v2488
        %2570 = vmatpush1.msra.mxu0 %v2487
        %2571 = vmatprep.subr.mxu0 %v2490
        %2572 = vmatpush1.msra.mxu0 %v2489
        %2573 = vmatprep.subr.mxu0 %v2492
        %2574 = vmatpush1.msra.mxu0 %v2491
        %2575 = vmatprep.subr.mxu0 %v2494
        %2576 = vmatpush1.msra.mxu0 %v2493
        %2577 = vmatprep.subr.mxu0 %v2496
        %2578 = vmatpush1.msra.mxu0 %v2495
        %2579 = vmatprep.subr.mxu0 %v2498
        %2580 = vmatpush1.msra.mxu0 %v2497
        %2581 = vmatprep.subr.mxu0 %v2500
        %2582 = vmatpush1.msra.mxu0 %v2499
        %2583 = vmatprep.subr.mxu0 %v2502
        %2584 = vmatpush1.msra.mxu0 %v2501
        %2585 = vmatprep.mubr.f32.mxu0 %v2512
        %2586 = vmatmul.mubr.f32.gmra.mrb[0].mxu0 %v2509
        %v2587 = vpop.f32.mrb[0].mxu0
        %v2588 = vadd.f32 0.0, %v2587
        %v2589 = vpop.f32.mrb[0].mxu0
        %v2590 = vadd.f32 0.0, %v2589
        %2591 = vmatprep.mubr.f32.mxu0 %v2516
        %2592 = vmatmul.mubr.f32.gmra.mrb[0].mxu0 %v2514
        %v2593 = vpop.f32.mrb[0].mxu0
        %v2594 = vadd.f32 0.0, %v2593
        %v2595 = vpop.f32.mrb[0].mxu0
        %v2596 = vadd.f32 0.0, %v2595
        %2597 = vdwg.mxu0
        %v2598 = vadd.f32 %v2430, %v2588
        %v2599 = vadd.f32 %v2431, %v2590
        %v2600 = vadd.f32 %v2432, %v2594
        %v2601 = vadd.f32 %v2433, %v2596
        %v2602 = vld [vmem:[#allocation3] sm:$0xf0]
        %v2603 = vld [vmem:[#allocation3 + $0x8] sm:$0xf0]
        %v2604 = vld [vmem:[#allocation3 + $0x20] sm:$0xf]
        %v2605 = vld [vmem:[#allocation3 + $0x28] sm:$0xf]
        %s2606 = scalar_lea.vmem [#allocation8], 2048
        %v2607 = vld [vmem:[%s2606] sm:$0xff]
        %v2608 = vld [vmem:[%s2606 + $0x8] sm:$0xff]
        %v2609 = vld [vmem:[%s2606 + $0x10] sm:$0xff]
        %v2610 = vld [vmem:[%s2606 + $0x18] sm:$0xff]
        %v2611 = vld [vmem:[%s2606 + $0x20] sm:$0xff]
        %v2612 = vld [vmem:[%s2606 + $0x28] sm:$0xff]
        %v2613 = vld [vmem:[%s2606 + $0x30] sm:$0xff]
        %v2614 = vld [vmem:[%s2606 + $0x38] sm:$0xff]
        %v2615 = vld [vmem:[%s2606 + $0x40] sm:$0xff]
        %v2616 = vld [vmem:[%s2606 + $0x48] sm:$0xff]
        %v2617 = vld [vmem:[%s2606 + $0x50] sm:$0xff]
        %v2618 = vld [vmem:[%s2606 + $0x58] sm:$0xff]
        %v2619 = vld [vmem:[%s2606 + $0x60] sm:$0xff]
        %v2620 = vld [vmem:[%s2606 + $0x68] sm:$0xff]
        %v2621 = vld [vmem:[%s2606 + $0x70] sm:$0xff]
        %v2622 = vld [vmem:[%s2606 + $0x78] sm:$0xff]
        %v2623 = vld [vmem:[%s2606 + $0x80] sm:$0xff]
        %v2624 = vld [vmem:[%s2606 + $0x88] sm:$0xff]
        %v2625 = vld [vmem:[%s2606 + $0x90] sm:$0xff]
        %v2626 = vld [vmem:[%s2606 + $0x98] sm:$0xff]
        %v2627 = vld [vmem:[%s2606 + $0xa0] sm:$0xff]
        %v2628 = vld [vmem:[%s2606 + $0xa8] sm:$0xff]
        %v2629 = vld [vmem:[%s2606 + $0xb0] sm:$0xff]
        %v2630 = vld [vmem:[%s2606 + $0xb8] sm:$0xff]
        %v2631 = vld [vmem:[%s2606 + $0xc0] sm:$0xff]
        %v2632 = vld [vmem:[%s2606 + $0xc8] sm:$0xff]
        %v2633 = vld [vmem:[%s2606 + $0xd0] sm:$0xff]
        %v2634 = vld [vmem:[%s2606 + $0xd8] sm:$0xff]
        %v2635 = vld [vmem:[%s2606 + $0xe0] sm:$0xff]
        %v2636 = vld [vmem:[%s2606 + $0xe8] sm:$0xff]
        %v2637 = vld [vmem:[%s2606 + $0xf0] sm:$0xff]
        %v2638 = vld [vmem:[%s2606 + $0xf8] sm:$0xff]
        %v2639 = vld [vmem:[%s2606 + $0x100] sm:$0xff]
        %v2640 = vld [vmem:[%s2606 + $0x108] sm:$0xff]
        %v2641 = vld [vmem:[%s2606 + $0x110] sm:$0xff]
        %v2642 = vld [vmem:[%s2606 + $0x118] sm:$0xff]
        %v2643 = vld [vmem:[%s2606 + $0x120] sm:$0xff]
        %v2644 = vld [vmem:[%s2606 + $0x128] sm:$0xff]
        %v2645 = vld [vmem:[%s2606 + $0x130] sm:$0xff]
        %v2646 = vld [vmem:[%s2606 + $0x138] sm:$0xff]
        %v2647 = vld [vmem:[%s2606 + $0x140] sm:$0xff]
        %v2648 = vld [vmem:[%s2606 + $0x148] sm:$0xff]
        %v2649 = vld [vmem:[%s2606 + $0x150] sm:$0xff]
        %v2650 = vld [vmem:[%s2606 + $0x158] sm:$0xff]
        %v2651 = vld [vmem:[%s2606 + $0x160] sm:$0xff]
        %v2652 = vld [vmem:[%s2606 + $0x168] sm:$0xff]
        %v2653 = vld [vmem:[%s2606 + $0x170] sm:$0xff]
        %v2654 = vld [vmem:[%s2606 + $0x178] sm:$0xff]
        %v2655 = vld [vmem:[%s2606 + $0x180] sm:$0xff]
        %v2656 = vld [vmem:[%s2606 + $0x188] sm:$0xff]
        %v2657 = vld [vmem:[%s2606 + $0x190] sm:$0xff]
        %v2658 = vld [vmem:[%s2606 + $0x198] sm:$0xff]
        %v2659 = vld [vmem:[%s2606 + $0x1a0] sm:$0xff]
        %v2660 = vld [vmem:[%s2606 + $0x1a8] sm:$0xff]
        %v2661 = vld [vmem:[%s2606 + $0x1b0] sm:$0xff]
        %v2662 = vld [vmem:[%s2606 + $0x1b8] sm:$0xff]
        %v2663 = vld [vmem:[%s2606 + $0x1c0] sm:$0xff]
        %v2664 = vld [vmem:[%s2606 + $0x1c8] sm:$0xff]
        %v2665 = vld [vmem:[%s2606 + $0x1d0] sm:$0xff]
        %v2666 = vld [vmem:[%s2606 + $0x1d8] sm:$0xff]
        %v2667 = vld [vmem:[%s2606 + $0x1e0] sm:$0xff]
        %v2668 = vld [vmem:[%s2606 + $0x1e8] sm:$0xff]
        %v2669 = vld [vmem:[%s2606 + $0x1f0] sm:$0xff]
        %v2670 = vld [vmem:[%s2606 + $0x1f8] sm:$0xff]
        %v2675 = vrot.slane %v2602, 4
        %v2676 = vrot.slane %v1957, 4
        %v2677 = vsel %vm1000, %v2675, %v2676
        %v2678 = vrot.slane %v2603, 4
        %v2679 = vrot.slane %v1958, 4
        %v2680 = vsel %vm1000, %v2678, %v2679
        %v2681 = vrot.slane %v2604, 4
        %v2682 = vsel %vm1000, %v2676, %v2681
        %v2683 = vrot.slane %v2605, 4
        %v2684 = vsel %vm1000, %v2679, %v2683
        %2689 = vmatprep.subr.mxu0 %v2608
        %2690 = vmatpush1.msra.mxu0 %v2607
        %2691 = vmatprep.subr.mxu0 %v2610
        %2692 = vmatpush1.msra.mxu0 %v2609
        %2693 = vmatprep.subr.mxu0 %v2612
        %2694 = vmatpush1.msra.mxu0 %v2611
        %2695 = vmatprep.subr.mxu0 %v2614
        %2696 = vmatpush1.msra.mxu0 %v2613
        %2697 = vmatprep.subr.mxu0 %v2616
        %2698 = vmatpush1.msra.mxu0 %v2615
        %2699 = vmatprep.subr.mxu0 %v2618
        %2700 = vmatpush1.msra.mxu0 %v2617
        %2701 = vmatprep.subr.mxu0 %v2620
        %2702 = vmatpush1.msra.mxu0 %v2619
        %2703 = vmatprep.subr.mxu0 %v2622
        %2704 = vmatpush1.msra.mxu0 %v2621
        %2705 = vmatprep.subr.mxu0 %v2624
        %2706 = vmatpush1.msra.mxu0 %v2623
        %2707 = vmatprep.subr.mxu0 %v2626
        %2708 = vmatpush1.msra.mxu0 %v2625
        %2709 = vmatprep.subr.mxu0 %v2628
        %2710 = vmatpush1.msra.mxu0 %v2627
        %2711 = vmatprep.subr.mxu0 %v2630
        %2712 = vmatpush1.msra.mxu0 %v2629
        %2713 = vmatprep.subr.mxu0 %v2632
        %2714 = vmatpush1.msra.mxu0 %v2631
        %2715 = vmatprep.subr.mxu0 %v2634
        %2716 = vmatpush1.msra.mxu0 %v2633
        %2717 = vmatprep.subr.mxu0 %v2636
        %2718 = vmatpush1.msra.mxu0 %v2635
        %2719 = vmatprep.subr.mxu0 %v2638
        %2720 = vmatpush1.msra.mxu0 %v2637
        %2721 = vmatprep.subr.mxu0 %v2640
        %2722 = vmatpush1.msra.mxu0 %v2639
        %2723 = vmatprep.subr.mxu0 %v2642
        %2724 = vmatpush1.msra.mxu0 %v2641
        %2725 = vmatprep.subr.mxu0 %v2644
        %2726 = vmatpush1.msra.mxu0 %v2643
        %2727 = vmatprep.subr.mxu0 %v2646
        %2728 = vmatpush1.msra.mxu0 %v2645
        %2729 = vmatprep.subr.mxu0 %v2648
        %2730 = vmatpush1.msra.mxu0 %v2647
        %2731 = vmatprep.subr.mxu0 %v2650
        %2732 = vmatpush1.msra.mxu0 %v2649
        %2733 = vmatprep.subr.mxu0 %v2652
        %2734 = vmatpush1.msra.mxu0 %v2651
        %2735 = vmatprep.subr.mxu0 %v2654
        %2736 = vmatpush1.msra.mxu0 %v2653
        %2737 = vmatprep.subr.mxu0 %v2656
        %2738 = vmatpush1.msra.mxu0 %v2655
        %2739 = vmatprep.subr.mxu0 %v2658
        %2740 = vmatpush1.msra.mxu0 %v2657
        %2741 = vmatprep.subr.mxu0 %v2660
        %2742 = vmatpush1.msra.mxu0 %v2659
        %2743 = vmatprep.subr.mxu0 %v2662
        %2744 = vmatpush1.msra.mxu0 %v2661
        %2745 = vmatprep.subr.mxu0 %v2664
        %2746 = vmatpush1.msra.mxu0 %v2663
        %2747 = vmatprep.subr.mxu0 %v2666
        %2748 = vmatpush1.msra.mxu0 %v2665
        %2749 = vmatprep.subr.mxu0 %v2668
        %2750 = vmatpush1.msra.mxu0 %v2667
        %2751 = vmatprep.subr.mxu0 %v2670
        %2752 = vmatpush1.msra.mxu0 %v2669
        %2753 = vmatprep.mubr.f32.mxu0 %v2680
        %2754 = vmatmul.mubr.f32.gmra.mrb[0].mxu0 %v2677
        %v2755 = vpop.f32.mrb[0].mxu0
        %v2756 = vadd.f32 0.0, %v2755
        %v2757 = vpop.f32.mrb[0].mxu0
        %v2758 = vadd.f32 0.0, %v2757
        %2759 = vmatprep.mubr.f32.mxu0 %v2684
        %2760 = vmatmul.mubr.f32.gmra.mrb[0].mxu0 %v2682
        %v2761 = vpop.f32.mrb[0].mxu0
        %v2762 = vadd.f32 0.0, %v2761
        %v2763 = vpop.f32.mrb[0].mxu0
        %v2764 = vadd.f32 0.0, %v2763
        %2765 = vdwg.mxu0
        %v2766 = vadd.f32 %v2598, %v2756
        %v2767 = vadd.f32 %v2599, %v2758
        %v2768 = vadd.f32 %v2600, %v2762
        %v2769 = vadd.f32 %v2601, %v2764
        %2770 = vst [vmem:[%s241] sm:$0xff] %v2766
        %2771 = vst [vmem:[%s241 + $0x8] sm:$0xff] %v2767
        %2772 = vst [vmem:[%s241 + $0x10] sm:$0xff] %v2768
        %2773 = vst [vmem:[%s241 + $0x18] sm:$0xff] %v2769
        %p2774 = scmp.lt.s32.totalorder %s17, 1
        %s2775 = scalar_select %p2774, %s17, 1
        %s2776 = smul.addr %s2775, 4
        %s2777 = smul.addr %s2776, 8
        %s2778 = scalar_lea.vmem %s4, %s2777
        // Predicated region
        $region49: #{smoothnet_apply.1} parent=35 // pred_check
          %p2779 = pneg %p124
        $region50: #{smoothnet_apply.1} parent=35 // pred_check_branch
          %2781 = sbr.rel (%p2779) target = $region52
        $region51: #{smoothnet_apply.1} parent=35 // pred_region
          _
        $region52: #{smoothnet_apply.1} parent=35 // pred_fallthru
          _
      $region36: #{smoothnet_apply.1} parent=5 // pred_fallthru
        _
      %p2782 = scmp.le.s32.totalorder 2, %s12
      // Predicated region
      $region53: #{smoothnet_apply.1} parent=5 // pred_check
        %p2783 = pneg %p2782
      $region54: #{smoothnet_apply.1} parent=5 // pred_check_branch
        %2785 = sbr.rel (%p2783) target = $region56
      $region55: #{smoothnet_apply.1} parent=5 // pred_region
        %s2786 = ssub.s32 %s12, 2
        // Predicated region
        $region57: #{smoothnet_apply.1} parent=55 // pred_check
          %p2787 = pneg %p130
        $region58: #{smoothnet_apply.1} parent=55 // pred_check_branch
          %2789 = sbr.rel (%p2787) target = $region60
        $region59: #{smoothnet_apply.1} parent=55 // pred_region
          %p2790 = scmp.lt.s32.totalorder %s18, 1
          %s2791 = scalar_select %p2790, %s18, 1
          %s2792 = smul.addr %s2791, 4
          %s2793 = smul.addr %s2792, 8
          %s2794 = scalar_lea.vmem %s4, %s2793
        $region60: #{smoothnet_apply.1} parent=55 // pred_fallthru
          _
      $region56: #{smoothnet_apply.1} parent=5 // pred_fallthru
        _
    $region6: #{smoothnet_apply.1} parent=1 // loop_footer
      %s16 = sadd.s32 1, %s12
    $region7: #{smoothnet_apply.1} parent=1 // loop_footer_branch
      %11 = sbr.rel target = $region3
    $region8: #{smoothnet_apply.1} parent=1 // loop_exit
      _
    %2795 = vsyncpa [#allocation5], 1
    %s2796 = scalar_lea.sflag [#allocation5], 1
    %2797 = vsyncpa %s2796, 1
    %2798 = vsyncpa [#allocation7], 1

</llo_original>
